<compile_context>
chip_gen: v7x
topology: tpu7x:2x2x1
jax: 0.10.0
libtpu: 0.0.40
codegen_flags: <defaults>
</compile_context>

<pallas_src>
import math
import functools

import numpy as np
import jax
import jax.numpy as jnp
from jax.experimental import pallas as pl
from jax.experimental.pallas import tpu as pltpu


# ----------------------------- fused Pallas kernel ---------------------------

def _fused_kernel(xa_ref, xt_ref, w_act_ref, w_time_ref, b_emb_ref,
                  wih_ref, whh_ref, b_ref, w_read_ref, b_read_ref,
                  out_ref, g_buf, *, seq_len, batch):
    """Time-major everywhere: rows ordered (t, b) -> row = t*batch + b.

    xa_ref  : (T*Bp, V)   activity features
    xt_ref  : (T*Bp, 1)   time attribute
    w_act   : (V, H)      (W_act * sqrt(H)).T
    w_time  : (1, H)      (W_time * sqrt(H)).T
    b_emb   : (1, H)      (b_act + b_time) * sqrt(H)
    wih/whh : (L, H, 4H)  gate order (i, f, o, g)
    b       : (L, 1, 4H)  b_ih + b_hh, gate order (i, f, o, g)
    w_read  : (1, H), b_read : (1, 1)
    out_ref : (T*Bp, 1)
    g_buf   : VMEM (T*Bp, 4H)  hoisted layer-0 input projections (all timesteps)
    """
    H = w_act_ref.shape[1]
    L = wih_ref.shape[0]
    T = seq_len
    Bp = batch

    # ---- ManualEmbedding (sqrt(H)/biases pre-folded) feeding layer-0's hoisted input
    # projection for ALL timesteps: two dense lane-dense MXU matmuls, done once.
    emb = (jnp.dot(xa_ref[...], w_act_ref[...], preferred_element_type=jnp.float32)
           + xt_ref[...] * w_time_ref[...]
           + b_emb_ref[...])                                          # (T*Bp, H)
    g_buf[...] = (jnp.dot(emb, wih_ref[0], preferred_element_type=jnp.float32)
                  + b_ref[0])                                         # (T*Bp, 4H)

    # Hoist weight loads out of the (fully static) wavefront.
    wih = [wih_ref[l] for l in range(L)]      # wih[0] unused below (already hoisted)
    whh = [whh_ref[l] for l in range(L)]
    bias = [b_ref[l] for l in range(L)]
    w_read = w_read_ref[...]                                          # (1, H)
    b_read = b_read_ref[...]                                          # (1, 1)

    # Per-layer recurrent state, kept live across the wavefront (zero initial state).
    h = [jnp.zeros((Bp, H), jnp.float32) for _ in range(L)]
    c = [jnp.zeros((Bp, H), jnp.float32) for _ in range(L)]

    def cell(g, c_prev):
        sig = jax.nn.sigmoid(g[:, :3 * H])        # i, f, o in one EUP pass
        i_g = sig[:, 0:H]
        f_g = sig[:, H:2 * H]
        o_g = sig[:, 2 * H:3 * H]
        g_g = jnp.tanh(g[:, 3 * H:4 * H])
        c_new = f_g * c_prev + i_g * g_g
        h_new = o_g * jnp.tanh(c_new)
        return h_new, c_new

    # ---- Wavefront recurrence: step s runs (layer l, t = s - l) for every valid l.
    # Critical path = T + L - 1 dependent cell updates instead of L * T.
    for s in range(T + L - 1):
        for l in range(L - 1, -1, -1):            # decreasing layer order (see header)
            t = s - l
            if t < 0 or t >= T:
                continue
            row = t * Bp                          # static, sublane-aligned
            if l == 0:
                g = (g_buf[pl.ds(row, Bp), :]
                     + jnp.dot(h[0], whh[0], preferred_element_type=jnp.float32))
            else:
                g = (jnp.dot(h[l - 1], wih[l], preferred_element_type=jnp.float32)
                     + jnp.dot(h[l], whh[l], preferred_element_type=jnp.float32)
                     + bias[l])
            h[l], c[l] = cell(g, c[l])
            if l == L - 1:
                # Readout fused into the top layer's step: VPU multiply + lane reduce;
                # no (T*Bp, H) activation writeback for the top layer at all.
                y = jnp.sum(h[l] * w_read, axis=-1, keepdims=True) + b_read
                out_ref[pl.ds(row, Bp), :] = y


# ------------------------------------ wrapper --------------------------------

def sequential_discriminator(x_act, x_time, params):
    """x_act: (B, T, V) float32, x_time: (B, T, 1) float32 -> (B, T, 1) float32."""
    B, T, V = x_act.shape
    H = params["b_act"].shape[0]
    scale = math.sqrt(H)
    Bp = max(8, ((B + 7) // 8) * 8)               # pad batch to a sublane multiple

    # One-time time-major layout + batch pad (tiny here; fold into the kernel's DMA via
    # a BlockSpec index_map over T if T*B*V ever gets large).
    xa = jnp.transpose(x_act.astype(jnp.float32), (1, 0, 2))   # (T, B, V)
    xt = jnp.transpose(x_time.astype(jnp.float32), (1, 0, 2))  # (T, B, 1)
    if Bp != B:
        pad = ((0, 0), (0, Bp - B), (0, 0))
        xa = jnp.pad(xa, pad)
        xt = jnp.pad(xt, pad)
    xa = xa.reshape(T * Bp, V)
    xt = xt.reshape(T * Bp, 1)

    # Embedding weights: fold sqrt(H), pre-transpose, pre-sum biases.
    w_act = (params["W_act"] * scale).T                              # (V, H)
    w_time = (params["W_time"] * scale).T                            # (1, H)
    b_emb = ((params["b_act"] + params["b_time"]) * scale)[None, :]  # (1, H)

    # LSTM weights: reorder gates (i,f,g,o) -> (i,f,o,g), pre-transpose, fold biases.
    perm = np.concatenate([np.arange(0, 2 * H),
                           np.arange(3 * H, 4 * H),
                           np.arange(2 * H, 3 * H)])
    wih_all = jnp.stack([l["W_ih"][perm].T for l in params["lstm"]])     # (L, H, 4H)
    whh_all = jnp.stack([l["W_hh"][perm].T for l in params["lstm"]])     # (L, H, 4H)
    b_all = jnp.stack([((l["b_ih"] + l["b_hh"])[perm])[None, :]
                       for l in params["lstm"]])                         # (L, 1, 4H)

    w_read = params["W_read"]                                        # (1, H)
    b_read = params["b_read"].reshape(1, 1)                          # (1, 1)

    # Scoped-VMEM budget from the actual footprint (operands + scratch + output) with
    # 2x headroom; defaults (16 MiB v5e / 32 MiB v6e,v7x) are too low at real sizes.
    f32 = 4
    arg_bytes = f32 * (xa.size + xt.size + w_act.size + w_time.size + b_emb.size
                       + wih_all.size + whh_all.size + b_all.size
                       + w_read.size + b_read.size)
    scratch_bytes = f32 * T * Bp * 4 * H
    out_bytes = f32 * T * Bp
    vmem_limit = int(min(max(2 * (arg_bytes + scratch_bytes + out_bytes) + (8 << 20),
                             32 << 20),
                         64 << 20))

    out = pl.pallas_call(
        functools.partial(_fused_kernel, seq_len=T, batch=Bp),
        out_shape=jax.ShapeDtypeStruct((T * Bp, 1), jnp.float32),
        scratch_shapes=[pltpu.VMEM((T * Bp, 4 * H), jnp.float32)],
        compiler_params=pltpu.CompilerParams(vmem_limit_bytes=vmem_limit),
    )(xa, xt, w_act, w_time, b_emb, wih_all, whh_all, b_all, w_read, b_read)

    out = out.reshape(T, Bp, 1)[:, :B, :]                            # drop batch pad
    return jnp.transpose(out, (1, 0, 2))                             # (B, T, 1)


# ------------------------- deterministic parameters ---------------------------

def _uniform(key, shape, fan_in):
    bound = 1.0 / math.sqrt(fan_in)
    return jax.random.uniform(key, shape, jnp.float32, -bound, bound)


def init_params(key, hidden_size, vocab_size, num_layers):
    H, V = hidden_size, vocab_size
    keys = iter(jax.random.split(key, 6 + 4 * num_layers + 2))
    params = {
        "W_act": _uniform(next(keys), (H, V), V),
        "b_act": _uniform(next(keys), (H,), V),
        "W_time": _uniform(next(keys), (H, 1), 1),
        "b_time": _uniform(next(keys), (H,), 1),
        "lstm": [],
        "W_read": _uniform(next(keys), (1, H), H),
        "b_read": _uniform(next(keys), (1,), H),
    }
    for _ in range(num_layers):
        params["lstm"].append({
            "W_ih": _uniform(next(keys), (4 * H, H), H),
            "W_hh": _uniform(next(keys), (4 * H, H), H),
            "b_ih": _uniform(next(keys), (4 * H,), H),
            "b_hh": _uniform(next(keys), (4 * H,), H),
        })
    return params


# ----------------------------- pure-JAX reference -----------------------------

def reference(x_act, x_time, params):
    H = params["b_act"].shape[0]
    emb = (x_act @ params["W_act"].T + params["b_act"]
           + x_time @ params["W_time"].T + params["b_time"]) * math.sqrt(H)
    B, T, _ = emb.shape
    h_seq = emb
    for layer in params["lstm"]:
        h = jnp.zeros((B, H), jnp.float32)
        c = jnp.zeros((B, H), jnp.float32)
        outs = []
        for t in range(T):
            gates = (h_seq[:, t] @ layer["W_ih"].T + layer["b_ih"]
                     + h @ layer["W_hh"].T + layer["b_hh"])
            i = jax.nn.sigmoid(gates[:, 0:H])
            f = jax.nn.sigmoid(gates[:, H:2 * H])
            g = jnp.tanh(gates[:, 2 * H:3 * H])
            o = jax.nn.sigmoid(gates[:, 3 * H:4 * H])
            c = f * c + i * g
            h = o * jnp.tanh(c)
            outs.append(h)
        h_seq = jnp.stack(outs, axis=1)
    return h_seq @ params["W_read"].T + params["b_read"]


# ------------------------------------ main -------------------------------------

if __name__ == "__main__":
    B, T = 2, 8
    hidden_size = 32
    num_layers = 2
    vocab_size, nb_special_tokens = 16, 4
    V = vocab_size + nb_special_tokens

    key = jax.random.PRNGKey(0)
    k_p, k_a, k_t = jax.random.split(key, 3)
    params = init_params(k_p, hidden_size, V, num_layers)

    # x[0]: activity logits (B, T, 1, V) in PyTorch -> (B, T, V) here (squeeze(2) folded in)
    x_act = jax.random.normal(k_a, (B, T, V), jnp.float32)
    # x[1]: time attribute (B, T, 1)
    x_time = jax.random.normal(k_t, (B, T, 1), jnp.float32)

    out = sequential_discriminator(x_act, x_time, params)
    out = jax.block_until_ready(out)

    ref = jax.block_until_ready(reference(x_act, x_time, params))
    assert out.shape == (B, T, 1)
    np.testing.assert_allclose(np.asarray(out), np.asarray(ref), atol=1e-4, rtol=1e-4)

    print("KERNEL_OK")
</pallas_src>

<mosaic_0001>
module attributes {stable_mosaic.version = 11 : i64} {
  func.func @_fused_kernel(%arg0: memref<64x20xf32, #tpu.memory_space<vmem>>, %arg1: memref<64x1xf32, #tpu.memory_space<vmem>>, %arg2: memref<20x32xf32, #tpu.memory_space<vmem>>, %arg3: memref<1x32xf32, #tpu.memory_space<vmem>>, %arg4: memref<1x32xf32, #tpu.memory_space<vmem>>, %arg5: memref<2x32x128xf32, #tpu.memory_space<vmem>>, %arg6: memref<2x32x128xf32, #tpu.memory_space<vmem>>, %arg7: memref<2x1x128xf32, #tpu.memory_space<vmem>>, %arg8: memref<1x32xf32, #tpu.memory_space<vmem>>, %arg9: memref<1x1xf32, #tpu.memory_space<vmem>>, %arg10: memref<64x1xf32, #tpu.memory_space<vmem>>, %arg11: memref<64x128xf32, #tpu.memory_space<vmem>>) attributes {dimension_semantics = [], scalar_prefetch = 0 : i64, scratch_operands = 1 : i64, tpu.core_type = #tpu.core_type<tc>} {
    %c0 = arith.constant 0 : index
    %c0_0 = arith.constant 0 : index
    %0 = vector.load %arg0[%c0, %c0_0] : memref<64x20xf32, #tpu.memory_space<vmem>>, vector<64x20xf32>
    %c0_1 = arith.constant 0 : index
    %c0_2 = arith.constant 0 : index
    %1 = vector.load %arg2[%c0_1, %c0_2] : memref<20x32xf32, #tpu.memory_space<vmem>>, vector<20x32xf32>
    %cst = arith.constant dense<0.000000e+00> : vector<64x32xf32>
    %2 = tpu.matmul %0, %1, %cst {dimension_numbers = #tpu.dot_dimension_numbers<[1], [0], [0], [1], [0, 0, 1, 1], [], []>} : vector<64x20xf32>, vector<20x32xf32>, vector<64x32xf32> -> vector<64x32xf32>
    %c0_3 = arith.constant 0 : index
    %c0_4 = arith.constant 0 : index
    %3 = vector.load %arg1[%c0_3, %c0_4] : memref<64x1xf32, #tpu.memory_space<vmem>>, vector<64x1xf32>
    %c0_5 = arith.constant 0 : index
    %c0_6 = arith.constant 0 : index
    %4 = vector.load %arg3[%c0_5, %c0_6] : memref<1x32xf32, #tpu.memory_space<vmem>>, vector<1x32xf32>
    %5 = vector.broadcast %3 : vector<64x1xf32> to vector<64x32xf32>
    %6 = vector.broadcast %4 : vector<1x32xf32> to vector<64x32xf32>
    %7 = arith.mulf %5, %6 : vector<64x32xf32>
    %8 = arith.addf %2, %7 : vector<64x32xf32>
    %c0_7 = arith.constant 0 : index
    %c0_8 = arith.constant 0 : index
    %9 = vector.load %arg4[%c0_7, %c0_8] : memref<1x32xf32, #tpu.memory_space<vmem>>, vector<1x32xf32>
    %10 = vector.broadcast %9 : vector<1x32xf32> to vector<64x32xf32>
    %11 = arith.addf %8, %10 : vector<64x32xf32>
    %c0_9 = arith.constant 0 : index
    %c0_10 = arith.constant 0 : index
    %c0_11 = arith.constant 0 : index
    %12 = vector.load %arg5[%c0_9, %c0_10, %c0_11] : memref<2x32x128xf32, #tpu.memory_space<vmem>>, vector<1x32x128xf32>
    %13 = vector.shape_cast %12 : vector<1x32x128xf32> to vector<32x128xf32>
    %cst_12 = arith.constant dense<0.000000e+00> : vector<64x128xf32>
    %14 = tpu.matmul %11, %13, %cst_12 {dimension_numbers = #tpu.dot_dimension_numbers<[1], [0], [0], [1], [0, 0, 1, 1], [], []>} : vector<64x32xf32>, vector<32x128xf32>, vector<64x128xf32> -> vector<64x128xf32>
    %c0_13 = arith.constant 0 : index
    %c0_14 = arith.constant 0 : index
    %c0_15 = arith.constant 0 : index
    %15 = vector.load %arg7[%c0_13, %c0_14, %c0_15] : memref<2x1x128xf32, #tpu.memory_space<vmem>>, vector<1x1x128xf32>
    %16 = vector.shape_cast %15 : vector<1x1x128xf32> to vector<1x128xf32>
    %17 = vector.broadcast %16 : vector<1x128xf32> to vector<64x128xf32>
    %18 = arith.addf %14, %17 : vector<64x128xf32>
    %c0_16 = arith.constant 0 : index
    %c0_17 = arith.constant 0 : index
    %19 = vector.load %arg11[%c0_16, %c0_17] : memref<64x128xf32, #tpu.memory_space<vmem>>, vector<64x128xf32>
    tpu.vector_store %arg11[%c0_16, %c0_17], %18 {strides = array<i32>} : memref<64x128xf32, #tpu.memory_space<vmem>>, vector<64x128xf32>,
    %c1 = arith.constant 1 : index
    %c0_18 = arith.constant 0 : index
    %c0_19 = arith.constant 0 : index
    %20 = vector.load %arg5[%c1, %c0_18, %c0_19] : memref<2x32x128xf32, #tpu.memory_space<vmem>>, vector<1x32x128xf32>
    %21 = vector.shape_cast %20 : vector<1x32x128xf32> to vector<32x128xf32>
    %c0_20 = arith.constant 0 : index
    %c0_21 = arith.constant 0 : index
    %c0_22 = arith.constant 0 : index
    %22 = vector.load %arg6[%c0_20, %c0_21, %c0_22] : memref<2x32x128xf32, #tpu.memory_space<vmem>>, vector<1x32x128xf32>
    %23 = vector.shape_cast %22 : vector<1x32x128xf32> to vector<32x128xf32>
    %c1_23 = arith.constant 1 : index
    %c0_24 = arith.constant 0 : index
    %c0_25 = arith.constant 0 : index
    %24 = vector.load %arg6[%c1_23, %c0_24, %c0_25] : memref<2x32x128xf32, #tpu.memory_space<vmem>>, vector<1x32x128xf32>
    %25 = vector.shape_cast %24 : vector<1x32x128xf32> to vector<32x128xf32>
    %c1_26 = arith.constant 1 : index
    %c0_27 = arith.constant 0 : index
    %c0_28 = arith.constant 0 : index
    %26 = vector.load %arg7[%c1_26, %c0_27, %c0_28] : memref<2x1x128xf32, #tpu.memory_space<vmem>>, vector<1x1x128xf32>
    %27 = vector.shape_cast %26 : vector<1x1x128xf32> to vector<1x128xf32>
    %c0_29 = arith.constant 0 : index
    %c0_30 = arith.constant 0 : index
    %28 = vector.load %arg8[%c0_29, %c0_30] : memref<1x32xf32, #tpu.memory_space<vmem>>, vector<1x32xf32>
    %c0_31 = arith.constant 0 : index
    %c0_32 = arith.constant 0 : index
    %29 = vector.load %arg9[%c0_31, %c0_32] : memref<1x1xf32, #tpu.memory_space<vmem>>, vector<1x1xf32>
    %cst_33 = arith.constant 0.000000e+00 : f32
    %30 = vector.broadcast %cst_33 : f32 to vector<8x32xf32>
    %cst_34 = arith.constant 0.000000e+00 : f32
    %31 = vector.broadcast %cst_34 : f32 to vector<8x32xf32>
    %cst_35 = arith.constant 0.000000e+00 : f32
    %32 = vector.broadcast %cst_35 : f32 to vector<8x32xf32>
    %cst_36 = arith.constant 0.000000e+00 : f32
    %33 = vector.broadcast %cst_36 : f32 to vector<8x32xf32>
    %c0_37 = arith.constant 0 : index
    %c0_38 = arith.constant 0 : index
    %34 = vector.load %arg11[%c0_37, %c0_38] : memref<64x128xf32, #tpu.memory_space<vmem>>, vector<8x128xf32>
    %cst_39 = arith.constant dense<0.000000e+00> : vector<8x128xf32>
    %35 = tpu.matmul %30, %23, %cst_39 {dimension_numbers = #tpu.dot_dimension_numbers<[1], [0], [0], [1], [0, 0, 1, 1], [], []>} : vector<8x32xf32>, vector<32x128xf32>, vector<8x128xf32> -> vector<8x128xf32>
    %36 = arith.addf %34, %35 : vector<8x128xf32>
    %37 = vector.extract_strided_slice %36 {offsets = [0, 0], sizes = [8, 96], strides = [1, 1]} : vector<8x128xf32> to vector<8x96xf32>
    %38 = arith.negf %37 : vector<8x96xf32>
    %39 = math.exp %38 : vector<8x96xf32>
    %cst_40 = arith.constant 1.000000e+00 : f32
    %40 = vector.broadcast %cst_40 : f32 to vector<8x96xf32>
    %41 = arith.addf %40, %39 : vector<8x96xf32>
    %42 = arith.divf %40, %41 : vector<8x96xf32>
    %43 = vector.extract_strided_slice %42 {offsets = [0, 0], sizes = [8, 32], strides = [1, 1]} : vector<8x96xf32> to vector<8x32xf32>
    %44 = vector.extract_strided_slice %42 {offsets = [0, 32], sizes = [8, 32], strides = [1, 1]} : vector<8x96xf32> to vector<8x32xf32>
    %45 = vector.extract_strided_slice %42 {offsets = [0, 64], sizes = [8, 32], strides = [1, 1]} : vector<8x96xf32> to vector<8x32xf32>
    %46 = vector.extract_strided_slice %36 {offsets = [0, 96], sizes = [8, 32], strides = [1, 1]} : vector<8x128xf32> to vector<8x32xf32>
    %47 = math.tanh %46 : vector<8x32xf32>
    %48 = arith.mulf %44, %32 : vector<8x32xf32>
    %49 = arith.mulf %43, %47 : vector<8x32xf32>
    %50 = arith.addf %48, %49 : vector<8x32xf32>
    %51 = math.tanh %50 : vector<8x32xf32>
    %52 = arith.mulf %45, %51 : vector<8x32xf32>
    %cst_41 = arith.constant dense<0.000000e+00> : vector<8x128xf32>
    %53 = tpu.matmul %52, %21, %cst_41 {dimension_numbers = #tpu.dot_dimension_numbers<[1], [0], [0], [1], [0, 0, 1, 1], [], []>} : vector<8x32xf32>, vector<32x128xf32>, vector<8x128xf32> -> vector<8x128xf32>
    %cst_42 = arith.constant dense<0.000000e+00> : vector<8x128xf32>
    %54 = tpu.matmul %31, %25, %cst_42 {dimension_numbers = #tpu.dot_dimension_numbers<[1], [0], [0], [1], [0, 0, 1, 1], [], []>} : vector<8x32xf32>, vector<32x128xf32>, vector<8x128xf32> -> vector<8x128xf32>
    %55 = arith.addf %53, %54 : vector<8x128xf32>
    %56 = vector.broadcast %27 : vector<1x128xf32> to vector<8x128xf32>
    %57 = arith.addf %55, %56 : vector<8x128xf32>
    %58 = vector.extract_strided_slice %57 {offsets = [0, 0], sizes = [8, 96], strides = [1, 1]} : vector<8x128xf32> to vector<8x96xf32>
    %59 = arith.negf %58 : vector<8x96xf32>
    %60 = math.exp %59 : vector<8x96xf32>
    %cst_43 = arith.constant 1.000000e+00 : f32
    %61 = vector.broadcast %cst_43 : f32 to vector<8x96xf32>
    %62 = arith.addf %61, %60 : vector<8x96xf32>
    %63 = arith.divf %61, %62 : vector<8x96xf32>
    %64 = vector.extract_strided_slice %63 {offsets = [0, 0], sizes = [8, 32], strides = [1, 1]} : vector<8x96xf32> to vector<8x32xf32>
    %65 = vector.extract_strided_slice %63 {offsets = [0, 32], sizes = [8, 32], strides = [1, 1]} : vector<8x96xf32> to vector<8x32xf32>
    %66 = vector.extract_strided_slice %63 {offsets = [0, 64], sizes = [8, 32], strides = [1, 1]} : vector<8x96xf32> to vector<8x32xf32>
    %67 = vector.extract_strided_slice %57 {offsets = [0, 96], sizes = [8, 32], strides = [1, 1]} : vector<8x128xf32> to vector<8x32xf32>
    %68 = math.tanh %67 : vector<8x32xf32>
    %69 = arith.mulf %65, %33 : vector<8x32xf32>
    %70 = arith.mulf %64, %68 : vector<8x32xf32>
    %71 = arith.addf %69, %70 : vector<8x32xf32>
    %72 = math.tanh %71 : vector<8x32xf32>
    %73 = arith.mulf %66, %72 : vector<8x32xf32>
    %74 = vector.broadcast %28 : vector<1x32xf32> to vector<8x32xf32>
    %75 = arith.mulf %73, %74 : vector<8x32xf32>
    %cst_44 = arith.constant dense<0.000000e+00> : vector<8xf32>
    %76 = vector.multi_reduction <add>, %75, %cst_44 [1] : vector<8x32xf32> to vector<8xf32>
    %77 = vector.shape_cast %76 : vector<8xf32> to vector<8x1xf32>
    %78 = vector.broadcast %29 : vector<1x1xf32> to vector<8x1xf32>
    %79 = arith.addf %77, %78 : vector<8x1xf32>
    %c0_45 = arith.constant 0 : index
    %c0_46 = arith.constant 0 : index
    %80 = vector.load %arg10[%c0_45, %c0_46] : memref<64x1xf32, #tpu.memory_space<vmem>>, vector<8x1xf32>
    tpu.vector_store %arg10[%c0_45, %c0_46], %79 {strides = array<i32>} : memref<64x1xf32, #tpu.memory_space<vmem>>, vector<8x1xf32>,
    %c8 = arith.constant 8 : index
    %c0_47 = arith.constant 0 : index
    %81 = vector.load %arg11[%c8, %c0_47] : memref<64x128xf32, #tpu.memory_space<vmem>>, vector<8x128xf32>
    %cst_48 = arith.constant dense<0.000000e+00> : vector<8x128xf32>
    %82 = tpu.matmul %52, %23, %cst_48 {dimension_numbers = #tpu.dot_dimension_numbers<[1], [0], [0], [1], [0, 0, 1, 1], [], []>} : vector<8x32xf32>, vector<32x128xf32>, vector<8x128xf32> -> vector<8x128xf32>
    %83 = arith.addf %81, %82 : vector<8x128xf32>
    %84 = vector.extract_strided_slice %83 {offsets = [0, 0], sizes = [8, 96], strides = [1, 1]} : vector<8x128xf32> to vector<8x96xf32>
    %85 = arith.negf %84 : vector<8x96xf32>
    %86 = math.exp %85 : vector<8x96xf32>
    %cst_49 = arith.constant 1.000000e+00 : f32
    %87 = vector.broadcast %cst_49 : f32 to vector<8x96xf32>
    %88 = arith.addf %87, %86 : vector<8x96xf32>
    %89 = arith.divf %87, %88 : vector<8x96xf32>
    %90 = vector.extract_strided_slice %89 {offsets = [0, 0], sizes = [8, 32], strides = [1, 1]} : vector<8x96xf32> to vector<8x32xf32>
    %91 = vector.extract_strided_slice %89 {offsets = [0, 32], sizes = [8, 32], strides = [1, 1]} : vector<8x96xf32> to vector<8x32xf32>
    %92 = vector.extract_strided_slice %89 {offsets = [0, 64], sizes = [8, 32], strides = [1, 1]} : vector<8x96xf32> to vector<8x32xf32>
    %93 = vector.extract_strided_slice %83 {offsets = [0, 96], sizes = [8, 32], strides = [1, 1]} : vector<8x128xf32> to vector<8x32xf32>
    %94 = math.tanh %93 : vector<8x32xf32>
    %95 = arith.mulf %91, %50 : vector<8x32xf32>
    %96 = arith.mulf %90, %94 : vector<8x32xf32>
    %97 = arith.addf %95, %96 : vector<8x32xf32>
    %98 = math.tanh %97 : vector<8x32xf32>
    %99 = arith.mulf %92, %98 : vector<8x32xf32>
    %cst_50 = arith.constant dense<0.000000e+00> : vector<8x128xf32>
    %100 = tpu.matmul %99, %21, %cst_50 {dimension_numbers = #tpu.dot_dimension_numbers<[1], [0], [0], [1], [0, 0, 1, 1], [], []>} : vector<8x32xf32>, vector<32x128xf32>, vector<8x128xf32> -> vector<8x128xf32>
    %cst_51 = arith.constant dense<0.000000e+00> : vector<8x128xf32>
    %101 = tpu.matmul %73, %25, %cst_51 {dimension_numbers = #tpu.dot_dimension_numbers<[1], [0], [0], [1], [0, 0, 1, 1], [], []>} : vector<8x32xf32>, vector<32x128xf32>, vector<8x128xf32> -> vector<8x128xf32>
    %102 = arith.addf %100, %101 : vector<8x128xf32>
    %103 = vector.broadcast %27 : vector<1x128xf32> to vector<8x128xf32>
    %104 = arith.addf %102, %103 : vector<8x128xf32>
    %105 = vector.extract_strided_slice %104 {offsets = [0, 0], sizes = [8, 96], strides = [1, 1]} : vector<8x128xf32> to vector<8x96xf32>
    %106 = arith.negf %105 : vector<8x96xf32>
    %107 = math.exp %106 : vector<8x96xf32>
    %cst_52 = arith.constant 1.000000e+00 : f32
    %108 = vector.broadcast %cst_52 : f32 to vector<8x96xf32>
    %109 = arith.addf %108, %107 : vector<8x96xf32>
    %110 = arith.divf %108, %109 : vector<8x96xf32>
    %111 = vector.extract_strided_slice %110 {offsets = [0, 0], sizes = [8, 32], strides = [1, 1]} : vector<8x96xf32> to vector<8x32xf32>
    %112 = vector.extract_strided_slice %110 {offsets = [0, 32], sizes = [8, 32], strides = [1, 1]} : vector<8x96xf32> to vector<8x32xf32>
    %113 = vector.extract_strided_slice %110 {offsets = [0, 64], sizes = [8, 32], strides = [1, 1]} : vector<8x96xf32> to vector<8x32xf32>
    %114 = vector.extract_strided_slice %104 {offsets = [0, 96], sizes = [8, 32], strides = [1, 1]} : vector<8x128xf32> to vector<8x32xf32>
    %115 = math.tanh %114 : vector<8x32xf32>
    %116 = arith.mulf %112, %71 : vector<8x32xf32>
    %117 = arith.mulf %111, %115 : vector<8x32xf32>
    %118 = arith.addf %116, %117 : vector<8x32xf32>
    %119 = math.tanh %118 : vector<8x32xf32>
    %120 = arith.mulf %113, %119 : vector<8x32xf32>
    %121 = vector.broadcast %28 : vector<1x32xf32> to vector<8x32xf32>
    %122 = arith.mulf %120, %121 : vector<8x32xf32>
    %cst_53 = arith.constant dense<0.000000e+00> : vector<8xf32>
    %123 = vector.multi_reduction <add>, %122, %cst_53 [1] : vector<8x32xf32> to vector<8xf32>
    %124 = vector.shape_cast %123 : vector<8xf32> to vector<8x1xf32>
    %125 = vector.broadcast %29 : vector<1x1xf32> to vector<8x1xf32>
    %126 = arith.addf %124, %125 : vector<8x1xf32>
    %c8_54 = arith.constant 8 : index
    %c0_55 = arith.constant 0 : index
    %127 = vector.load %arg10[%c8_54, %c0_55] : memref<64x1xf32, #tpu.memory_space<vmem>>, vector<8x1xf32>
    tpu.vector_store %arg10[%c8_54, %c0_55], %126 {strides = array<i32>} : memref<64x1xf32, #tpu.memory_space<vmem>>, vector<8x1xf32>,
    %c16 = arith.constant 16 : index
    %c0_56 = arith.constant 0 : index
    %128 = vector.load %arg11[%c16, %c0_56] : memref<64x128xf32, #tpu.memory_space<vmem>>, vector<8x128xf32>
    %cst_57 = arith.constant dense<0.000000e+00> : vector<8x128xf32>
    %129 = tpu.matmul %99, %23, %cst_57 {dimension_numbers = #tpu.dot_dimension_numbers<[1], [0], [0], [1], [0, 0, 1, 1], [], []>} : vector<8x32xf32>, vector<32x128xf32>, vector<8x128xf32> -> vector<8x128xf32>
    %130 = arith.addf %128, %129 : vector<8x128xf32>
    %131 = vector.extract_strided_slice %130 {offsets = [0, 0], sizes = [8, 96], strides = [1, 1]} : vector<8x128xf32> to vector<8x96xf32>
    %132 = arith.negf %131 : vector<8x96xf32>
    %133 = math.exp %132 : vector<8x96xf32>
    %cst_58 = arith.constant 1.000000e+00 : f32
    %134 = vector.broadcast %cst_58 : f32 to vector<8x96xf32>
    %135 = arith.addf %134, %133 : vector<8x96xf32>
    %136 = arith.divf %134, %135 : vector<8x96xf32>
    %137 = vector.extract_strided_slice %136 {offsets = [0, 0], sizes = [8, 32], strides = [1, 1]} : vector<8x96xf32> to vector<8x32xf32>
    %138 = vector.extract_strided_slice %136 {offsets = [0, 32], sizes = [8, 32], strides = [1, 1]} : vector<8x96xf32> to vector<8x32xf32>
    %139 = vector.extract_strided_slice %136 {offsets = [0, 64], sizes = [8, 32], strides = [1, 1]} : vector<8x96xf32> to vector<8x32xf32>
    %140 = vector.extract_strided_slice %130 {offsets = [0, 96], sizes = [8, 32], strides = [1, 1]} : vector<8x128xf32> to vector<8x32xf32>
    %141 = math.tanh %140 : vector<8x32xf32>
    %142 = arith.mulf %138, %97 : vector<8x32xf32>
    %143 = arith.mulf %137, %141 : vector<8x32xf32>
    %144 = arith.addf %142, %143 : vector<8x32xf32>
    %145 = math.tanh %144 : vector<8x32xf32>
    %146 = arith.mulf %139, %145 : vector<8x32xf32>
    %cst_59 = arith.constant dense<0.000000e+00> : vector<8x128xf32>
    %147 = tpu.matmul %146, %21, %cst_59 {dimension_numbers = #tpu.dot_dimension_numbers<[1], [0], [0], [1], [0, 0, 1, 1], [], []>} : vector<8x32xf32>, vector<32x128xf32>, vector<8x128xf32> -> vector<8x128xf32>
    %cst_60 = arith.constant dense<0.000000e+00> : vector<8x128xf32>
    %148 = tpu.matmul %120, %25, %cst_60 {dimension_numbers = #tpu.dot_dimension_numbers<[1], [0], [0], [1], [0, 0, 1, 1], [], []>} : vector<8x32xf32>, vector<32x128xf32>, vector<8x128xf32> -> vector<8x128xf32>
    %149 = arith.addf %147, %148 : vector<8x128xf32>
    %150 = vector.broadcast %27 : vector<1x128xf32> to vector<8x128xf32>
    %151 = arith.addf %149, %150 : vector<8x128xf32>
    %152 = vector.extract_strided_slice %151 {offsets = [0, 0], sizes = [8, 96], strides = [1, 1]} : vector<8x128xf32> to vector<8x96xf32>
    %153 = arith.negf %152 : vector<8x96xf32>
    %154 = math.exp %153 : vector<8x96xf32>
    %cst_61 = arith.constant 1.000000e+00 : f32
    %155 = vector.broadcast %cst_61 : f32 to vector<8x96xf32>
    %156 = arith.addf %155, %154 : vector<8x96xf32>
    %157 = arith.divf %155, %156 : vector<8x96xf32>
    %158 = vector.extract_strided_slice %157 {offsets = [0, 0], sizes = [8, 32], strides = [1, 1]} : vector<8x96xf32> to vector<8x32xf32>
    %159 = vector.extract_strided_slice %157 {offsets = [0, 32], sizes = [8, 32], strides = [1, 1]} : vector<8x96xf32> to vector<8x32xf32>
    %160 = vector.extract_strided_slice %157 {offsets = [0, 64], sizes = [8, 32], strides = [1, 1]} : vector<8x96xf32> to vector<8x32xf32>
    %161 = vector.extract_strided_slice %151 {offsets = [0, 96], sizes = [8, 32], strides = [1, 1]} : vector<8x128xf32> to vector<8x32xf32>
    %162 = math.tanh %161 : vector<8x32xf32>
    %163 = arith.mulf %159, %118 : vector<8x32xf32>
    %164 = arith.mulf %158, %162 : vector<8x32xf32>
    %165 = arith.addf %163, %164 : vector<8x32xf32>
    %166 = math.tanh %165 : vector<8x32xf32>
    %167 = arith.mulf %160, %166 : vector<8x32xf32>
    %168 = vector.broadcast %28 : vector<1x32xf32> to vector<8x32xf32>
    %169 = arith.mulf %167, %168 : vector<8x32xf32>
    %cst_62 = arith.constant dense<0.000000e+00> : vector<8xf32>
    %170 = vector.multi_reduction <add>, %169, %cst_62 [1] : vector<8x32xf32> to vector<8xf32>
    %171 = vector.shape_cast %170 : vector<8xf32> to vector<8x1xf32>
    %172 = vector.broadcast %29 : vector<1x1xf32> to vector<8x1xf32>
    %173 = arith.addf %171, %172 : vector<8x1xf32>
    %c16_63 = arith.constant 16 : index
    %c0_64 = arith.constant 0 : index
    %174 = vector.load %arg10[%c16_63, %c0_64] : memref<64x1xf32, #tpu.memory_space<vmem>>, vector<8x1xf32>
    tpu.vector_store %arg10[%c16_63, %c0_64], %173 {strides = array<i32>} : memref<64x1xf32, #tpu.memory_space<vmem>>, vector<8x1xf32>,
    %c24 = arith.constant 24 : index
    %c0_65 = arith.constant 0 : index
    %175 = vector.load %arg11[%c24, %c0_65] : memref<64x128xf32, #tpu.memory_space<vmem>>, vector<8x128xf32>
    %cst_66 = arith.constant dense<0.000000e+00> : vector<8x128xf32>
    %176 = tpu.matmul %146, %23, %cst_66 {dimension_numbers = #tpu.dot_dimension_numbers<[1], [0], [0], [1], [0, 0, 1, 1], [], []>} : vector<8x32xf32>, vector<32x128xf32>, vector<8x128xf32> -> vector<8x128xf32>
    %177 = arith.addf %175, %176 : vector<8x128xf32>
    %178 = vector.extract_strided_slice %177 {offsets = [0, 0], sizes = [8, 96], strides = [1, 1]} : vector<8x128xf32> to vector<8x96xf32>
    %179 = arith.negf %178 : vector<8x96xf32>
    %180 = math.exp %179 : vector<8x96xf32>
    %cst_67 = arith.constant 1.000000e+00 : f32
    %181 = vector.broadcast %cst_67 : f32 to vector<8x96xf32>
    %182 = arith.addf %181, %180 : vector<8x96xf32>
    %183 = arith.divf %181, %182 : vector<8x96xf32>
    %184 = vector.extract_strided_slice %183 {offsets = [0, 0], sizes = [8, 32], strides = [1, 1]} : vector<8x96xf32> to vector<8x32xf32>
    %185 = vector.extract_strided_slice %183 {offsets = [0, 32], sizes = [8, 32], strides = [1, 1]} : vector<8x96xf32> to vector<8x32xf32>
    %186 = vector.extract_strided_slice %183 {offsets = [0, 64], sizes = [8, 32], strides = [1, 1]} : vector<8x96xf32> to vector<8x32xf32>
    %187 = vector.extract_strided_slice %177 {offsets = [0, 96], sizes = [8, 32], strides = [1, 1]} : vector<8x128xf32> to vector<8x32xf32>
    %188 = math.tanh %187 : vector<8x32xf32>
    %189 = arith.mulf %185, %144 : vector<8x32xf32>
    %190 = arith.mulf %184, %188 : vector<8x32xf32>
    %191 = arith.addf %189, %190 : vector<8x32xf32>
    %192 = math.tanh %191 : vector<8x32xf32>
    %193 = arith.mulf %186, %192 : vector<8x32xf32>
    %cst_68 = arith.constant dense<0.000000e+00> : vector<8x128xf32>
    %194 = tpu.matmul %193, %21, %cst_68 {dimension_numbers = #tpu.dot_dimension_numbers<[1], [0], [0], [1], [0, 0, 1, 1], [], []>} : vector<8x32xf32>, vector<32x128xf32>, vector<8x128xf32> -> vector<8x128xf32>
    %cst_69 = arith.constant dense<0.000000e+00> : vector<8x128xf32>
    %195 = tpu.matmul %167, %25, %cst_69 {dimension_numbers = #tpu.dot_dimension_numbers<[1], [0], [0], [1], [0, 0, 1, 1], [], []>} : vector<8x32xf32>, vector<32x128xf32>, vector<8x128xf32> -> vector<8x128xf32>
    %196 = arith.addf %194, %195 : vector<8x128xf32>
    %197 = vector.broadcast %27 : vector<1x128xf32> to vector<8x128xf32>
    %198 = arith.addf %196, %197 : vector<8x128xf32>
    %199 = vector.extract_strided_slice %198 {offsets = [0, 0], sizes = [8, 96], strides = [1, 1]} : vector<8x128xf32> to vector<8x96xf32>
    %200 = arith.negf %199 : vector<8x96xf32>
    %201 = math.exp %200 : vector<8x96xf32>
    %cst_70 = arith.constant 1.000000e+00 : f32
    %202 = vector.broadcast %cst_70 : f32 to vector<8x96xf32>
    %203 = arith.addf %202, %201 : vector<8x96xf32>
    %204 = arith.divf %202, %203 : vector<8x96xf32>
    %205 = vector.extract_strided_slice %204 {offsets = [0, 0], sizes = [8, 32], strides = [1, 1]} : vector<8x96xf32> to vector<8x32xf32>
    %206 = vector.extract_strided_slice %204 {offsets = [0, 32], sizes = [8, 32], strides = [1, 1]} : vector<8x96xf32> to vector<8x32xf32>
    %207 = vector.extract_strided_slice %204 {offsets = [0, 64], sizes = [8, 32], strides = [1, 1]} : vector<8x96xf32> to vector<8x32xf32>
    %208 = vector.extract_strided_slice %198 {offsets = [0, 96], sizes = [8, 32], strides = [1, 1]} : vector<8x128xf32> to vector<8x32xf32>
    %209 = math.tanh %208 : vector<8x32xf32>
    %210 = arith.mulf %206, %165 : vector<8x32xf32>
    %211 = arith.mulf %205, %209 : vector<8x32xf32>
    %212 = arith.addf %210, %211 : vector<8x32xf32>
    %213 = math.tanh %212 : vector<8x32xf32>
    %214 = arith.mulf %207, %213 : vector<8x32xf32>
    %215 = vector.broadcast %28 : vector<1x32xf32> to vector<8x32xf32>
    %216 = arith.mulf %214, %215 : vector<8x32xf32>
    %cst_71 = arith.constant dense<0.000000e+00> : vector<8xf32>
    %217 = vector.multi_reduction <add>, %216, %cst_71 [1] : vector<8x32xf32> to vector<8xf32>
    %218 = vector.shape_cast %217 : vector<8xf32> to vector<8x1xf32>
    %219 = vector.broadcast %29 : vector<1x1xf32> to vector<8x1xf32>
    %220 = arith.addf %218, %219 : vector<8x1xf32>
    %c24_72 = arith.constant 24 : index
    %c0_73 = arith.constant 0 : index
    %221 = vector.load %arg10[%c24_72, %c0_73] : memref<64x1xf32, #tpu.memory_space<vmem>>, vector<8x1xf32>
    tpu.vector_store %arg10[%c24_72, %c0_73], %220 {strides = array<i32>} : memref<64x1xf32, #tpu.memory_space<vmem>>, vector<8x1xf32>,
    %c32 = arith.constant 32 : index
    %c0_74 = arith.constant 0 : index
    %222 = vector.load %arg11[%c32, %c0_74] : memref<64x128xf32, #tpu.memory_space<vmem>>, vector<8x128xf32>
    %cst_75 = arith.constant dense<0.000000e+00> : vector<8x128xf32>
    %223 = tpu.matmul %193, %23, %cst_75 {dimension_numbers = #tpu.dot_dimension_numbers<[1], [0], [0], [1], [0, 0, 1, 1], [], []>} : vector<8x32xf32>, vector<32x128xf32>, vector<8x128xf32> -> vector<8x128xf32>
    %224 = arith.addf %222, %223 : vector<8x128xf32>
    %225 = vector.extract_strided_slice %224 {offsets = [0, 0], sizes = [8, 96], strides = [1, 1]} : vector<8x128xf32> to vector<8x96xf32>
    %226 = arith.negf %225 : vector<8x96xf32>
    %227 = math.exp %226 : vector<8x96xf32>
    %cst_76 = arith.constant 1.000000e+00 : f32
    %228 = vector.broadcast %cst_76 : f32 to vector<8x96xf32>
    %229 = arith.addf %228, %227 : vector<8x96xf32>
    %230 = arith.divf %228, %229 : vector<8x96xf32>
    %231 = vector.extract_strided_slice %230 {offsets = [0, 0], sizes = [8, 32], strides = [1, 1]} : vector<8x96xf32> to vector<8x32xf32>
    %232 = vector.extract_strided_slice %230 {offsets = [0, 32], sizes = [8, 32], strides = [1, 1]} : vector<8x96xf32> to vector<8x32xf32>
    %233 = vector.extract_strided_slice %230 {offsets = [0, 64], sizes = [8, 32], strides = [1, 1]} : vector<8x96xf32> to vector<8x32xf32>
    %234 = vector.extract_strided_slice %224 {offsets = [0, 96], sizes = [8, 32], strides = [1, 1]} : vector<8x128xf32> to vector<8x32xf32>
    %235 = math.tanh %234 : vector<8x32xf32>
    %236 = arith.mulf %232, %191 : vector<8x32xf32>
    %237 = arith.mulf %231, %235 : vector<8x32xf32>
    %238 = arith.addf %236, %237 : vector<8x32xf32>
    %239 = math.tanh %238 : vector<8x32xf32>
    %240 = arith.mulf %233, %239 : vector<8x32xf32>
    %cst_77 = arith.constant dense<0.000000e+00> : vector<8x128xf32>
    %241 = tpu.matmul %240, %21, %cst_77 {dimension_numbers = #tpu.dot_dimension_numbers<[1], [0], [0], [1], [0, 0, 1, 1], [], []>} : vector<8x32xf32>, vector<32x128xf32>, vector<8x128xf32> -> vector<8x128xf32>
    %cst_78 = arith.constant dense<0.000000e+00> : vector<8x128xf32>
    %242 = tpu.matmul %214, %25, %cst_78 {dimension_numbers = #tpu.dot_dimension_numbers<[1], [0], [0], [1], [0, 0, 1, 1], [], []>} : vector<8x32xf32>, vector<32x128xf32>, vector<8x128xf32> -> vector<8x128xf32>
    %243 = arith.addf %241, %242 : vector<8x128xf32>
    %244 = vector.broadcast %27 : vector<1x128xf32> to vector<8x128xf32>
    %245 = arith.addf %243, %244 : vector<8x128xf32>
    %246 = vector.extract_strided_slice %245 {offsets = [0, 0], sizes = [8, 96], strides = [1, 1]} : vector<8x128xf32> to vector<8x96xf32>
    %247 = arith.negf %246 : vector<8x96xf32>
    %248 = math.exp %247 : vector<8x96xf32>
    %cst_79 = arith.constant 1.000000e+00 : f32
    %249 = vector.broadcast %cst_79 : f32 to vector<8x96xf32>
    %250 = arith.addf %249, %248 : vector<8x96xf32>
    %251 = arith.divf %249, %250 : vector<8x96xf32>
    %252 = vector.extract_strided_slice %251 {offsets = [0, 0], sizes = [8, 32], strides = [1, 1]} : vector<8x96xf32> to vector<8x32xf32>
    %253 = vector.extract_strided_slice %251 {offsets = [0, 32], sizes = [8, 32], strides = [1, 1]} : vector<8x96xf32> to vector<8x32xf32>
    %254 = vector.extract_strided_slice %251 {offsets = [0, 64], sizes = [8, 32], strides = [1, 1]} : vector<8x96xf32> to vector<8x32xf32>
    %255 = vector.extract_strided_slice %245 {offsets = [0, 96], sizes = [8, 32], strides = [1, 1]} : vector<8x128xf32> to vector<8x32xf32>
    %256 = math.tanh %255 : vector<8x32xf32>
    %257 = arith.mulf %253, %212 : vector<8x32xf32>
    %258 = arith.mulf %252, %256 : vector<8x32xf32>
    %259 = arith.addf %257, %258 : vector<8x32xf32>
    %260 = math.tanh %259 : vector<8x32xf32>
    %261 = arith.mulf %254, %260 : vector<8x32xf32>
    %262 = vector.broadcast %28 : vector<1x32xf32> to vector<8x32xf32>
    %263 = arith.mulf %261, %262 : vector<8x32xf32>
    %cst_80 = arith.constant dense<0.000000e+00> : vector<8xf32>
    %264 = vector.multi_reduction <add>, %263, %cst_80 [1] : vector<8x32xf32> to vector<8xf32>
    %265 = vector.shape_cast %264 : vector<8xf32> to vector<8x1xf32>
    %266 = vector.broadcast %29 : vector<1x1xf32> to vector<8x1xf32>
    %267 = arith.addf %265, %266 : vector<8x1xf32>
    %c32_81 = arith.constant 32 : index
    %c0_82 = arith.constant 0 : index
    %268 = vector.load %arg10[%c32_81, %c0_82] : memref<64x1xf32, #tpu.memory_space<vmem>>, vector<8x1xf32>
    tpu.vector_store %arg10[%c32_81, %c0_82], %267 {strides = array<i32>} : memref<64x1xf32, #tpu.memory_space<vmem>>, vector<8x1xf32>,
    %c40 = arith.constant 40 : index
    %c0_83 = arith.constant 0 : index
    %269 = vector.load %arg11[%c40, %c0_83] : memref<64x128xf32, #tpu.memory_space<vmem>>, vector<8x128xf32>
    %cst_84 = arith.constant dense<0.000000e+00> : vector<8x128xf32>
    %270 = tpu.matmul %240, %23, %cst_84 {dimension_numbers = #tpu.dot_dimension_numbers<[1], [0], [0], [1], [0, 0, 1, 1], [], []>} : vector<8x32xf32>, vector<32x128xf32>, vector<8x128xf32> -> vector<8x128xf32>
    %271 = arith.addf %269, %270 : vector<8x128xf32>
    %272 = vector.extract_strided_slice %271 {offsets = [0, 0], sizes = [8, 96], strides = [1, 1]} : vector<8x128xf32> to vector<8x96xf32>
    %273 = arith.negf %272 : vector<8x96xf32>
    %274 = math.exp %273 : vector<8x96xf32>
    %cst_85 = arith.constant 1.000000e+00 : f32
    %275 = vector.broadcast %cst_85 : f32 to vector<8x96xf32>
    %276 = arith.addf %275, %274 : vector<8x96xf32>
    %277 = arith.divf %275, %276 : vector<8x96xf32>
    %278 = vector.extract_strided_slice %277 {offsets = [0, 0], sizes = [8, 32], strides = [1, 1]} : vector<8x96xf32> to vector<8x32xf32>
    %279 = vector.extract_strided_slice %277 {offsets = [0, 32], sizes = [8, 32], strides = [1, 1]} : vector<8x96xf32> to vector<8x32xf32>
    %280 = vector.extract_strided_slice %277 {offsets = [0, 64], sizes = [8, 32], strides = [1, 1]} : vector<8x96xf32> to vector<8x32xf32>
    %281 = vector.extract_strided_slice %271 {offsets = [0, 96], sizes = [8, 32], strides = [1, 1]} : vector<8x128xf32> to vector<8x32xf32>
    %282 = math.tanh %281 : vector<8x32xf32>
    %283 = arith.mulf %279, %238 : vector<8x32xf32>
    %284 = arith.mulf %278, %282 : vector<8x32xf32>
    %285 = arith.addf %283, %284 : vector<8x32xf32>
    %286 = math.tanh %285 : vector<8x32xf32>
    %287 = arith.mulf %280, %286 : vector<8x32xf32>
    %cst_86 = arith.constant dense<0.000000e+00> : vector<8x128xf32>
    %288 = tpu.matmul %287, %21, %cst_86 {dimension_numbers = #tpu.dot_dimension_numbers<[1], [0], [0], [1], [0, 0, 1, 1], [], []>} : vector<8x32xf32>, vector<32x128xf32>, vector<8x128xf32> -> vector<8x128xf32>
    %cst_87 = arith.constant dense<0.000000e+00> : vector<8x128xf32>
    %289 = tpu.matmul %261, %25, %cst_87 {dimension_numbers = #tpu.dot_dimension_numbers<[1], [0], [0], [1], [0, 0, 1, 1], [], []>} : vector<8x32xf32>, vector<32x128xf32>, vector<8x128xf32> -> vector<8x128xf32>
    %290 = arith.addf %288, %289 : vector<8x128xf32>
    %291 = vector.broadcast %27 : vector<1x128xf32> to vector<8x128xf32>
    %292 = arith.addf %290, %291 : vector<8x128xf32>
    %293 = vector.extract_strided_slice %292 {offsets = [0, 0], sizes = [8, 96], strides = [1, 1]} : vector<8x128xf32> to vector<8x96xf32>
    %294 = arith.negf %293 : vector<8x96xf32>
    %295 = math.exp %294 : vector<8x96xf32>
    %cst_88 = arith.constant 1.000000e+00 : f32
    %296 = vector.broadcast %cst_88 : f32 to vector<8x96xf32>
    %297 = arith.addf %296, %295 : vector<8x96xf32>
    %298 = arith.divf %296, %297 : vector<8x96xf32>
    %299 = vector.extract_strided_slice %298 {offsets = [0, 0], sizes = [8, 32], strides = [1, 1]} : vector<8x96xf32> to vector<8x32xf32>
    %300 = vector.extract_strided_slice %298 {offsets = [0, 32], sizes = [8, 32], strides = [1, 1]} : vector<8x96xf32> to vector<8x32xf32>
    %301 = vector.extract_strided_slice %298 {offsets = [0, 64], sizes = [8, 32], strides = [1, 1]} : vector<8x96xf32> to vector<8x32xf32>
    %302 = vector.extract_strided_slice %292 {offsets = [0, 96], sizes = [8, 32], strides = [1, 1]} : vector<8x128xf32> to vector<8x32xf32>
    %303 = math.tanh %302 : vector<8x32xf32>
    %304 = arith.mulf %300, %259 : vector<8x32xf32>
    %305 = arith.mulf %299, %303 : vector<8x32xf32>
    %306 = arith.addf %304, %305 : vector<8x32xf32>
    %307 = math.tanh %306 : vector<8x32xf32>
    %308 = arith.mulf %301, %307 : vector<8x32xf32>
    %309 = vector.broadcast %28 : vector<1x32xf32> to vector<8x32xf32>
    %310 = arith.mulf %308, %309 : vector<8x32xf32>
    %cst_89 = arith.constant dense<0.000000e+00> : vector<8xf32>
    %311 = vector.multi_reduction <add>, %310, %cst_89 [1] : vector<8x32xf32> to vector<8xf32>
    %312 = vector.shape_cast %311 : vector<8xf32> to vector<8x1xf32>
    %313 = vector.broadcast %29 : vector<1x1xf32> to vector<8x1xf32>
    %314 = arith.addf %312, %313 : vector<8x1xf32>
    %c40_90 = arith.constant 40 : index
    %c0_91 = arith.constant 0 : index
    %315 = vector.load %arg10[%c40_90, %c0_91] : memref<64x1xf32, #tpu.memory_space<vmem>>, vector<8x1xf32>
    tpu.vector_store %arg10[%c40_90, %c0_91], %314 {strides = array<i32>} : memref<64x1xf32, #tpu.memory_space<vmem>>, vector<8x1xf32>,
    %c48 = arith.constant 48 : index
    %c0_92 = arith.constant 0 : index
    %316 = vector.load %arg11[%c48, %c0_92] : memref<64x128xf32, #tpu.memory_space<vmem>>, vector<8x128xf32>
    %cst_93 = arith.constant dense<0.000000e+00> : vector<8x128xf32>
    %317 = tpu.matmul %287, %23, %cst_93 {dimension_numbers = #tpu.dot_dimension_numbers<[1], [0], [0], [1], [0, 0, 1, 1], [], []>} : vector<8x32xf32>, vector<32x128xf32>, vector<8x128xf32> -> vector<8x128xf32>
    %318 = arith.addf %316, %317 : vector<8x128xf32>
    %319 = vector.extract_strided_slice %318 {offsets = [0, 0], sizes = [8, 96], strides = [1, 1]} : vector<8x128xf32> to vector<8x96xf32>
    %320 = arith.negf %319 : vector<8x96xf32>
    %321 = math.exp %320 : vector<8x96xf32>
    %cst_94 = arith.constant 1.000000e+00 : f32
    %322 = vector.broadcast %cst_94 : f32 to vector<8x96xf32>
    %323 = arith.addf %322, %321 : vector<8x96xf32>
    %324 = arith.divf %322, %323 : vector<8x96xf32>
    %325 = vector.extract_strided_slice %324 {offsets = [0, 0], sizes = [8, 32], strides = [1, 1]} : vector<8x96xf32> to vector<8x32xf32>
    %326 = vector.extract_strided_slice %324 {offsets = [0, 32], sizes = [8, 32], strides = [1, 1]} : vector<8x96xf32> to vector<8x32xf32>
    %327 = vector.extract_strided_slice %324 {offsets = [0, 64], sizes = [8, 32], strides = [1, 1]} : vector<8x96xf32> to vector<8x32xf32>
    %328 = vector.extract_strided_slice %318 {offsets = [0, 96], sizes = [8, 32], strides = [1, 1]} : vector<8x128xf32> to vector<8x32xf32>
    %329 = math.tanh %328 : vector<8x32xf32>
    %330 = arith.mulf %326, %285 : vector<8x32xf32>
    %331 = arith.mulf %325, %329 : vector<8x32xf32>
    %332 = arith.addf %330, %331 : vector<8x32xf32>
    %333 = math.tanh %332 : vector<8x32xf32>
    %334 = arith.mulf %327, %333 : vector<8x32xf32>
    %cst_95 = arith.constant dense<0.000000e+00> : vector<8x128xf32>
    %335 = tpu.matmul %334, %21, %cst_95 {dimension_numbers = #tpu.dot_dimension_numbers<[1], [0], [0], [1], [0, 0, 1, 1], [], []>} : vector<8x32xf32>, vector<32x128xf32>, vector<8x128xf32> -> vector<8x128xf32>
    %cst_96 = arith.constant dense<0.000000e+00> : vector<8x128xf32>
    %336 = tpu.matmul %308, %25, %cst_96 {dimension_numbers = #tpu.dot_dimension_numbers<[1], [0], [0], [1], [0, 0, 1, 1], [], []>} : vector<8x32xf32>, vector<32x128xf32>, vector<8x128xf32> -> vector<8x128xf32>
    %337 = arith.addf %335, %336 : vector<8x128xf32>
    %338 = vector.broadcast %27 : vector<1x128xf32> to vector<8x128xf32>
    %339 = arith.addf %337, %338 : vector<8x128xf32>
    %340 = vector.extract_strided_slice %339 {offsets = [0, 0], sizes = [8, 96], strides = [1, 1]} : vector<8x128xf32> to vector<8x96xf32>
    %341 = arith.negf %340 : vector<8x96xf32>
    %342 = math.exp %341 : vector<8x96xf32>
    %cst_97 = arith.constant 1.000000e+00 : f32
    %343 = vector.broadcast %cst_97 : f32 to vector<8x96xf32>
    %344 = arith.addf %343, %342 : vector<8x96xf32>
    %345 = arith.divf %343, %344 : vector<8x96xf32>
    %346 = vector.extract_strided_slice %345 {offsets = [0, 0], sizes = [8, 32], strides = [1, 1]} : vector<8x96xf32> to vector<8x32xf32>
    %347 = vector.extract_strided_slice %345 {offsets = [0, 32], sizes = [8, 32], strides = [1, 1]} : vector<8x96xf32> to vector<8x32xf32>
    %348 = vector.extract_strided_slice %345 {offsets = [0, 64], sizes = [8, 32], strides = [1, 1]} : vector<8x96xf32> to vector<8x32xf32>
    %349 = vector.extract_strided_slice %339 {offsets = [0, 96], sizes = [8, 32], strides = [1, 1]} : vector<8x128xf32> to vector<8x32xf32>
    %350 = math.tanh %349 : vector<8x32xf32>
    %351 = arith.mulf %347, %306 : vector<8x32xf32>
    %352 = arith.mulf %346, %350 : vector<8x32xf32>
    %353 = arith.addf %351, %352 : vector<8x32xf32>
    %354 = math.tanh %353 : vector<8x32xf32>
    %355 = arith.mulf %348, %354 : vector<8x32xf32>
    %356 = vector.broadcast %28 : vector<1x32xf32> to vector<8x32xf32>
    %357 = arith.mulf %355, %356 : vector<8x32xf32>
    %cst_98 = arith.constant dense<0.000000e+00> : vector<8xf32>
    %358 = vector.multi_reduction <add>, %357, %cst_98 [1] : vector<8x32xf32> to vector<8xf32>
    %359 = vector.shape_cast %358 : vector<8xf32> to vector<8x1xf32>
    %360 = vector.broadcast %29 : vector<1x1xf32> to vector<8x1xf32>
    %361 = arith.addf %359, %360 : vector<8x1xf32>
    %c48_99 = arith.constant 48 : index
    %c0_100 = arith.constant 0 : index
    %362 = vector.load %arg10[%c48_99, %c0_100] : memref<64x1xf32, #tpu.memory_space<vmem>>, vector<8x1xf32>
    tpu.vector_store %arg10[%c48_99, %c0_100], %361 {strides = array<i32>} : memref<64x1xf32, #tpu.memory_space<vmem>>, vector<8x1xf32>,
    %c56 = arith.constant 56 : index
    %c0_101 = arith.constant 0 : index
    %363 = vector.load %arg11[%c56, %c0_101] : memref<64x128xf32, #tpu.memory_space<vmem>>, vector<8x128xf32>
    %cst_102 = arith.constant dense<0.000000e+00> : vector<8x128xf32>
    %364 = tpu.matmul %334, %23, %cst_102 {dimension_numbers = #tpu.dot_dimension_numbers<[1], [0], [0], [1], [0, 0, 1, 1], [], []>} : vector<8x32xf32>, vector<32x128xf32>, vector<8x128xf32> -> vector<8x128xf32>
    %365 = arith.addf %363, %364 : vector<8x128xf32>
    %366 = vector.extract_strided_slice %365 {offsets = [0, 0], sizes = [8, 96], strides = [1, 1]} : vector<8x128xf32> to vector<8x96xf32>
    %367 = arith.negf %366 : vector<8x96xf32>
    %368 = math.exp %367 : vector<8x96xf32>
    %cst_103 = arith.constant 1.000000e+00 : f32
    %369 = vector.broadcast %cst_103 : f32 to vector<8x96xf32>
    %370 = arith.addf %369, %368 : vector<8x96xf32>
    %371 = arith.divf %369, %370 : vector<8x96xf32>
    %372 = vector.extract_strided_slice %371 {offsets = [0, 0], sizes = [8, 32], strides = [1, 1]} : vector<8x96xf32> to vector<8x32xf32>
    %373 = vector.extract_strided_slice %371 {offsets = [0, 32], sizes = [8, 32], strides = [1, 1]} : vector<8x96xf32> to vector<8x32xf32>
    %374 = vector.extract_strided_slice %371 {offsets = [0, 64], sizes = [8, 32], strides = [1, 1]} : vector<8x96xf32> to vector<8x32xf32>
    %375 = vector.extract_strided_slice %365 {offsets = [0, 96], sizes = [8, 32], strides = [1, 1]} : vector<8x128xf32> to vector<8x32xf32>
    %376 = math.tanh %375 : vector<8x32xf32>
    %377 = arith.mulf %373, %332 : vector<8x32xf32>
    %378 = arith.mulf %372, %376 : vector<8x32xf32>
    %379 = arith.addf %377, %378 : vector<8x32xf32>
    %380 = math.tanh %379 : vector<8x32xf32>
    %381 = arith.mulf %374, %380 : vector<8x32xf32>
    %cst_104 = arith.constant dense<0.000000e+00> : vector<8x128xf32>
    %382 = tpu.matmul %381, %21, %cst_104 {dimension_numbers = #tpu.dot_dimension_numbers<[1], [0], [0], [1], [0, 0, 1, 1], [], []>} : vector<8x32xf32>, vector<32x128xf32>, vector<8x128xf32> -> vector<8x128xf32>
    %cst_105 = arith.constant dense<0.000000e+00> : vector<8x128xf32>
    %383 = tpu.matmul %355, %25, %cst_105 {dimension_numbers = #tpu.dot_dimension_numbers<[1], [0], [0], [1], [0, 0, 1, 1], [], []>} : vector<8x32xf32>, vector<32x128xf32>, vector<8x128xf32> -> vector<8x128xf32>
    %384 = arith.addf %382, %383 : vector<8x128xf32>
    %385 = vector.broadcast %27 : vector<1x128xf32> to vector<8x128xf32>
    %386 = arith.addf %384, %385 : vector<8x128xf32>
    %387 = vector.extract_strided_slice %386 {offsets = [0, 0], sizes = [8, 96], strides = [1, 1]} : vector<8x128xf32> to vector<8x96xf32>
    %388 = arith.negf %387 : vector<8x96xf32>
    %389 = math.exp %388 : vector<8x96xf32>
    %cst_106 = arith.constant 1.000000e+00 : f32
    %390 = vector.broadcast %cst_106 : f32 to vector<8x96xf32>
    %391 = arith.addf %390, %389 : vector<8x96xf32>
    %392 = arith.divf %390, %391 : vector<8x96xf32>
    %393 = vector.extract_strided_slice %392 {offsets = [0, 0], sizes = [8, 32], strides = [1, 1]} : vector<8x96xf32> to vector<8x32xf32>
    %394 = vector.extract_strided_slice %392 {offsets = [0, 32], sizes = [8, 32], strides = [1, 1]} : vector<8x96xf32> to vector<8x32xf32>
    %395 = vector.extract_strided_slice %392 {offsets = [0, 64], sizes = [8, 32], strides = [1, 1]} : vector<8x96xf32> to vector<8x32xf32>
    %396 = vector.extract_strided_slice %386 {offsets = [0, 96], sizes = [8, 32], strides = [1, 1]} : vector<8x128xf32> to vector<8x32xf32>
    %397 = math.tanh %396 : vector<8x32xf32>
    %398 = arith.mulf %394, %353 : vector<8x32xf32>
    %399 = arith.mulf %393, %397 : vector<8x32xf32>
    %400 = arith.addf %398, %399 : vector<8x32xf32>
    %401 = math.tanh %400 : vector<8x32xf32>
    %402 = arith.mulf %395, %401 : vector<8x32xf32>
    %403 = vector.broadcast %28 : vector<1x32xf32> to vector<8x32xf32>
    %404 = arith.mulf %402, %403 : vector<8x32xf32>
    %cst_107 = arith.constant dense<0.000000e+00> : vector<8xf32>
    %405 = vector.multi_reduction <add>, %404, %cst_107 [1] : vector<8x32xf32> to vector<8xf32>
    %406 = vector.shape_cast %405 : vector<8xf32> to vector<8x1xf32>
    %407 = vector.broadcast %29 : vector<1x1xf32> to vector<8x1xf32>
    %408 = arith.addf %406, %407 : vector<8x1xf32>
    %c56_108 = arith.constant 56 : index
    %c0_109 = arith.constant 0 : index
    %409 = vector.load %arg10[%c56_108, %c0_109] : memref<64x1xf32, #tpu.memory_space<vmem>>, vector<8x1xf32>
    tpu.vector_store %arg10[%c56_108, %c0_109], %408 {strides = array<i32>} : memref<64x1xf32, #tpu.memory_space<vmem>>, vector<8x1xf32>,
    return
  }
}

</mosaic_0001>

<llo_original>
// kernel: tpu_custom_call.1
$region0: #{tpu_custom_call.1}
  #allocation0 [shape = 'u32[]', space=smem, size = 0x4, offset = 0x4, fixed_abs, tag = 'smem constant byte address 0x4 - core index']
  #allocation1 [shape = 'u32[144,128]{1,0:T(1,128)}', space=vmem, size = 0x12000, scoped, tag = 'internal scratch']
  #allocation2 [shape = 'f32[64,128]{1,0:T(8,128)}', space=vmem, size = 0x8000, scoped, tag = 'scratch operand']
  #allocation3 [shape = 'f32[1,1]{1,0:T(1,128)S(1)}', space=vmem, size = 0x200, scoped, tag = 'scoped memory for tpu_custom_call.1']
  %s0 = inlined_call_operand.vmem [shape: f32[64,20], index: 0, kind: input, shape index: {}]
  %s1 = inlined_call_operand.vmem [shape: f32[64,1], index: 1, kind: input, shape index: {}]
  %s2 = inlined_call_operand.vmem [shape: f32[20,32], index: 2, kind: input, shape index: {}]
  %s3 = inlined_call_operand.vmem [shape: f32[1,32], index: 3, kind: input, shape index: {}]
  %s4 = inlined_call_operand.vmem [shape: f32[1,32], index: 4, kind: input, shape index: {}]
  %s5 = inlined_call_operand.vmem [shape: f32[2,32,128], index: 5, kind: input, shape index: {}]
  %s6 = inlined_call_operand.vmem [shape: f32[2,32,128], index: 6, kind: input, shape index: {}]
  %s7 = inlined_call_operand.vmem [shape: f32[2,1,128], index: 7, kind: input, shape index: {}]
  %s8 = inlined_call_operand.vmem [shape: f32[1,32], index: 8, kind: input, shape index: {}]
  %s9 = inlined_call_operand.<no memory space> [shape: f32[1,1], index: 9, kind: input, shape index: {}]
  %s10 = inlined_call_operand.vmem [shape: f32[64,1], index: 10, kind: output, shape index: {}]
  %s11 = sld [smem:[#allocation0]]
  $region50: #{tpu_custom_call.1} parent=0
    _
  %s13 = ssub.s32 1, %s11
  %s14 = scalar_select 0, %s13, %s11
  %v15 = vstv %s9
  %16 = vst [vmem:[#allocation3] sm:$0x1] %v15
  // Predicated region
  $region2: #{tpu_custom_call.1} parent=0 // pred_check
    _
  $region3: #{tpu_custom_call.1} parent=0 // pred_check_branch
    %18 = sbr.rel (0) target = $region5
  $region4: #{tpu_custom_call.1} parent=0 // pred_region
    _
  $region5: #{tpu_custom_call.1} parent=0 // pred_fallthru
    _
  // Predicated region
  $region6: #{tpu_custom_call.1} parent=0 // pred_check
    _
  $region7: #{tpu_custom_call.1} parent=0 // pred_check_branch
    %20 = sbr.rel (0) target = $region9
  $region8: #{tpu_custom_call.1} parent=0 // pred_region
    _
  $region9: #{tpu_custom_call.1} parent=0 // pred_fallthru
    _
  // Predicated region
  $region10: #{tpu_custom_call.1} parent=0 // pred_check
    _
  $region11: #{tpu_custom_call.1} parent=0 // pred_check_branch
    %22 = sbr.rel (0) target = $region13
  $region12: #{tpu_custom_call.1} parent=0 // pred_region
    _
  $region13: #{tpu_custom_call.1} parent=0 // pred_fallthru
    _
  // Predicated region
  $region14: #{tpu_custom_call.1} parent=0 // pred_check
    _
  $region15: #{tpu_custom_call.1} parent=0 // pred_check_branch
    %24 = sbr.rel (0) target = $region17
  $region16: #{tpu_custom_call.1} parent=0 // pred_region
    _
  $region17: #{tpu_custom_call.1} parent=0 // pred_fallthru
    _
  // Predicated region
  $region18: #{tpu_custom_call.1} parent=0 // pred_check
    _
  $region19: #{tpu_custom_call.1} parent=0 // pred_check_branch
    %26 = sbr.rel (0) target = $region21
  $region20: #{tpu_custom_call.1} parent=0 // pred_region
    _
  $region21: #{tpu_custom_call.1} parent=0 // pred_fallthru
    _
  // Predicated region
  $region22: #{tpu_custom_call.1} parent=0 // pred_check
    _
  $region23: #{tpu_custom_call.1} parent=0 // pred_check_branch
    %28 = sbr.rel (0) target = $region25
  $region24: #{tpu_custom_call.1} parent=0 // pred_region
    _
  $region25: #{tpu_custom_call.1} parent=0 // pred_fallthru
    _
  // Predicated region
  $region26: #{tpu_custom_call.1} parent=0 // pred_check
    _
  $region27: #{tpu_custom_call.1} parent=0 // pred_check_branch
    %30 = sbr.rel (0) target = $region29
  $region28: #{tpu_custom_call.1} parent=0 // pred_region
    _
  $region29: #{tpu_custom_call.1} parent=0 // pred_fallthru
    _
  // Predicated region
  $region30: #{tpu_custom_call.1} parent=0 // pred_check
    _
  $region31: #{tpu_custom_call.1} parent=0 // pred_check_branch
    %32 = sbr.rel (0) target = $region33
  $region32: #{tpu_custom_call.1} parent=0 // pred_region
    _
  $region33: #{tpu_custom_call.1} parent=0 // pred_fallthru
    _
  // Predicated region
  $region34: #{tpu_custom_call.1} parent=0 // pred_check
    _
  $region35: #{tpu_custom_call.1} parent=0 // pred_check_branch
    %34 = sbr.rel (0) target = $region37
  $region36: #{tpu_custom_call.1} parent=0 // pred_region
    _
  $region37: #{tpu_custom_call.1} parent=0 // pred_fallthru
    _
  // Predicated region
  $region38: #{tpu_custom_call.1} parent=0 // pred_check
    _
  $region39: #{tpu_custom_call.1} parent=0 // pred_check_branch
    %36 = sbr.rel (0) target = $region41
  $region40: #{tpu_custom_call.1} parent=0 // pred_region
    _
  $region41: #{tpu_custom_call.1} parent=0 // pred_fallthru
    _
  %v37 = vld [vmem:[%s0] sm:$0xff]
  %v38 = vld [vmem:[%s0 + $0x8] sm:$0xff]
  %v39 = vld [vmem:[%s0 + $0x10] sm:$0xff]
  %v40 = vld [vmem:[%s0 + $0x18] sm:$0xff]
  %v41 = vld [vmem:[%s0 + $0x20] sm:$0xff]
  %v42 = vld [vmem:[%s0 + $0x28] sm:$0xff]
  %v43 = vld [vmem:[%s0 + $0x30] sm:$0xff]
  %v44 = vld [vmem:[%s0 + $0x38] sm:$0xff]
  %v45 = vld [vmem:[%s2] sm:$0xff]
  %v46 = vld [vmem:[%s2 + $0x8] sm:$0xff]
  %v47 = vld [vmem:[%s2 + $0x10] sm:$0xf]
  %v48 = vld [vmem:[%s1] sm:$0xff]
  %v49 = vld [vmem:[%s1 + $0x8] sm:$0xff]
  %v50 = vld [vmem:[%s1 + $0x10] sm:$0xff]
  %v51 = vld [vmem:[%s1 + $0x18] sm:$0xff]
  %v52 = vld [vmem:[%s1 + $0x20] sm:$0xff]
  %v53 = vld [vmem:[%s1 + $0x28] sm:$0xff]
  %v54 = vld [vmem:[%s1 + $0x30] sm:$0xff]
  %v55 = vld [vmem:[%s1 + $0x38] sm:$0xff]
  %v56 = vld [vmem:[%s3] sm:$0x1]
  %58 = vset.pattern.permute.xlu0 0
  %59 = vperm.xlu0 %58, %v48
  %v60 = vpop.permute.xlu0 %59
  %63 = vset.pattern.permute.xlu0 0
  %64 = vperm.xlu0 %63, %v49
  %v65 = vpop.permute.xlu0 %64
  %68 = vset.pattern.permute.xlu0 0
  %69 = vperm.xlu0 %68, %v50
  %v70 = vpop.permute.xlu0 %69
  %73 = vset.pattern.permute.xlu0 0
  %74 = vperm.xlu0 %73, %v51
  %v75 = vpop.permute.xlu0 %74
  %78 = vset.pattern.permute.xlu0 0
  %79 = vperm.xlu0 %78, %v52
  %v80 = vpop.permute.xlu0 %79
  %83 = vset.pattern.permute.xlu0 0
  %84 = vperm.xlu0 %83, %v53
  %v85 = vpop.permute.xlu0 %84
  %88 = vset.pattern.permute.xlu0 0
  %89 = vperm.xlu0 %88, %v54
  %v90 = vpop.permute.xlu0 %89
  %93 = vset.pattern.permute.xlu0 0
  %94 = vperm.xlu0 %93, %v55
  %v95 = vpop.permute.xlu0 %94
  %v98 = vlaneseq
  %v99 = vshrl.u32 %v98, 7
  %v100 = vsub.s32 0, %v99
  %v101 = vrot.slane %v56, %v100
  %v103 = vmul.f32 %v60, %v101
  %v104 = vmul.f32 %v65, %v101
  %v105 = vmul.f32 %v70, %v101
  %v106 = vmul.f32 %v75, %v101
  %v107 = vmul.f32 %v80, %v101
  %v108 = vmul.f32 %v85, %v101
  %v109 = vmul.f32 %v90, %v101
  %v110 = vmul.f32 %v95, %v101
  %vm111 = vcmask 162816
  %v113 = vsel %vm111, %v37, 0
  %v116 = vsel %vm111, %v38, 0
  %v119 = vsel %vm111, %v39, 0
  %v122 = vsel %vm111, %v40, 0
  %v125 = vsel %vm111, %v41, 0
  %v128 = vsel %vm111, %v42, 0
  %v131 = vsel %vm111, %v43, 0
  %v134 = vsel %vm111, %v44, 0
  %vm136 = vcmask 1043456
  %v138 = vsel %vm136, %v47, 0
  %140 = vmatprep.subr.mxu0 0.0
  %141 = vmatpush1.msra.mxu0 %v45
  %142 = vmatprep.subr.mxu0 0.0
  %143 = vmatpush1.msra.mxu0 %v46
  %144 = vmatprep.subr.mxu0 0.0
  %145 = vmatpush1.msra.mxu0 %v138
  %146 = vmatprep.subr.mxu0 0.0
  %147 = vmatpush1.msra.mxu0 0.0
  %148 = vmatprep.subr.mxu0 0.0
  %149 = vmatpush1.msra.mxu0 0.0
  %150 = vmatprep.subr.mxu0 0.0
  %151 = vmatpush1.msra.mxu0 0.0
  %152 = vmatprep.subr.mxu0 0.0
  %153 = vmatpush1.msra.mxu0 0.0
  %154 = vmatprep.subr.mxu0 0.0
  %155 = vmatpush1.msra.mxu0 0.0
  %156 = vmatprep.subr.mxu0 0.0
  %157 = vmatpush1.msra.mxu0 0.0
  %158 = vmatprep.subr.mxu0 0.0
  %159 = vmatpush1.msra.mxu0 0.0
  %160 = vmatprep.subr.mxu0 0.0
  %161 = vmatpush1.msra.mxu0 0.0
  %162 = vmatprep.subr.mxu0 0.0
  %163 = vmatpush1.msra.mxu0 0.0
  %164 = vmatprep.subr.mxu0 0.0
  %165 = vmatpush1.msra.mxu0 0.0
  %166 = vmatprep.subr.mxu0 0.0
  %167 = vmatpush1.msra.mxu0 0.0
  %168 = vmatprep.subr.mxu0 0.0
  %169 = vmatpush1.msra.mxu0 0.0
  %170 = vmatprep.subr.mxu0 0.0
  %171 = vmatpush1.msra.mxu0 0.0
  %172 = vmatprep.subr.mxu0 0.0
  %173 = vmatpush1.msra.mxu0 0.0
  %174 = vmatprep.subr.mxu0 0.0
  %175 = vmatpush1.msra.mxu0 0.0
  %176 = vmatprep.subr.mxu0 0.0
  %177 = vmatpush1.msra.mxu0 0.0
  %178 = vmatprep.subr.mxu0 0.0
  %179 = vmatpush1.msra.mxu0 0.0
  %180 = vmatprep.subr.mxu0 0.0
  %181 = vmatpush1.msra.mxu0 0.0
  %182 = vmatprep.subr.mxu0 0.0
  %183 = vmatpush1.msra.mxu0 0.0
  %184 = vmatprep.subr.mxu0 0.0
  %185 = vmatpush1.msra.mxu0 0.0
  %186 = vmatprep.subr.mxu0 0.0
  %187 = vmatpush1.msra.mxu0 0.0
  %188 = vmatprep.subr.mxu0 0.0
  %189 = vmatpush1.msra.mxu0 0.0
  %190 = vmatprep.subr.mxu0 0.0
  %191 = vmatpush1.msra.mxu0 0.0
  %192 = vmatprep.subr.mxu0 0.0
  %193 = vmatpush1.msra.mxu0 0.0
  %194 = vmatprep.subr.mxu0 0.0
  %195 = vmatpush1.msra.mxu0 0.0
  %196 = vmatprep.subr.mxu0 0.0
  %197 = vmatpush1.msra.mxu0 0.0
  %198 = vmatprep.subr.mxu0 0.0
  %199 = vmatpush1.msra.mxu0 0.0
  %200 = vmatprep.subr.mxu0 0.0
  %201 = vmatpush1.msra.mxu0 0.0
  %202 = vmatprep.subr.mxu0 0.0
  %203 = vmatpush1.msra.mxu0 0.0
  %204 = vmatprep.mubr.f32.mxu0 0.0
  %205 = vmatmul.mubr.f32.gmra.mrb[0].mxu0 %v113
  %v206 = vpop.f32.mrb[0].mxu0
  %v207 = vadd.f32 %v103, %v206
  %v208 = vpop.f32.mrb[0].mxu0
  %209 = vmatprep.mubr.f32.mxu0 0.0
  %210 = vmatmul.mubr.f32.gmra.mrb[0].mxu0 %v116
  %v211 = vpop.f32.mrb[0].mxu0
  %v212 = vadd.f32 %v104, %v211
  %v213 = vpop.f32.mrb[0].mxu0
  %214 = vmatprep.mubr.f32.mxu0 0.0
  %215 = vmatmul.mubr.f32.gmra.mrb[0].mxu0 %v119
  %v216 = vpop.f32.mrb[0].mxu0
  %v217 = vadd.f32 %v105, %v216
  %v218 = vpop.f32.mrb[0].mxu0
  %219 = vmatprep.mubr.f32.mxu0 0.0
  %220 = vmatmul.mubr.f32.gmra.mrb[0].mxu0 %v122
  %v221 = vpop.f32.mrb[0].mxu0
  %v222 = vadd.f32 %v106, %v221
  %v223 = vpop.f32.mrb[0].mxu0
  %224 = vmatprep.mubr.f32.mxu0 0.0
  %225 = vmatmul.mubr.f32.gmra.mrb[0].mxu0 %v125
  %v226 = vpop.f32.mrb[0].mxu0
  %v227 = vadd.f32 %v107, %v226
  %v228 = vpop.f32.mrb[0].mxu0
  %229 = vmatprep.mubr.f32.mxu0 0.0
  %230 = vmatmul.mubr.f32.gmra.mrb[0].mxu0 %v128
  %v231 = vpop.f32.mrb[0].mxu0
  %v232 = vadd.f32 %v108, %v231
  %v233 = vpop.f32.mrb[0].mxu0
  %234 = vmatprep.mubr.f32.mxu0 0.0
  %235 = vmatmul.mubr.f32.gmra.mrb[0].mxu0 %v131
  %v236 = vpop.f32.mrb[0].mxu0
  %v237 = vadd.f32 %v109, %v236
  %v238 = vpop.f32.mrb[0].mxu0
  %239 = vmatprep.mubr.f32.mxu0 0.0
  %240 = vmatmul.mubr.f32.gmra.mrb[0].mxu0 %v134
  %v241 = vpop.f32.mrb[0].mxu0
  %v242 = vadd.f32 %v110, %v241
  %v243 = vpop.f32.mrb[0].mxu0
  %244 = vdwg.mxu0
  %v245 = vld [vmem:[%s4] sm:$0x1]
  %v247 = vlaneseq
  %v248 = vshrl.u32 %v247, 7
  %v249 = vsub.s32 0, %v248
  %v250 = vrot.slane %v245, %v249
  %v252 = vadd.f32 %v207, %v250
  %v253 = vadd.f32 %v212, %v250
  %v254 = vadd.f32 %v217, %v250
  %v255 = vadd.f32 %v222, %v250
  %v256 = vadd.f32 %v227, %v250
  %v257 = vadd.f32 %v232, %v250
  %v258 = vadd.f32 %v237, %v250
  %v259 = vadd.f32 %v242, %v250
  %v260 = vld [vmem:[%s5] sm:$0xff]
  %v261 = vld [vmem:[%s5 + $0x8] sm:$0xff]
  %v262 = vld [vmem:[%s5 + $0x10] sm:$0xff]
  %v263 = vld [vmem:[%s5 + $0x18] sm:$0xff]
  %v264 = vld [vmem:[%s7] sm:$0x1]
  %v266 = vlaneseq
  %v267 = vshrl.u32 %v266, 7
  %v268 = vsub.s32 0, %v267
  %v269 = vrot.slane %v264, %v268
  %vm271 = vcmask 261120
  %v273 = vsel %vm271, %v252, 0
  %v276 = vsel %vm271, %v253, 0
  %v279 = vsel %vm271, %v254, 0
  %v282 = vsel %vm271, %v255, 0
  %v285 = vsel %vm271, %v256, 0
  %v288 = vsel %vm271, %v257, 0
  %v291 = vsel %vm271, %v258, 0
  %v294 = vsel %vm271, %v259, 0
  %296 = vmatprep.subr.mxu0 0.0
  %297 = vmatpush1.msra.mxu0 %v260
  %298 = vmatprep.subr.mxu0 0.0
  %299 = vmatpush1.msra.mxu0 %v261
  %300 = vmatprep.subr.mxu0 0.0
  %301 = vmatpush1.msra.mxu0 %v262
  %302 = vmatprep.subr.mxu0 0.0
  %303 = vmatpush1.msra.mxu0 %v263
  %304 = vmatprep.subr.mxu0 0.0
  %305 = vmatpush1.msra.mxu0 0.0
  %306 = vmatprep.subr.mxu0 0.0
  %307 = vmatpush1.msra.mxu0 0.0
  %308 = vmatprep.subr.mxu0 0.0
  %309 = vmatpush1.msra.mxu0 0.0
  %310 = vmatprep.subr.mxu0 0.0
  %311 = vmatpush1.msra.mxu0 0.0
  %312 = vmatprep.subr.mxu0 0.0
  %313 = vmatpush1.msra.mxu0 0.0
  %314 = vmatprep.subr.mxu0 0.0
  %315 = vmatpush1.msra.mxu0 0.0
  %316 = vmatprep.subr.mxu0 0.0
  %317 = vmatpush1.msra.mxu0 0.0
  %318 = vmatprep.subr.mxu0 0.0
  %319 = vmatpush1.msra.mxu0 0.0
  %320 = vmatprep.subr.mxu0 0.0
  %321 = vmatpush1.msra.mxu0 0.0
  %322 = vmatprep.subr.mxu0 0.0
  %323 = vmatpush1.msra.mxu0 0.0
  %324 = vmatprep.subr.mxu0 0.0
  %325 = vmatpush1.msra.mxu0 0.0
  %326 = vmatprep.subr.mxu0 0.0
  %327 = vmatpush1.msra.mxu0 0.0
  %328 = vmatprep.subr.mxu0 0.0
  %329 = vmatpush1.msra.mxu0 0.0
  %330 = vmatprep.subr.mxu0 0.0
  %331 = vmatpush1.msra.mxu0 0.0
  %332 = vmatprep.subr.mxu0 0.0
  %333 = vmatpush1.msra.mxu0 0.0
  %334 = vmatprep.subr.mxu0 0.0
  %335 = vmatpush1.msra.mxu0 0.0
  %336 = vmatprep.subr.mxu0 0.0
  %337 = vmatpush1.msra.mxu0 0.0
  %338 = vmatprep.subr.mxu0 0.0
  %339 = vmatpush1.msra.mxu0 0.0
  %340 = vmatprep.subr.mxu0 0.0
  %341 = vmatpush1.msra.mxu0 0.0
  %342 = vmatprep.subr.mxu0 0.0
  %343 = vmatpush1.msra.mxu0 0.0
  %344 = vmatprep.subr.mxu0 0.0
  %345 = vmatpush1.msra.mxu0 0.0
  %346 = vmatprep.subr.mxu0 0.0
  %347 = vmatpush1.msra.mxu0 0.0
  %348 = vmatprep.subr.mxu0 0.0
  %349 = vmatpush1.msra.mxu0 0.0
  %350 = vmatprep.subr.mxu0 0.0
  %351 = vmatpush1.msra.mxu0 0.0
  %352 = vmatprep.subr.mxu0 0.0
  %353 = vmatpush1.msra.mxu0 0.0
  %354 = vmatprep.subr.mxu0 0.0
  %355 = vmatpush1.msra.mxu0 0.0
  %356 = vmatprep.subr.mxu0 0.0
  %357 = vmatpush1.msra.mxu0 0.0
  %358 = vmatprep.subr.mxu0 0.0
  %359 = vmatpush1.msra.mxu0 0.0
  %360 = vmatprep.mubr.f32.mxu0 0.0
  %361 = vmatmul.mubr.f32.gmra.mrb[0].mxu0 %v273
  %v362 = vpop.f32.mrb[0].mxu0
  %v363 = vadd.f32 %v269, %v362
  %v364 = vpop.f32.mrb[0].mxu0
  %365 = vmatprep.mubr.f32.mxu0 0.0
  %366 = vmatmul.mubr.f32.gmra.mrb[0].mxu0 %v276
  %v367 = vpop.f32.mrb[0].mxu0
  %v368 = vadd.f32 %v269, %v367
  %v369 = vpop.f32.mrb[0].mxu0
  %370 = vmatprep.mubr.f32.mxu0 0.0
  %371 = vmatmul.mubr.f32.gmra.mrb[0].mxu0 %v279
  %v372 = vpop.f32.mrb[0].mxu0
  %v373 = vadd.f32 %v269, %v372
  %v374 = vpop.f32.mrb[0].mxu0
  %375 = vmatprep.mubr.f32.mxu0 0.0
  %376 = vmatmul.mubr.f32.gmra.mrb[0].mxu0 %v282
  %v377 = vpop.f32.mrb[0].mxu0
  %v378 = vadd.f32 %v269, %v377
  %v379 = vpop.f32.mrb[0].mxu0
  %380 = vmatprep.mubr.f32.mxu0 0.0
  %381 = vmatmul.mubr.f32.gmra.mrb[0].mxu0 %v285
  %v382 = vpop.f32.mrb[0].mxu0
  %v383 = vadd.f32 %v269, %v382
  %v384 = vpop.f32.mrb[0].mxu0
  %385 = vmatprep.mubr.f32.mxu0 0.0
  %386 = vmatmul.mubr.f32.gmra.mrb[0].mxu0 %v288
  %v387 = vpop.f32.mrb[0].mxu0
  %v388 = vadd.f32 %v269, %v387
  %v389 = vpop.f32.mrb[0].mxu0
  %390 = vmatprep.mubr.f32.mxu0 0.0
  %391 = vmatmul.mubr.f32.gmra.mrb[0].mxu0 %v291
  %v392 = vpop.f32.mrb[0].mxu0
  %v393 = vadd.f32 %v269, %v392
  %v394 = vpop.f32.mrb[0].mxu0
  %395 = vmatprep.mubr.f32.mxu0 0.0
  %396 = vmatmul.mubr.f32.gmra.mrb[0].mxu0 %v294
  %v397 = vpop.f32.mrb[0].mxu0
  %v398 = vadd.f32 %v269, %v397
  %v399 = vpop.f32.mrb[0].mxu0
  %400 = vdwg.mxu0
  %401 = vst [vmem:[#allocation2] sm:$0xff] %v363
  %402 = vst [vmem:[#allocation2 + $0x8] sm:$0xff] %v368
  %403 = vst [vmem:[#allocation2 + $0x10] sm:$0xff] %v373
  %404 = vst [vmem:[#allocation2 + $0x18] sm:$0xff] %v378
  %405 = vst [vmem:[#allocation2 + $0x20] sm:$0xff] %v383
  %406 = vst [vmem:[#allocation2 + $0x28] sm:$0xff] %v388
  %407 = vst [vmem:[#allocation2 + $0x30] sm:$0xff] %v393
  %408 = vst [vmem:[#allocation2 + $0x38] sm:$0xff] %v398
  %s409 = scalar_lea.vmem %s5, 32
  %v410 = vld [vmem:[%s409] sm:$0xff]
  %v411 = vld [vmem:[%s409 + $0x8] sm:$0xff]
  %v412 = vld [vmem:[%s409 + $0x10] sm:$0xff]
  %v413 = vld [vmem:[%s409 + $0x18] sm:$0xff]
  %v414 = vld [vmem:[%s6] sm:$0xff]
  %v415 = vld [vmem:[%s6 + $0x8] sm:$0xff]
  %v416 = vld [vmem:[%s6 + $0x10] sm:$0xff]
  %v417 = vld [vmem:[%s6 + $0x18] sm:$0xff]
  %s418 = scalar_lea.vmem %s6, 32
  %v419 = vld [vmem:[%s418] sm:$0xff]
  %v420 = vld [vmem:[%s418 + $0x8] sm:$0xff]
  %v421 = vld [vmem:[%s418 + $0x10] sm:$0xff]
  %v422 = vld [vmem:[%s418 + $0x18] sm:$0xff]
  %s423 = scalar_lea.vmem %s7, 1
  %v424 = vld [vmem:[%s423] sm:$0x1]
  %v425 = vld [vmem:[%s8] sm:$0x1]
  %v426 = vld [vmem:[#allocation3] sm:$0x1]
  %v427 = vld [vmem:[#allocation2] sm:$0xff]
  %v429 = vsel %vm271, 0.0, 0
  %431 = vmatprep.subr.mxu0 0.0
  %432 = vmatpush1.msra.mxu0 %v414
  %433 = vmatprep.subr.mxu0 0.0
  %434 = vmatpush1.msra.mxu0 %v415
  %435 = vmatprep.subr.mxu0 0.0
  %436 = vmatpush1.msra.mxu0 %v416
  %437 = vmatprep.subr.mxu0 0.0
  %438 = vmatpush1.msra.mxu0 %v417
  %439 = vmatprep.subr.mxu0 0.0
  %440 = vmatpush1.msra.mxu0 0.0
  %441 = vmatprep.subr.mxu0 0.0
  %442 = vmatpush1.msra.mxu0 0.0
  %443 = vmatprep.subr.mxu0 0.0
  %444 = vmatpush1.msra.mxu0 0.0
  %445 = vmatprep.subr.mxu0 0.0
  %446 = vmatpush1.msra.mxu0 0.0
  %447 = vmatprep.subr.mxu0 0.0
  %448 = vmatpush1.msra.mxu0 0.0
  %449 = vmatprep.subr.mxu0 0.0
  %450 = vmatpush1.msra.mxu0 0.0
  %451 = vmatprep.subr.mxu0 0.0
  %452 = vmatpush1.msra.mxu0 0.0
  %453 = vmatprep.subr.mxu0 0.0
  %454 = vmatpush1.msra.mxu0 0.0
  %455 = vmatprep.subr.mxu0 0.0
  %456 = vmatpush1.msra.mxu0 0.0
  %457 = vmatprep.subr.mxu0 0.0
  %458 = vmatpush1.msra.mxu0 0.0
  %459 = vmatprep.subr.mxu0 0.0
  %460 = vmatpush1.msra.mxu0 0.0
  %461 = vmatprep.subr.mxu0 0.0
  %462 = vmatpush1.msra.mxu0 0.0
  %463 = vmatprep.subr.mxu0 0.0
  %464 = vmatpush1.msra.mxu0 0.0
  %465 = vmatprep.subr.mxu0 0.0
  %466 = vmatpush1.msra.mxu0 0.0
  %467 = vmatprep.subr.mxu0 0.0
  %468 = vmatpush1.msra.mxu0 0.0
  %469 = vmatprep.subr.mxu0 0.0
  %470 = vmatpush1.msra.mxu0 0.0
  %471 = vmatprep.subr.mxu0 0.0
  %472 = vmatpush1.msra.mxu0 0.0
  %473 = vmatprep.subr.mxu0 0.0
  %474 = vmatpush1.msra.mxu0 0.0
  %475 = vmatprep.subr.mxu0 0.0
  %476 = vmatpush1.msra.mxu0 0.0
  %477 = vmatprep.subr.mxu0 0.0
  %478 = vmatpush1.msra.mxu0 0.0
  %479 = vmatprep.subr.mxu0 0.0
  %480 = vmatpush1.msra.mxu0 0.0
  %481 = vmatprep.subr.mxu0 0.0
  %482 = vmatpush1.msra.mxu0 0.0
  %483 = vmatprep.subr.mxu0 0.0
  %484 = vmatpush1.msra.mxu0 0.0
  %485 = vmatprep.subr.mxu0 0.0
  %486 = vmatpush1.msra.mxu0 0.0
  %487 = vmatprep.subr.mxu0 0.0
  %488 = vmatpush1.msra.mxu0 0.0
  %489 = vmatprep.subr.mxu0 0.0
  %490 = vmatpush1.msra.mxu0 0.0
  %491 = vmatprep.subr.mxu0 0.0
  %492 = vmatpush1.msra.mxu0 0.0
  %493 = vmatprep.subr.mxu0 0.0
  %494 = vmatpush1.msra.mxu0 0.0
  %495 = vmatprep.mubr.f32.mxu0 0.0
  %496 = vmatmul.mubr.f32.gmra.mrb[0].mxu0 %v429
  %v497 = vpop.f32.mrb[0].mxu0
  %v498 = vadd.f32 0.0, %v497
  %v499 = vpop.f32.mrb[0].mxu0
  %500 = vdwg.mxu0
  %v501 = vadd.f32 %v427, %v498
  %v502 = vxor.u32 %v501, 2147483648
  %v503 = vmul.f32 %v502, 1.442695
  %v504 = vpow.pop %v503
  %v505 = vadd.f32 %v504, 1.0
  %v506 = vrcp.pop %v505
  %v507 = vmul.f32 1.0, %v506
  %v508 = vtanh.pop %v501
  %v509 = vmul.f32 %v507, 0.0
  %511 = vrot.lane.b32.xlu0 %v508, 32
  %v512 = vpop.permute.xlu0 %511
  %v514 = vmul.f32 %v507, %v512
  %516 = vrot.lane.b32.xlu0 %v514, 32
  %v517 = vpop.permute.xlu0 %516
  %v519 = vadd.f32 %v509, %v517
  %v520 = vtanh.pop %v519
  %522 = vrot.lane.b32.xlu0 %v520, 32
  %v523 = vpop.permute.xlu0 %522
  %v525 = vmul.f32 %v507, %v523
  %526 = vmatprep.subr.mxu0 0.0
  %527 = vmatpush1.msra.mxu0 %v419
  %528 = vmatprep.subr.mxu0 0.0
  %529 = vmatpush1.msra.mxu0 %v420
  %530 = vmatprep.subr.mxu0 0.0
  %531 = vmatpush1.msra.mxu0 %v421
  %532 = vmatprep.subr.mxu0 0.0
  %533 = vmatpush1.msra.mxu0 %v422
  %534 = vmatprep.subr.mxu0 0.0
  %535 = vmatpush1.msra.mxu0 0.0
  %536 = vmatprep.subr.mxu0 0.0
  %537 = vmatpush1.msra.mxu0 0.0
  %538 = vmatprep.subr.mxu0 0.0
  %539 = vmatpush1.msra.mxu0 0.0
  %540 = vmatprep.subr.mxu0 0.0
  %541 = vmatpush1.msra.mxu0 0.0
  %542 = vmatprep.subr.mxu0 0.0
  %543 = vmatpush1.msra.mxu0 0.0
  %544 = vmatprep.subr.mxu0 0.0
  %545 = vmatpush1.msra.mxu0 0.0
  %546 = vmatprep.subr.mxu0 0.0
  %547 = vmatpush1.msra.mxu0 0.0
  %548 = vmatprep.subr.mxu0 0.0
  %549 = vmatpush1.msra.mxu0 0.0
  %550 = vmatprep.subr.mxu0 0.0
  %551 = vmatpush1.msra.mxu0 0.0
  %552 = vmatprep.subr.mxu0 0.0
  %553 = vmatpush1.msra.mxu0 0.0
  %554 = vmatprep.subr.mxu0 0.0
  %555 = vmatpush1.msra.mxu0 0.0
  %556 = vmatprep.subr.mxu0 0.0
  %557 = vmatpush1.msra.mxu0 0.0
  %558 = vmatprep.subr.mxu0 0.0
  %559 = vmatpush1.msra.mxu0 0.0
  %560 = vmatprep.subr.mxu0 0.0
  %561 = vmatpush1.msra.mxu0 0.0
  %562 = vmatprep.subr.mxu0 0.0
  %563 = vmatpush1.msra.mxu0 0.0
  %564 = vmatprep.subr.mxu0 0.0
  %565 = vmatpush1.msra.mxu0 0.0
  %566 = vmatprep.subr.mxu0 0.0
  %567 = vmatpush1.msra.mxu0 0.0
  %568 = vmatprep.subr.mxu0 0.0
  %569 = vmatpush1.msra.mxu0 0.0
  %570 = vmatprep.subr.mxu0 0.0
  %571 = vmatpush1.msra.mxu0 0.0
  %572 = vmatprep.subr.mxu0 0.0
  %573 = vmatpush1.msra.mxu0 0.0
  %574 = vmatprep.subr.mxu0 0.0
  %575 = vmatpush1.msra.mxu0 0.0
  %576 = vmatprep.subr.mxu0 0.0
  %577 = vmatpush1.msra.mxu0 0.0
  %578 = vmatprep.subr.mxu0 0.0
  %579 = vmatpush1.msra.mxu0 0.0
  %580 = vmatprep.subr.mxu0 0.0
  %581 = vmatpush1.msra.mxu0 0.0
  %582 = vmatprep.subr.mxu0 0.0
  %583 = vmatpush1.msra.mxu0 0.0
  %584 = vmatprep.subr.mxu0 0.0
  %585 = vmatpush1.msra.mxu0 0.0
  %586 = vmatprep.subr.mxu0 0.0
  %587 = vmatpush1.msra.mxu0 0.0
  %588 = vmatprep.subr.mxu0 0.0
  %589 = vmatpush1.msra.mxu0 0.0
  %590 = vmatprep.mubr.f32.mxu0 0.0
  %591 = vmatmul.mubr.f32.gmra.mrb[0].mxu0 %v429
  %v592 = vpop.f32.mrb[0].mxu0
  %v593 = vadd.f32 0.0, %v592
  %v594 = vpop.f32.mrb[0].mxu0
  %595 = vdwg.mxu0
  %597 = vrot.lane.b32.xlu0 %v525, 64
  %v598 = vpop.permute.xlu0 %597
  %v599 = vsel %vm271, %v598, 0
  %601 = vmatprep.subr.mxu0 0.0
  %602 = vmatpush1.msra.mxu0 %v410
  %603 = vmatprep.subr.mxu0 0.0
  %604 = vmatpush1.msra.mxu0 %v411
  %605 = vmatprep.subr.mxu0 0.0
  %606 = vmatpush1.msra.mxu0 %v412
  %607 = vmatprep.subr.mxu0 0.0
  %608 = vmatpush1.msra.mxu0 %v413
  %609 = vmatprep.subr.mxu0 0.0
  %610 = vmatpush1.msra.mxu0 0.0
  %611 = vmatprep.subr.mxu0 0.0
  %612 = vmatpush1.msra.mxu0 0.0
  %613 = vmatprep.subr.mxu0 0.0
  %614 = vmatpush1.msra.mxu0 0.0
  %615 = vmatprep.subr.mxu0 0.0
  %616 = vmatpush1.msra.mxu0 0.0
  %617 = vmatprep.subr.mxu0 0.0
  %618 = vmatpush1.msra.mxu0 0.0
  %619 = vmatprep.subr.mxu0 0.0
  %620 = vmatpush1.msra.mxu0 0.0
  %621 = vmatprep.subr.mxu0 0.0
  %622 = vmatpush1.msra.mxu0 0.0
  %623 = vmatprep.subr.mxu0 0.0
  %624 = vmatpush1.msra.mxu0 0.0
  %625 = vmatprep.subr.mxu0 0.0
  %626 = vmatpush1.msra.mxu0 0.0
  %627 = vmatprep.subr.mxu0 0.0
  %628 = vmatpush1.msra.mxu0 0.0
  %629 = vmatprep.subr.mxu0 0.0
  %630 = vmatpush1.msra.mxu0 0.0
  %631 = vmatprep.subr.mxu0 0.0
  %632 = vmatpush1.msra.mxu0 0.0
  %633 = vmatprep.subr.mxu0 0.0
  %634 = vmatpush1.msra.mxu0 0.0
  %635 = vmatprep.subr.mxu0 0.0
  %636 = vmatpush1.msra.mxu0 0.0
  %637 = vmatprep.subr.mxu0 0.0
  %638 = vmatpush1.msra.mxu0 0.0
  %639 = vmatprep.subr.mxu0 0.0
  %640 = vmatpush1.msra.mxu0 0.0
  %641 = vmatprep.subr.mxu0 0.0
  %642 = vmatpush1.msra.mxu0 0.0
  %643 = vmatprep.subr.mxu0 0.0
  %644 = vmatpush1.msra.mxu0 0.0
  %645 = vmatprep.subr.mxu0 0.0
  %646 = vmatpush1.msra.mxu0 0.0
  %647 = vmatprep.subr.mxu0 0.0
  %648 = vmatpush1.msra.mxu0 0.0
  %649 = vmatprep.subr.mxu0 0.0
  %650 = vmatpush1.msra.mxu0 0.0
  %651 = vmatprep.subr.mxu0 0.0
  %652 = vmatpush1.msra.mxu0 0.0
  %653 = vmatprep.subr.mxu0 0.0
  %654 = vmatpush1.msra.mxu0 0.0
  %655 = vmatprep.subr.mxu0 0.0
  %656 = vmatpush1.msra.mxu0 0.0
  %657 = vmatprep.subr.mxu0 0.0
  %658 = vmatpush1.msra.mxu0 0.0
  %659 = vmatprep.subr.mxu0 0.0
  %660 = vmatpush1.msra.mxu0 0.0
  %661 = vmatprep.subr.mxu0 0.0
  %662 = vmatpush1.msra.mxu0 0.0
  %663 = vmatprep.subr.mxu0 0.0
  %664 = vmatpush1.msra.mxu0 0.0
  %665 = vmatprep.mubr.f32.mxu0 0.0
  %666 = vmatmul.mubr.f32.gmra.mrb[0].mxu0 %v599
  %v667 = vpop.f32.mrb[0].mxu0
  %v668 = vadd.f32 %v593, %v667
  %v669 = vpop.f32.mrb[0].mxu0
  %670 = vdwg.mxu0
  %v672 = vlaneseq
  %v673 = vshrl.u32 %v672, 7
  %v674 = vsub.s32 0, %v673
  %v675 = vrot.slane %v424, %v674
  %v677 = vadd.f32 %v668, %v675
  %v678 = vxor.u32 %v677, 2147483648
  %v679 = vmul.f32 %v678, 1.442695
  %v680 = vpow.pop %v679
  %v681 = vadd.f32 %v680, 1.0
  %v682 = vrcp.pop %v681
  %v683 = vmul.f32 1.0, %v682
  %v684 = vtanh.pop %v677
  %v685 = vmul.f32 %v683, 0.0
  %687 = vrot.lane.b32.xlu0 %v684, 32
  %v688 = vpop.permute.xlu0 %687
  %v690 = vmul.f32 %v683, %v688
  %692 = vrot.lane.b32.xlu0 %v690, 32
  %v693 = vpop.permute.xlu0 %692
  %v695 = vadd.f32 %v685, %v693
  %v696 = vtanh.pop %v695
  %698 = vrot.lane.b32.xlu0 %v696, 32
  %v699 = vpop.permute.xlu0 %698
  %v701 = vmul.f32 %v683, %v699
  %v703 = vlaneseq
  %v704 = vshrl.u32 %v703, 7
  %v705 = vsub.s32 0, %v704
  %v706 = vrot.slane %v425, %v705
  %707 = vrot.lane.b32.xlu0 %v706, 64
  %v708 = vpop.permute.xlu0 %707
  %v710 = vmul.f32 %v701, %v708
  %712 = vrot.lane.b32.xlu0 %v710, 64
  %v713 = vpop.permute.xlu0 %712
  %v715 = vsel %vm271, %v713, 0.0
  %716 = vadd.xlane.f32.xlu0 %v715
  %v717 = vpop.xlane.xlu0 %716
  %v719 = vlaneseq
  %v720 = vshrl.u32 %v719, 7
  %v721 = vsub.s32 0, %v720
  %v722 = vrot.slane %v426, %v721
  %v724 = vadd.f32 %v717, %v722
  %vm725 = vcmask 7168
  %726 = vst.msk [vmem:[%s10] sm:$0xff] %vm725, %v724
  %v727 = vld [vmem:[#allocation2 + $0x8] sm:$0xff]
  %728 = vmatprep.subr.mxu0 0.0
  %729 = vmatpush1.msra.mxu0 %v414
  %730 = vmatprep.subr.mxu0 0.0
  %731 = vmatpush1.msra.mxu0 %v415
  %732 = vmatprep.subr.mxu0 0.0
  %733 = vmatpush1.msra.mxu0 %v416
  %734 = vmatprep.subr.mxu0 0.0
  %735 = vmatpush1.msra.mxu0 %v417
  %736 = vmatprep.subr.mxu0 0.0
  %737 = vmatpush1.msra.mxu0 0.0
  %738 = vmatprep.subr.mxu0 0.0
  %739 = vmatpush1.msra.mxu0 0.0
  %740 = vmatprep.subr.mxu0 0.0
  %741 = vmatpush1.msra.mxu0 0.0
  %742 = vmatprep.subr.mxu0 0.0
  %743 = vmatpush1.msra.mxu0 0.0
  %744 = vmatprep.subr.mxu0 0.0
  %745 = vmatpush1.msra.mxu0 0.0
  %746 = vmatprep.subr.mxu0 0.0
  %747 = vmatpush1.msra.mxu0 0.0
  %748 = vmatprep.subr.mxu0 0.0
  %749 = vmatpush1.msra.mxu0 0.0
  %750 = vmatprep.subr.mxu0 0.0
  %751 = vmatpush1.msra.mxu0 0.0
  %752 = vmatprep.subr.mxu0 0.0
  %753 = vmatpush1.msra.mxu0 0.0
  %754 = vmatprep.subr.mxu0 0.0
  %755 = vmatpush1.msra.mxu0 0.0
  %756 = vmatprep.subr.mxu0 0.0
  %757 = vmatpush1.msra.mxu0 0.0
  %758 = vmatprep.subr.mxu0 0.0
  %759 = vmatpush1.msra.mxu0 0.0
  %760 = vmatprep.subr.mxu0 0.0
  %761 = vmatpush1.msra.mxu0 0.0
  %762 = vmatprep.subr.mxu0 0.0
  %763 = vmatpush1.msra.mxu0 0.0
  %764 = vmatprep.subr.mxu0 0.0
  %765 = vmatpush1.msra.mxu0 0.0
  %766 = vmatprep.subr.mxu0 0.0
  %767 = vmatpush1.msra.mxu0 0.0
  %768 = vmatprep.subr.mxu0 0.0
  %769 = vmatpush1.msra.mxu0 0.0
  %770 = vmatprep.subr.mxu0 0.0
  %771 = vmatpush1.msra.mxu0 0.0
  %772 = vmatprep.subr.mxu0 0.0
  %773 = vmatpush1.msra.mxu0 0.0
  %774 = vmatprep.subr.mxu0 0.0
  %775 = vmatpush1.msra.mxu0 0.0
  %776 = vmatprep.subr.mxu0 0.0
  %777 = vmatpush1.msra.mxu0 0.0
  %778 = vmatprep.subr.mxu0 0.0
  %779 = vmatpush1.msra.mxu0 0.0
  %780 = vmatprep.subr.mxu0 0.0
  %781 = vmatpush1.msra.mxu0 0.0
  %782 = vmatprep.subr.mxu0 0.0
  %783 = vmatpush1.msra.mxu0 0.0
  %784 = vmatprep.subr.mxu0 0.0
  %785 = vmatpush1.msra.mxu0 0.0
  %786 = vmatprep.subr.mxu0 0.0
  %787 = vmatpush1.msra.mxu0 0.0
  %788 = vmatprep.subr.mxu0 0.0
  %789 = vmatpush1.msra.mxu0 0.0
  %790 = vmatprep.subr.mxu0 0.0
  %791 = vmatpush1.msra.mxu0 0.0
  %792 = vmatprep.mubr.f32.mxu0 0.0
  %793 = vmatmul.mubr.f32.gmra.mrb[0].mxu0 %v599
  %v794 = vpop.f32.mrb[0].mxu0
  %v795 = vadd.f32 0.0, %v794
  %v796 = vpop.f32.mrb[0].mxu0
  %797 = vdwg.mxu0
  %v798 = vadd.f32 %v727, %v795
  %v799 = vxor.u32 %v798, 2147483648
  %v800 = vmul.f32 %v799, 1.442695
  %v801 = vpow.pop %v800
  %v802 = vadd.f32 %v801, 1.0
  %v803 = vrcp.pop %v802
  %v804 = vmul.f32 1.0, %v803
  %v805 = vtanh.pop %v798
  %v806 = vmul.f32 %v804, %v519
  %808 = vrot.lane.b32.xlu0 %v805, 32
  %v809 = vpop.permute.xlu0 %808
  %v811 = vmul.f32 %v804, %v809
  %813 = vrot.lane.b32.xlu0 %v811, 32
  %v814 = vpop.permute.xlu0 %813
  %v816 = vadd.f32 %v806, %v814
  %v817 = vtanh.pop %v816
  %819 = vrot.lane.b32.xlu0 %v817, 32
  %v820 = vpop.permute.xlu0 %819
  %v822 = vmul.f32 %v804, %v820
  %824 = vrot.lane.b32.xlu0 %v701, 64
  %v825 = vpop.permute.xlu0 %824
  %v826 = vsel %vm271, %v825, 0
  %828 = vmatprep.subr.mxu0 0.0
  %829 = vmatpush1.msra.mxu0 %v419
  %830 = vmatprep.subr.mxu0 0.0
  %831 = vmatpush1.msra.mxu0 %v420
  %832 = vmatprep.subr.mxu0 0.0
  %833 = vmatpush1.msra.mxu0 %v421
  %834 = vmatprep.subr.mxu0 0.0
  %835 = vmatpush1.msra.mxu0 %v422
  %836 = vmatprep.subr.mxu0 0.0
  %837 = vmatpush1.msra.mxu0 0.0
  %838 = vmatprep.subr.mxu0 0.0
  %839 = vmatpush1.msra.mxu0 0.0
  %840 = vmatprep.subr.mxu0 0.0
  %841 = vmatpush1.msra.mxu0 0.0
  %842 = vmatprep.subr.mxu0 0.0
  %843 = vmatpush1.msra.mxu0 0.0
  %844 = vmatprep.subr.mxu0 0.0
  %845 = vmatpush1.msra.mxu0 0.0
  %846 = vmatprep.subr.mxu0 0.0
  %847 = vmatpush1.msra.mxu0 0.0
  %848 = vmatprep.subr.mxu0 0.0
  %849 = vmatpush1.msra.mxu0 0.0
  %850 = vmatprep.subr.mxu0 0.0
  %851 = vmatpush1.msra.mxu0 0.0
  %852 = vmatprep.subr.mxu0 0.0
  %853 = vmatpush1.msra.mxu0 0.0
  %854 = vmatprep.subr.mxu0 0.0
  %855 = vmatpush1.msra.mxu0 0.0
  %856 = vmatprep.subr.mxu0 0.0
  %857 = vmatpush1.msra.mxu0 0.0
  %858 = vmatprep.subr.mxu0 0.0
  %859 = vmatpush1.msra.mxu0 0.0
  %860 = vmatprep.subr.mxu0 0.0
  %861 = vmatpush1.msra.mxu0 0.0
  %862 = vmatprep.subr.mxu0 0.0
  %863 = vmatpush1.msra.mxu0 0.0
  %864 = vmatprep.subr.mxu0 0.0
  %865 = vmatpush1.msra.mxu0 0.0
  %866 = vmatprep.subr.mxu0 0.0
  %867 = vmatpush1.msra.mxu0 0.0
  %868 = vmatprep.subr.mxu0 0.0
  %869 = vmatpush1.msra.mxu0 0.0
  %870 = vmatprep.subr.mxu0 0.0
  %871 = vmatpush1.msra.mxu0 0.0
  %872 = vmatprep.subr.mxu0 0.0
  %873 = vmatpush1.msra.mxu0 0.0
  %874 = vmatprep.subr.mxu0 0.0
  %875 = vmatpush1.msra.mxu0 0.0
  %876 = vmatprep.subr.mxu0 0.0
  %877 = vmatpush1.msra.mxu0 0.0
  %878 = vmatprep.subr.mxu0 0.0
  %879 = vmatpush1.msra.mxu0 0.0
  %880 = vmatprep.subr.mxu0 0.0
  %881 = vmatpush1.msra.mxu0 0.0
  %882 = vmatprep.subr.mxu0 0.0
  %883 = vmatpush1.msra.mxu0 0.0
  %884 = vmatprep.subr.mxu0 0.0
  %885 = vmatpush1.msra.mxu0 0.0
  %886 = vmatprep.subr.mxu0 0.0
  %887 = vmatpush1.msra.mxu0 0.0
  %888 = vmatprep.subr.mxu0 0.0
  %889 = vmatpush1.msra.mxu0 0.0
  %890 = vmatprep.subr.mxu0 0.0
  %891 = vmatpush1.msra.mxu0 0.0
  %892 = vmatprep.mubr.f32.mxu0 0.0
  %893 = vmatmul.mubr.f32.gmra.mrb[0].mxu0 %v826
  %v894 = vpop.f32.mrb[0].mxu0
  %v895 = vadd.f32 0.0, %v894
  %v896 = vpop.f32.mrb[0].mxu0
  %897 = vdwg.mxu0
  %899 = vrot.lane.b32.xlu0 %v822, 64
  %v900 = vpop.permute.xlu0 %899
  %v901 = vsel %vm271, %v900, 0
  %903 = vmatprep.subr.mxu0 0.0
  %904 = vmatpush1.msra.mxu0 %v410
  %905 = vmatprep.subr.mxu0 0.0
  %906 = vmatpush1.msra.mxu0 %v411
  %907 = vmatprep.subr.mxu0 0.0
  %908 = vmatpush1.msra.mxu0 %v412
  %909 = vmatprep.subr.mxu0 0.0
  %910 = vmatpush1.msra.mxu0 %v413
  %911 = vmatprep.subr.mxu0 0.0
  %912 = vmatpush1.msra.mxu0 0.0
  %913 = vmatprep.subr.mxu0 0.0
  %914 = vmatpush1.msra.mxu0 0.0
  %915 = vmatprep.subr.mxu0 0.0
  %916 = vmatpush1.msra.mxu0 0.0
  %917 = vmatprep.subr.mxu0 0.0
  %918 = vmatpush1.msra.mxu0 0.0
  %919 = vmatprep.subr.mxu0 0.0
  %920 = vmatpush1.msra.mxu0 0.0
  %921 = vmatprep.subr.mxu0 0.0
  %922 = vmatpush1.msra.mxu0 0.0
  %923 = vmatprep.subr.mxu0 0.0
  %924 = vmatpush1.msra.mxu0 0.0
  %925 = vmatprep.subr.mxu0 0.0
  %926 = vmatpush1.msra.mxu0 0.0
  %927 = vmatprep.subr.mxu0 0.0
  %928 = vmatpush1.msra.mxu0 0.0
  %929 = vmatprep.subr.mxu0 0.0
  %930 = vmatpush1.msra.mxu0 0.0
  %931 = vmatprep.subr.mxu0 0.0
  %932 = vmatpush1.msra.mxu0 0.0
  %933 = vmatprep.subr.mxu0 0.0
  %934 = vmatpush1.msra.mxu0 0.0
  %935 = vmatprep.subr.mxu0 0.0
  %936 = vmatpush1.msra.mxu0 0.0
  %937 = vmatprep.subr.mxu0 0.0
  %938 = vmatpush1.msra.mxu0 0.0
  %939 = vmatprep.subr.mxu0 0.0
  %940 = vmatpush1.msra.mxu0 0.0
  %941 = vmatprep.subr.mxu0 0.0
  %942 = vmatpush1.msra.mxu0 0.0
  %943 = vmatprep.subr.mxu0 0.0
  %944 = vmatpush1.msra.mxu0 0.0
  %945 = vmatprep.subr.mxu0 0.0
  %946 = vmatpush1.msra.mxu0 0.0
  %947 = vmatprep.subr.mxu0 0.0
  %948 = vmatpush1.msra.mxu0 0.0
  %949 = vmatprep.subr.mxu0 0.0
  %950 = vmatpush1.msra.mxu0 0.0
  %951 = vmatprep.subr.mxu0 0.0
  %952 = vmatpush1.msra.mxu0 0.0
  %953 = vmatprep.subr.mxu0 0.0
  %954 = vmatpush1.msra.mxu0 0.0
  %955 = vmatprep.subr.mxu0 0.0
  %956 = vmatpush1.msra.mxu0 0.0
  %957 = vmatprep.subr.mxu0 0.0
  %958 = vmatpush1.msra.mxu0 0.0
  %959 = vmatprep.subr.mxu0 0.0
  %960 = vmatpush1.msra.mxu0 0.0
  %961 = vmatprep.subr.mxu0 0.0
  %962 = vmatpush1.msra.mxu0 0.0
  %963 = vmatprep.subr.mxu0 0.0
  %964 = vmatpush1.msra.mxu0 0.0
  %965 = vmatprep.subr.mxu0 0.0
  %966 = vmatpush1.msra.mxu0 0.0
  %967 = vmatprep.mubr.f32.mxu0 0.0
  %968 = vmatmul.mubr.f32.gmra.mrb[0].mxu0 %v901
  %v969 = vpop.f32.mrb[0].mxu0
  %v970 = vadd.f32 %v895, %v969
  %v971 = vpop.f32.mrb[0].mxu0
  %972 = vdwg.mxu0
  %v973 = vadd.f32 %v970, %v675
  %v974 = vxor.u32 %v973, 2147483648
  %v975 = vmul.f32 %v974, 1.442695
  %v976 = vpow.pop %v975
  %v977 = vadd.f32 %v976, 1.0
  %v978 = vrcp.pop %v977
  %v979 = vmul.f32 1.0, %v978
  %v980 = vtanh.pop %v973
  %v981 = vmul.f32 %v979, %v695
  %983 = vrot.lane.b32.xlu0 %v980, 32
  %v984 = vpop.permute.xlu0 %983
  %v986 = vmul.f32 %v979, %v984
  %988 = vrot.lane.b32.xlu0 %v986, 32
  %v989 = vpop.permute.xlu0 %988
  %v991 = vadd.f32 %v981, %v989
  %v992 = vtanh.pop %v991
  %994 = vrot.lane.b32.xlu0 %v992, 32
  %v995 = vpop.permute.xlu0 %994
  %v997 = vmul.f32 %v979, %v995
  %v998 = vmul.f32 %v997, %v708
  %1000 = vrot.lane.b32.xlu0 %v998, 64
  %v1001 = vpop.permute.xlu0 %1000
  %v1003 = vsel %vm271, %v1001, 0.0
  %1004 = vadd.xlane.f32.xlu0 %v1003
  %v1005 = vpop.xlane.xlu0 %1004
  %v1006 = vadd.f32 %v1005, %v722
  %1007 = vst.msk [vmem:[%s10 + $0x8] sm:$0xff] %vm725, %v1006
  %v1008 = vld [vmem:[#allocation2 + $0x10] sm:$0xff]
  %1009 = vmatprep.subr.mxu0 0.0
  %1010 = vmatpush1.msra.mxu0 %v414
  %1011 = vmatprep.subr.mxu0 0.0
  %1012 = vmatpush1.msra.mxu0 %v415
  %1013 = vmatprep.subr.mxu0 0.0
  %1014 = vmatpush1.msra.mxu0 %v416
  %1015 = vmatprep.subr.mxu0 0.0
  %1016 = vmatpush1.msra.mxu0 %v417
  %1017 = vmatprep.subr.mxu0 0.0
  %1018 = vmatpush1.msra.mxu0 0.0
  %1019 = vmatprep.subr.mxu0 0.0
  %1020 = vmatpush1.msra.mxu0 0.0
  %1021 = vmatprep.subr.mxu0 0.0
  %1022 = vmatpush1.msra.mxu0 0.0
  %1023 = vmatprep.subr.mxu0 0.0
  %1024 = vmatpush1.msra.mxu0 0.0
  %1025 = vmatprep.subr.mxu0 0.0
  %1026 = vmatpush1.msra.mxu0 0.0
  %1027 = vmatprep.subr.mxu0 0.0
  %1028 = vmatpush1.msra.mxu0 0.0
  %1029 = vmatprep.subr.mxu0 0.0
  %1030 = vmatpush1.msra.mxu0 0.0
  %1031 = vmatprep.subr.mxu0 0.0
  %1032 = vmatpush1.msra.mxu0 0.0
  %1033 = vmatprep.subr.mxu0 0.0
  %1034 = vmatpush1.msra.mxu0 0.0
  %1035 = vmatprep.subr.mxu0 0.0
  %1036 = vmatpush1.msra.mxu0 0.0
  %1037 = vmatprep.subr.mxu0 0.0
  %1038 = vmatpush1.msra.mxu0 0.0
  %1039 = vmatprep.subr.mxu0 0.0
  %1040 = vmatpush1.msra.mxu0 0.0
  %1041 = vmatprep.subr.mxu0 0.0
  %1042 = vmatpush1.msra.mxu0 0.0
  %1043 = vmatprep.subr.mxu0 0.0
  %1044 = vmatpush1.msra.mxu0 0.0
  %1045 = vmatprep.subr.mxu0 0.0
  %1046 = vmatpush1.msra.mxu0 0.0
  %1047 = vmatprep.subr.mxu0 0.0
  %1048 = vmatpush1.msra.mxu0 0.0
  %1049 = vmatprep.subr.mxu0 0.0
  %1050 = vmatpush1.msra.mxu0 0.0
  %1051 = vmatprep.subr.mxu0 0.0
  %1052 = vmatpush1.msra.mxu0 0.0
  %1053 = vmatprep.subr.mxu0 0.0
  %1054 = vmatpush1.msra.mxu0 0.0
  %1055 = vmatprep.subr.mxu0 0.0
  %1056 = vmatpush1.msra.mxu0 0.0
  %1057 = vmatprep.subr.mxu0 0.0
  %1058 = vmatpush1.msra.mxu0 0.0
  %1059 = vmatprep.subr.mxu0 0.0
  %1060 = vmatpush1.msra.mxu0 0.0
  %1061 = vmatprep.subr.mxu0 0.0
  %1062 = vmatpush1.msra.mxu0 0.0
  %1063 = vmatprep.subr.mxu0 0.0
  %1064 = vmatpush1.msra.mxu0 0.0
  %1065 = vmatprep.subr.mxu0 0.0
  %1066 = vmatpush1.msra.mxu0 0.0
  %1067 = vmatprep.subr.mxu0 0.0
  %1068 = vmatpush1.msra.mxu0 0.0
  %1069 = vmatprep.subr.mxu0 0.0
  %1070 = vmatpush1.msra.mxu0 0.0
  %1071 = vmatprep.subr.mxu0 0.0
  %1072 = vmatpush1.msra.mxu0 0.0
  %1073 = vmatprep.mubr.f32.mxu0 0.0
  %1074 = vmatmul.mubr.f32.gmra.mrb[0].mxu0 %v901
  %v1075 = vpop.f32.mrb[0].mxu0
  %v1076 = vadd.f32 0.0, %v1075
  %v1077 = vpop.f32.mrb[0].mxu0
  %1078 = vdwg.mxu0
  %v1079 = vadd.f32 %v1008, %v1076
  %v1080 = vxor.u32 %v1079, 2147483648
  %v1081 = vmul.f32 %v1080, 1.442695
  %v1082 = vpow.pop %v1081
  %v1083 = vadd.f32 %v1082, 1.0
  %v1084 = vrcp.pop %v1083
  %v1085 = vmul.f32 1.0, %v1084
  %v1086 = vtanh.pop %v1079
  %v1087 = vmul.f32 %v1085, %v816
  %1089 = vrot.lane.b32.xlu0 %v1086, 32
  %v1090 = vpop.permute.xlu0 %1089
  %v1092 = vmul.f32 %v1085, %v1090
  %1094 = vrot.lane.b32.xlu0 %v1092, 32
  %v1095 = vpop.permute.xlu0 %1094
  %v1097 = vadd.f32 %v1087, %v1095
  %v1098 = vtanh.pop %v1097
  %1100 = vrot.lane.b32.xlu0 %v1098, 32
  %v1101 = vpop.permute.xlu0 %1100
  %v1103 = vmul.f32 %v1085, %v1101
  %1105 = vrot.lane.b32.xlu0 %v997, 64
  %v1106 = vpop.permute.xlu0 %1105
  %v1107 = vsel %vm271, %v1106, 0
  %1109 = vmatprep.subr.mxu0 0.0
  %1110 = vmatpush1.msra.mxu0 %v419
  %1111 = vmatprep.subr.mxu0 0.0
  %1112 = vmatpush1.msra.mxu0 %v420
  %1113 = vmatprep.subr.mxu0 0.0
  %1114 = vmatpush1.msra.mxu0 %v421
  %1115 = vmatprep.subr.mxu0 0.0
  %1116 = vmatpush1.msra.mxu0 %v422
  %1117 = vmatprep.subr.mxu0 0.0
  %1118 = vmatpush1.msra.mxu0 0.0
  %1119 = vmatprep.subr.mxu0 0.0
  %1120 = vmatpush1.msra.mxu0 0.0
  %1121 = vmatprep.subr.mxu0 0.0
  %1122 = vmatpush1.msra.mxu0 0.0
  %1123 = vmatprep.subr.mxu0 0.0
  %1124 = vmatpush1.msra.mxu0 0.0
  %1125 = vmatprep.subr.mxu0 0.0
  %1126 = vmatpush1.msra.mxu0 0.0
  %1127 = vmatprep.subr.mxu0 0.0
  %1128 = vmatpush1.msra.mxu0 0.0
  %1129 = vmatprep.subr.mxu0 0.0
  %1130 = vmatpush1.msra.mxu0 0.0
  %1131 = vmatprep.subr.mxu0 0.0
  %1132 = vmatpush1.msra.mxu0 0.0
  %1133 = vmatprep.subr.mxu0 0.0
  %1134 = vmatpush1.msra.mxu0 0.0
  %1135 = vmatprep.subr.mxu0 0.0
  %1136 = vmatpush1.msra.mxu0 0.0
  %1137 = vmatprep.subr.mxu0 0.0
  %1138 = vmatpush1.msra.mxu0 0.0
  %1139 = vmatprep.subr.mxu0 0.0
  %1140 = vmatpush1.msra.mxu0 0.0
  %1141 = vmatprep.subr.mxu0 0.0
  %1142 = vmatpush1.msra.mxu0 0.0
  %1143 = vmatprep.subr.mxu0 0.0
  %1144 = vmatpush1.msra.mxu0 0.0
  %1145 = vmatprep.subr.mxu0 0.0
  %1146 = vmatpush1.msra.mxu0 0.0
  %1147 = vmatprep.subr.mxu0 0.0
  %1148 = vmatpush1.msra.mxu0 0.0
  %1149 = vmatprep.subr.mxu0 0.0
  %1150 = vmatpush1.msra.mxu0 0.0
  %1151 = vmatprep.subr.mxu0 0.0
  %1152 = vmatpush1.msra.mxu0 0.0
  %1153 = vmatprep.subr.mxu0 0.0
  %1154 = vmatpush1.msra.mxu0 0.0
  %1155 = vmatprep.subr.mxu0 0.0
  %1156 = vmatpush1.msra.mxu0 0.0
  %1157 = vmatprep.subr.mxu0 0.0
  %1158 = vmatpush1.msra.mxu0 0.0
  %1159 = vmatprep.subr.mxu0 0.0
  %1160 = vmatpush1.msra.mxu0 0.0
  %1161 = vmatprep.subr.mxu0 0.0
  %1162 = vmatpush1.msra.mxu0 0.0
  %1163 = vmatprep.subr.mxu0 0.0
  %1164 = vmatpush1.msra.mxu0 0.0
  %1165 = vmatprep.subr.mxu0 0.0
  %1166 = vmatpush1.msra.mxu0 0.0
  %1167 = vmatprep.subr.mxu0 0.0
  %1168 = vmatpush1.msra.mxu0 0.0
  %1169 = vmatprep.subr.mxu0 0.0
  %1170 = vmatpush1.msra.mxu0 0.0
  %1171 = vmatprep.subr.mxu0 0.0
  %1172 = vmatpush1.msra.mxu0 0.0
  %1173 = vmatprep.mubr.f32.mxu0 0.0
  %1174 = vmatmul.mubr.f32.gmra.mrb[0].mxu0 %v1107
  %v1175 = vpop.f32.mrb[0].mxu0
  %v1176 = vadd.f32 0.0, %v1175
  %v1177 = vpop.f32.mrb[0].mxu0
  %1178 = vdwg.mxu0
  %1180 = vrot.lane.b32.xlu0 %v1103, 64
  %v1181 = vpop.permute.xlu0 %1180
  %v1182 = vsel %vm271, %v1181, 0
  %1184 = vmatprep.subr.mxu0 0.0
  %1185 = vmatpush1.msra.mxu0 %v410
  %1186 = vmatprep.subr.mxu0 0.0
  %1187 = vmatpush1.msra.mxu0 %v411
  %1188 = vmatprep.subr.mxu0 0.0
  %1189 = vmatpush1.msra.mxu0 %v412
  %1190 = vmatprep.subr.mxu0 0.0
  %1191 = vmatpush1.msra.mxu0 %v413
  %1192 = vmatprep.subr.mxu0 0.0
  %1193 = vmatpush1.msra.mxu0 0.0
  %1194 = vmatprep.subr.mxu0 0.0
  %1195 = vmatpush1.msra.mxu0 0.0
  %1196 = vmatprep.subr.mxu0 0.0
  %1197 = vmatpush1.msra.mxu0 0.0
  %1198 = vmatprep.subr.mxu0 0.0
  %1199 = vmatpush1.msra.mxu0 0.0
  %1200 = vmatprep.subr.mxu0 0.0
  %1201 = vmatpush1.msra.mxu0 0.0
  %1202 = vmatprep.subr.mxu0 0.0
  %1203 = vmatpush1.msra.mxu0 0.0
  %1204 = vmatprep.subr.mxu0 0.0
  %1205 = vmatpush1.msra.mxu0 0.0
  %1206 = vmatprep.subr.mxu0 0.0
  %1207 = vmatpush1.msra.mxu0 0.0
  %1208 = vmatprep.subr.mxu0 0.0
  %1209 = vmatpush1.msra.mxu0 0.0
  %1210 = vmatprep.subr.mxu0 0.0
  %1211 = vmatpush1.msra.mxu0 0.0
  %1212 = vmatprep.subr.mxu0 0.0
  %1213 = vmatpush1.msra.mxu0 0.0
  %1214 = vmatprep.subr.mxu0 0.0
  %1215 = vmatpush1.msra.mxu0 0.0
  %1216 = vmatprep.subr.mxu0 0.0
  %1217 = vmatpush1.msra.mxu0 0.0
  %1218 = vmatprep.subr.mxu0 0.0
  %1219 = vmatpush1.msra.mxu0 0.0
  %1220 = vmatprep.subr.mxu0 0.0
  %1221 = vmatpush1.msra.mxu0 0.0
  %1222 = vmatprep.subr.mxu0 0.0
  %1223 = vmatpush1.msra.mxu0 0.0
  %1224 = vmatprep.subr.mxu0 0.0
  %1225 = vmatpush1.msra.mxu0 0.0
  %1226 = vmatprep.subr.mxu0 0.0
  %1227 = vmatpush1.msra.mxu0 0.0
  %1228 = vmatprep.subr.mxu0 0.0
  %1229 = vmatpush1.msra.mxu0 0.0
  %1230 = vmatprep.subr.mxu0 0.0
  %1231 = vmatpush1.msra.mxu0 0.0
  %1232 = vmatprep.subr.mxu0 0.0
  %1233 = vmatpush1.msra.mxu0 0.0
  %1234 = vmatprep.subr.mxu0 0.0
  %1235 = vmatpush1.msra.mxu0 0.0
  %1236 = vmatprep.subr.mxu0 0.0
  %1237 = vmatpush1.msra.mxu0 0.0
  %1238 = vmatprep.subr.mxu0 0.0
  %1239 = vmatpush1.msra.mxu0 0.0
  %1240 = vmatprep.subr.mxu0 0.0
  %1241 = vmatpush1.msra.mxu0 0.0
  %1242 = vmatprep.subr.mxu0 0.0
  %1243 = vmatpush1.msra.mxu0 0.0
  %1244 = vmatprep.subr.mxu0 0.0
  %1245 = vmatpush1.msra.mxu0 0.0
  %1246 = vmatprep.subr.mxu0 0.0
  %1247 = vmatpush1.msra.mxu0 0.0
  %1248 = vmatprep.mubr.f32.mxu0 0.0
  %1249 = vmatmul.mubr.f32.gmra.mrb[0].mxu0 %v1182
  %v1250 = vpop.f32.mrb[0].mxu0
  %v1251 = vadd.f32 %v1176, %v1250
  %v1252 = vpop.f32.mrb[0].mxu0
  %1253 = vdwg.mxu0
  %v1254 = vadd.f32 %v1251, %v675
  %v1255 = vxor.u32 %v1254, 2147483648
  %v1256 = vmul.f32 %v1255, 1.442695
  %v1257 = vpow.pop %v1256
  %v1258 = vadd.f32 %v1257, 1.0
  %v1259 = vrcp.pop %v1258
  %v1260 = vmul.f32 1.0, %v1259
  %v1261 = vtanh.pop %v1254
  %v1262 = vmul.f32 %v1260, %v991
  %1264 = vrot.lane.b32.xlu0 %v1261, 32
  %v1265 = vpop.permute.xlu0 %1264
  %v1267 = vmul.f32 %v1260, %v1265
  %1269 = vrot.lane.b32.xlu0 %v1267, 32
  %v1270 = vpop.permute.xlu0 %1269
  %v1272 = vadd.f32 %v1262, %v1270
  %v1273 = vtanh.pop %v1272
  %1275 = vrot.lane.b32.xlu0 %v1273, 32
  %v1276 = vpop.permute.xlu0 %1275
  %v1278 = vmul.f32 %v1260, %v1276
  %v1279 = vmul.f32 %v1278, %v708
  %1281 = vrot.lane.b32.xlu0 %v1279, 64
  %v1282 = vpop.permute.xlu0 %1281
  %v1284 = vsel %vm271, %v1282, 0.0
  %1285 = vadd.xlane.f32.xlu0 %v1284
  %v1286 = vpop.xlane.xlu0 %1285
  %v1287 = vadd.f32 %v1286, %v722
  %1288 = vst.msk [vmem:[%s10 + $0x10] sm:$0xff] %vm725, %v1287
  %v1289 = vld [vmem:[#allocation2 + $0x18] sm:$0xff]
  %1290 = vmatprep.subr.mxu0 0.0
  %1291 = vmatpush1.msra.mxu0 %v414
  %1292 = vmatprep.subr.mxu0 0.0
  %1293 = vmatpush1.msra.mxu0 %v415
  %1294 = vmatprep.subr.mxu0 0.0
  %1295 = vmatpush1.msra.mxu0 %v416
  %1296 = vmatprep.subr.mxu0 0.0
  %1297 = vmatpush1.msra.mxu0 %v417
  %1298 = vmatprep.subr.mxu0 0.0
  %1299 = vmatpush1.msra.mxu0 0.0
  %1300 = vmatprep.subr.mxu0 0.0
  %1301 = vmatpush1.msra.mxu0 0.0
  %1302 = vmatprep.subr.mxu0 0.0
  %1303 = vmatpush1.msra.mxu0 0.0
  %1304 = vmatprep.subr.mxu0 0.0
  %1305 = vmatpush1.msra.mxu0 0.0
  %1306 = vmatprep.subr.mxu0 0.0
  %1307 = vmatpush1.msra.mxu0 0.0
  %1308 = vmatprep.subr.mxu0 0.0
  %1309 = vmatpush1.msra.mxu0 0.0
  %1310 = vmatprep.subr.mxu0 0.0
  %1311 = vmatpush1.msra.mxu0 0.0
  %1312 = vmatprep.subr.mxu0 0.0
  %1313 = vmatpush1.msra.mxu0 0.0
  %1314 = vmatprep.subr.mxu0 0.0
  %1315 = vmatpush1.msra.mxu0 0.0
  %1316 = vmatprep.subr.mxu0 0.0
  %1317 = vmatpush1.msra.mxu0 0.0
  %1318 = vmatprep.subr.mxu0 0.0
  %1319 = vmatpush1.msra.mxu0 0.0
  %1320 = vmatprep.subr.mxu0 0.0
  %1321 = vmatpush1.msra.mxu0 0.0
  %1322 = vmatprep.subr.mxu0 0.0
  %1323 = vmatpush1.msra.mxu0 0.0
  %1324 = vmatprep.subr.mxu0 0.0
  %1325 = vmatpush1.msra.mxu0 0.0
  %1326 = vmatprep.subr.mxu0 0.0
  %1327 = vmatpush1.msra.mxu0 0.0
  %1328 = vmatprep.subr.mxu0 0.0
  %1329 = vmatpush1.msra.mxu0 0.0
  %1330 = vmatprep.subr.mxu0 0.0
  %1331 = vmatpush1.msra.mxu0 0.0
  %1332 = vmatprep.subr.mxu0 0.0
  %1333 = vmatpush1.msra.mxu0 0.0
  %1334 = vmatprep.subr.mxu0 0.0
  %1335 = vmatpush1.msra.mxu0 0.0
  %1336 = vmatprep.subr.mxu0 0.0
  %1337 = vmatpush1.msra.mxu0 0.0
  %1338 = vmatprep.subr.mxu0 0.0
  %1339 = vmatpush1.msra.mxu0 0.0
  %1340 = vmatprep.subr.mxu0 0.0
  %1341 = vmatpush1.msra.mxu0 0.0
  %1342 = vmatprep.subr.mxu0 0.0
  %1343 = vmatpush1.msra.mxu0 0.0
  %1344 = vmatprep.subr.mxu0 0.0
  %1345 = vmatpush1.msra.mxu0 0.0
  %1346 = vmatprep.subr.mxu0 0.0
  %1347 = vmatpush1.msra.mxu0 0.0
  %1348 = vmatprep.subr.mxu0 0.0
  %1349 = vmatpush1.msra.mxu0 0.0
  %1350 = vmatprep.subr.mxu0 0.0
  %1351 = vmatpush1.msra.mxu0 0.0
  %1352 = vmatprep.subr.mxu0 0.0
  %1353 = vmatpush1.msra.mxu0 0.0
  %1354 = vmatprep.mubr.f32.mxu0 0.0
  %1355 = vmatmul.mubr.f32.gmra.mrb[0].mxu0 %v1182
  %v1356 = vpop.f32.mrb[0].mxu0
  %v1357 = vadd.f32 0.0, %v1356
  %v1358 = vpop.f32.mrb[0].mxu0
  %1359 = vdwg.mxu0
  %v1360 = vadd.f32 %v1289, %v1357
  %v1361 = vxor.u32 %v1360, 2147483648
  %v1362 = vmul.f32 %v1361, 1.442695
  %v1363 = vpow.pop %v1362
  %v1364 = vadd.f32 %v1363, 1.0
  %v1365 = vrcp.pop %v1364
  %v1366 = vmul.f32 1.0, %v1365
  %v1367 = vtanh.pop %v1360
  %v1368 = vmul.f32 %v1366, %v1097
  %1370 = vrot.lane.b32.xlu0 %v1367, 32
  %v1371 = vpop.permute.xlu0 %1370
  %v1373 = vmul.f32 %v1366, %v1371
  %1375 = vrot.lane.b32.xlu0 %v1373, 32
  %v1376 = vpop.permute.xlu0 %1375
  %v1378 = vadd.f32 %v1368, %v1376
  %v1379 = vtanh.pop %v1378
  %1381 = vrot.lane.b32.xlu0 %v1379, 32
  %v1382 = vpop.permute.xlu0 %1381
  %v1384 = vmul.f32 %v1366, %v1382
  %1386 = vrot.lane.b32.xlu0 %v1278, 64
  %v1387 = vpop.permute.xlu0 %1386
  %v1388 = vsel %vm271, %v1387, 0
  %1390 = vmatprep.subr.mxu0 0.0
  %1391 = vmatpush1.msra.mxu0 %v419
  %1392 = vmatprep.subr.mxu0 0.0
  %1393 = vmatpush1.msra.mxu0 %v420
  %1394 = vmatprep.subr.mxu0 0.0
  %1395 = vmatpush1.msra.mxu0 %v421
  %1396 = vmatprep.subr.mxu0 0.0
  %1397 = vmatpush1.msra.mxu0 %v422
  %1398 = vmatprep.subr.mxu0 0.0
  %1399 = vmatpush1.msra.mxu0 0.0
  %1400 = vmatprep.subr.mxu0 0.0
  %1401 = vmatpush1.msra.mxu0 0.0
  %1402 = vmatprep.subr.mxu0 0.0
  %1403 = vmatpush1.msra.mxu0 0.0
  %1404 = vmatprep.subr.mxu0 0.0
  %1405 = vmatpush1.msra.mxu0 0.0
  %1406 = vmatprep.subr.mxu0 0.0
  %1407 = vmatpush1.msra.mxu0 0.0
  %1408 = vmatprep.subr.mxu0 0.0
  %1409 = vmatpush1.msra.mxu0 0.0
  %1410 = vmatprep.subr.mxu0 0.0
  %1411 = vmatpush1.msra.mxu0 0.0
  %1412 = vmatprep.subr.mxu0 0.0
  %1413 = vmatpush1.msra.mxu0 0.0
  %1414 = vmatprep.subr.mxu0 0.0
  %1415 = vmatpush1.msra.mxu0 0.0
  %1416 = vmatprep.subr.mxu0 0.0
  %1417 = vmatpush1.msra.mxu0 0.0
  %1418 = vmatprep.subr.mxu0 0.0
  %1419 = vmatpush1.msra.mxu0 0.0
  %1420 = vmatprep.subr.mxu0 0.0
  %1421 = vmatpush1.msra.mxu0 0.0
  %1422 = vmatprep.subr.mxu0 0.0
  %1423 = vmatpush1.msra.mxu0 0.0
  %1424 = vmatprep.subr.mxu0 0.0
  %1425 = vmatpush1.msra.mxu0 0.0
  %1426 = vmatprep.subr.mxu0 0.0
  %1427 = vmatpush1.msra.mxu0 0.0
  %1428 = vmatprep.subr.mxu0 0.0
  %1429 = vmatpush1.msra.mxu0 0.0
  %1430 = vmatprep.subr.mxu0 0.0
  %1431 = vmatpush1.msra.mxu0 0.0
  %1432 = vmatprep.subr.mxu0 0.0
  %1433 = vmatpush1.msra.mxu0 0.0
  %1434 = vmatprep.subr.mxu0 0.0
  %1435 = vmatpush1.msra.mxu0 0.0
  %1436 = vmatprep.subr.mxu0 0.0
  %1437 = vmatpush1.msra.mxu0 0.0
  %1438 = vmatprep.subr.mxu0 0.0
  %1439 = vmatpush1.msra.mxu0 0.0
  %1440 = vmatprep.subr.mxu0 0.0
  %1441 = vmatpush1.msra.mxu0 0.0
  %1442 = vmatprep.subr.mxu0 0.0
  %1443 = vmatpush1.msra.mxu0 0.0
  %1444 = vmatprep.subr.mxu0 0.0
  %1445 = vmatpush1.msra.mxu0 0.0
  %1446 = vmatprep.subr.mxu0 0.0
  %1447 = vmatpush1.msra.mxu0 0.0
  %1448 = vmatprep.subr.mxu0 0.0
  %1449 = vmatpush1.msra.mxu0 0.0
  %1450 = vmatprep.subr.mxu0 0.0
  %1451 = vmatpush1.msra.mxu0 0.0
  %1452 = vmatprep.subr.mxu0 0.0
  %1453 = vmatpush1.msra.mxu0 0.0
  %1454 = vmatprep.mubr.f32.mxu0 0.0
  %1455 = vmatmul.mubr.f32.gmra.mrb[0].mxu0 %v1388
  %v1456 = vpop.f32.mrb[0].mxu0
  %v1457 = vadd.f32 0.0, %v1456
  %v1458 = vpop.f32.mrb[0].mxu0
  %1459 = vdwg.mxu0
  %1461 = vrot.lane.b32.xlu0 %v1384, 64
  %v1462 = vpop.permute.xlu0 %1461
  %v1463 = vsel %vm271, %v1462, 0
  %1465 = vmatprep.subr.mxu0 0.0
  %1466 = vmatpush1.msra.mxu0 %v410
  %1467 = vmatprep.subr.mxu0 0.0
  %1468 = vmatpush1.msra.mxu0 %v411
  %1469 = vmatprep.subr.mxu0 0.0
  %1470 = vmatpush1.msra.mxu0 %v412
  %1471 = vmatprep.subr.mxu0 0.0
  %1472 = vmatpush1.msra.mxu0 %v413
  %1473 = vmatprep.subr.mxu0 0.0
  %1474 = vmatpush1.msra.mxu0 0.0
  %1475 = vmatprep.subr.mxu0 0.0
  %1476 = vmatpush1.msra.mxu0 0.0
  %1477 = vmatprep.subr.mxu0 0.0
  %1478 = vmatpush1.msra.mxu0 0.0
  %1479 = vmatprep.subr.mxu0 0.0
  %1480 = vmatpush1.msra.mxu0 0.0
  %1481 = vmatprep.subr.mxu0 0.0
  %1482 = vmatpush1.msra.mxu0 0.0
  %1483 = vmatprep.subr.mxu0 0.0
  %1484 = vmatpush1.msra.mxu0 0.0
  %1485 = vmatprep.subr.mxu0 0.0
  %1486 = vmatpush1.msra.mxu0 0.0
  %1487 = vmatprep.subr.mxu0 0.0
  %1488 = vmatpush1.msra.mxu0 0.0
  %1489 = vmatprep.subr.mxu0 0.0
  %1490 = vmatpush1.msra.mxu0 0.0
  %1491 = vmatprep.subr.mxu0 0.0
  %1492 = vmatpush1.msra.mxu0 0.0
  %1493 = vmatprep.subr.mxu0 0.0
  %1494 = vmatpush1.msra.mxu0 0.0
  %1495 = vmatprep.subr.mxu0 0.0
  %1496 = vmatpush1.msra.mxu0 0.0
  %1497 = vmatprep.subr.mxu0 0.0
  %1498 = vmatpush1.msra.mxu0 0.0
  %1499 = vmatprep.subr.mxu0 0.0
  %1500 = vmatpush1.msra.mxu0 0.0
  %1501 = vmatprep.subr.mxu0 0.0
  %1502 = vmatpush1.msra.mxu0 0.0
  %1503 = vmatprep.subr.mxu0 0.0
  %1504 = vmatpush1.msra.mxu0 0.0
  %1505 = vmatprep.subr.mxu0 0.0
  %1506 = vmatpush1.msra.mxu0 0.0
  %1507 = vmatprep.subr.mxu0 0.0
  %1508 = vmatpush1.msra.mxu0 0.0
  %1509 = vmatprep.subr.mxu0 0.0
  %1510 = vmatpush1.msra.mxu0 0.0
  %1511 = vmatprep.subr.mxu0 0.0
  %1512 = vmatpush1.msra.mxu0 0.0
  %1513 = vmatprep.subr.mxu0 0.0
  %1514 = vmatpush1.msra.mxu0 0.0
  %1515 = vmatprep.subr.mxu0 0.0
  %1516 = vmatpush1.msra.mxu0 0.0
  %1517 = vmatprep.subr.mxu0 0.0
  %1518 = vmatpush1.msra.mxu0 0.0
  %1519 = vmatprep.subr.mxu0 0.0
  %1520 = vmatpush1.msra.mxu0 0.0
  %1521 = vmatprep.subr.mxu0 0.0
  %1522 = vmatpush1.msra.mxu0 0.0
  %1523 = vmatprep.subr.mxu0 0.0
  %1524 = vmatpush1.msra.mxu0 0.0
  %1525 = vmatprep.subr.mxu0 0.0
  %1526 = vmatpush1.msra.mxu0 0.0
  %1527 = vmatprep.subr.mxu0 0.0
  %1528 = vmatpush1.msra.mxu0 0.0
  %1529 = vmatprep.mubr.f32.mxu0 0.0
  %1530 = vmatmul.mubr.f32.gmra.mrb[0].mxu0 %v1463
  %v1531 = vpop.f32.mrb[0].mxu0
  %v1532 = vadd.f32 %v1457, %v1531
  %v1533 = vpop.f32.mrb[0].mxu0
  %1534 = vdwg.mxu0
  %v1535 = vadd.f32 %v1532, %v675
  %v1536 = vxor.u32 %v1535, 2147483648
  %v1537 = vmul.f32 %v1536, 1.442695
  %v1538 = vpow.pop %v1537
  %v1539 = vadd.f32 %v1538, 1.0
  %v1540 = vrcp.pop %v1539
  %v1541 = vmul.f32 1.0, %v1540
  %v1542 = vtanh.pop %v1535
  %v1543 = vmul.f32 %v1541, %v1272
  %1545 = vrot.lane.b32.xlu0 %v1542, 32
  %v1546 = vpop.permute.xlu0 %1545
  %v1548 = vmul.f32 %v1541, %v1546
  %1550 = vrot.lane.b32.xlu0 %v1548, 32
  %v1551 = vpop.permute.xlu0 %1550
  %v1553 = vadd.f32 %v1543, %v1551
  %v1554 = vtanh.pop %v1553
  %1556 = vrot.lane.b32.xlu0 %v1554, 32
  %v1557 = vpop.permute.xlu0 %1556
  %v1559 = vmul.f32 %v1541, %v1557
  %v1560 = vmul.f32 %v1559, %v708
  %1562 = vrot.lane.b32.xlu0 %v1560, 64
  %v1563 = vpop.permute.xlu0 %1562
  %v1565 = vsel %vm271, %v1563, 0.0
  %1566 = vadd.xlane.f32.xlu0 %v1565
  %v1567 = vpop.xlane.xlu0 %1566
  %v1568 = vadd.f32 %v1567, %v722
  %1569 = vst.msk [vmem:[%s10 + $0x18] sm:$0xff] %vm725, %v1568
  %v1570 = vld [vmem:[#allocation2 + $0x20] sm:$0xff]
  %1571 = vmatprep.subr.mxu0 0.0
  %1572 = vmatpush1.msra.mxu0 %v414
  %1573 = vmatprep.subr.mxu0 0.0
  %1574 = vmatpush1.msra.mxu0 %v415
  %1575 = vmatprep.subr.mxu0 0.0
  %1576 = vmatpush1.msra.mxu0 %v416
  %1577 = vmatprep.subr.mxu0 0.0
  %1578 = vmatpush1.msra.mxu0 %v417
  %1579 = vmatprep.subr.mxu0 0.0
  %1580 = vmatpush1.msra.mxu0 0.0
  %1581 = vmatprep.subr.mxu0 0.0
  %1582 = vmatpush1.msra.mxu0 0.0
  %1583 = vmatprep.subr.mxu0 0.0
  %1584 = vmatpush1.msra.mxu0 0.0
  %1585 = vmatprep.subr.mxu0 0.0
  %1586 = vmatpush1.msra.mxu0 0.0
  %1587 = vmatprep.subr.mxu0 0.0
  %1588 = vmatpush1.msra.mxu0 0.0
  %1589 = vmatprep.subr.mxu0 0.0
  %1590 = vmatpush1.msra.mxu0 0.0
  %1591 = vmatprep.subr.mxu0 0.0
  %1592 = vmatpush1.msra.mxu0 0.0
  %1593 = vmatprep.subr.mxu0 0.0
  %1594 = vmatpush1.msra.mxu0 0.0
  %1595 = vmatprep.subr.mxu0 0.0
  %1596 = vmatpush1.msra.mxu0 0.0
  %1597 = vmatprep.subr.mxu0 0.0
  %1598 = vmatpush1.msra.mxu0 0.0
  %1599 = vmatprep.subr.mxu0 0.0
  %1600 = vmatpush1.msra.mxu0 0.0
  %1601 = vmatprep.subr.mxu0 0.0
  %1602 = vmatpush1.msra.mxu0 0.0
  %1603 = vmatprep.subr.mxu0 0.0
  %1604 = vmatpush1.msra.mxu0 0.0
  %1605 = vmatprep.subr.mxu0 0.0
  %1606 = vmatpush1.msra.mxu0 0.0
  %1607 = vmatprep.subr.mxu0 0.0
  %1608 = vmatpush1.msra.mxu0 0.0
  %1609 = vmatprep.subr.mxu0 0.0
  %1610 = vmatpush1.msra.mxu0 0.0
  %1611 = vmatprep.subr.mxu0 0.0
  %1612 = vmatpush1.msra.mxu0 0.0
  %1613 = vmatprep.subr.mxu0 0.0
  %1614 = vmatpush1.msra.mxu0 0.0
  %1615 = vmatprep.subr.mxu0 0.0
  %1616 = vmatpush1.msra.mxu0 0.0
  %1617 = vmatprep.subr.mxu0 0.0
  %1618 = vmatpush1.msra.mxu0 0.0
  %1619 = vmatprep.subr.mxu0 0.0
  %1620 = vmatpush1.msra.mxu0 0.0
  %1621 = vmatprep.subr.mxu0 0.0
  %1622 = vmatpush1.msra.mxu0 0.0
  %1623 = vmatprep.subr.mxu0 0.0
  %1624 = vmatpush1.msra.mxu0 0.0
  %1625 = vmatprep.subr.mxu0 0.0
  %1626 = vmatpush1.msra.mxu0 0.0
  %1627 = vmatprep.subr.mxu0 0.0
  %1628 = vmatpush1.msra.mxu0 0.0
  %1629 = vmatprep.subr.mxu0 0.0
  %1630 = vmatpush1.msra.mxu0 0.0
  %1631 = vmatprep.subr.mxu0 0.0
  %1632 = vmatpush1.msra.mxu0 0.0
  %1633 = vmatprep.subr.mxu0 0.0
  %1634 = vmatpush1.msra.mxu0 0.0
  %1635 = vmatprep.mubr.f32.mxu0 0.0
  %1636 = vmatmul.mubr.f32.gmra.mrb[0].mxu0 %v1463
  %v1637 = vpop.f32.mrb[0].mxu0
  %v1638 = vadd.f32 0.0, %v1637
  %v1639 = vpop.f32.mrb[0].mxu0
  %1640 = vdwg.mxu0
  %v1641 = vadd.f32 %v1570, %v1638
  %v1642 = vxor.u32 %v1641, 2147483648
  %v1643 = vmul.f32 %v1642, 1.442695
  %v1644 = vpow.pop %v1643
  %v1645 = vadd.f32 %v1644, 1.0
  %v1646 = vrcp.pop %v1645
  %v1647 = vmul.f32 1.0, %v1646
  %v1648 = vtanh.pop %v1641
  %v1649 = vmul.f32 %v1647, %v1378
  %1651 = vrot.lane.b32.xlu0 %v1648, 32
  %v1652 = vpop.permute.xlu0 %1651
  %v1654 = vmul.f32 %v1647, %v1652
  %1656 = vrot.lane.b32.xlu0 %v1654, 32
  %v1657 = vpop.permute.xlu0 %1656
  %v1659 = vadd.f32 %v1649, %v1657
  %v1660 = vtanh.pop %v1659
  %1662 = vrot.lane.b32.xlu0 %v1660, 32
  %v1663 = vpop.permute.xlu0 %1662
  %v1665 = vmul.f32 %v1647, %v1663
  %1667 = vrot.lane.b32.xlu0 %v1559, 64
  %v1668 = vpop.permute.xlu0 %1667
  %v1669 = vsel %vm271, %v1668, 0
  %1671 = vmatprep.subr.mxu0 0.0
  %1672 = vmatpush1.msra.mxu0 %v419
  %1673 = vmatprep.subr.mxu0 0.0
  %1674 = vmatpush1.msra.mxu0 %v420
  %1675 = vmatprep.subr.mxu0 0.0
  %1676 = vmatpush1.msra.mxu0 %v421
  %1677 = vmatprep.subr.mxu0 0.0
  %1678 = vmatpush1.msra.mxu0 %v422
  %1679 = vmatprep.subr.mxu0 0.0
  %1680 = vmatpush1.msra.mxu0 0.0
  %1681 = vmatprep.subr.mxu0 0.0
  %1682 = vmatpush1.msra.mxu0 0.0
  %1683 = vmatprep.subr.mxu0 0.0
  %1684 = vmatpush1.msra.mxu0 0.0
  %1685 = vmatprep.subr.mxu0 0.0
  %1686 = vmatpush1.msra.mxu0 0.0
  %1687 = vmatprep.subr.mxu0 0.0
  %1688 = vmatpush1.msra.mxu0 0.0
  %1689 = vmatprep.subr.mxu0 0.0
  %1690 = vmatpush1.msra.mxu0 0.0
  %1691 = vmatprep.subr.mxu0 0.0
  %1692 = vmatpush1.msra.mxu0 0.0
  %1693 = vmatprep.subr.mxu0 0.0
  %1694 = vmatpush1.msra.mxu0 0.0
  %1695 = vmatprep.subr.mxu0 0.0
  %1696 = vmatpush1.msra.mxu0 0.0
  %1697 = vmatprep.subr.mxu0 0.0
  %1698 = vmatpush1.msra.mxu0 0.0
  %1699 = vmatprep.subr.mxu0 0.0
  %1700 = vmatpush1.msra.mxu0 0.0
  %1701 = vmatprep.subr.mxu0 0.0
  %1702 = vmatpush1.msra.mxu0 0.0
  %1703 = vmatprep.subr.mxu0 0.0
  %1704 = vmatpush1.msra.mxu0 0.0
  %1705 = vmatprep.subr.mxu0 0.0
  %1706 = vmatpush1.msra.mxu0 0.0
  %1707 = vmatprep.subr.mxu0 0.0
  %1708 = vmatpush1.msra.mxu0 0.0
  %1709 = vmatprep.subr.mxu0 0.0
  %1710 = vmatpush1.msra.mxu0 0.0
  %1711 = vmatprep.subr.mxu0 0.0
  %1712 = vmatpush1.msra.mxu0 0.0
  %1713 = vmatprep.subr.mxu0 0.0
  %1714 = vmatpush1.msra.mxu0 0.0
  %1715 = vmatprep.subr.mxu0 0.0
  %1716 = vmatpush1.msra.mxu0 0.0
  %1717 = vmatprep.subr.mxu0 0.0
  %1718 = vmatpush1.msra.mxu0 0.0
  %1719 = vmatprep.subr.mxu0 0.0
  %1720 = vmatpush1.msra.mxu0 0.0
  %1721 = vmatprep.subr.mxu0 0.0
  %1722 = vmatpush1.msra.mxu0 0.0
  %1723 = vmatprep.subr.mxu0 0.0
  %1724 = vmatpush1.msra.mxu0 0.0
  %1725 = vmatprep.subr.mxu0 0.0
  %1726 = vmatpush1.msra.mxu0 0.0
  %1727 = vmatprep.subr.mxu0 0.0
  %1728 = vmatpush1.msra.mxu0 0.0
  %1729 = vmatprep.subr.mxu0 0.0
  %1730 = vmatpush1.msra.mxu0 0.0
  %1731 = vmatprep.subr.mxu0 0.0
  %1732 = vmatpush1.msra.mxu0 0.0
  %1733 = vmatprep.subr.mxu0 0.0
  %1734 = vmatpush1.msra.mxu0 0.0
  %1735 = vmatprep.mubr.f32.mxu0 0.0
  %1736 = vmatmul.mubr.f32.gmra.mrb[0].mxu0 %v1669
  %v1737 = vpop.f32.mrb[0].mxu0
  %v1738 = vadd.f32 0.0, %v1737
  %v1739 = vpop.f32.mrb[0].mxu0
  %1740 = vdwg.mxu0
  %1742 = vrot.lane.b32.xlu0 %v1665, 64
  %v1743 = vpop.permute.xlu0 %1742
  %v1744 = vsel %vm271, %v1743, 0
  %1746 = vmatprep.subr.mxu0 0.0
  %1747 = vmatpush1.msra.mxu0 %v410
  %1748 = vmatprep.subr.mxu0 0.0
  %1749 = vmatpush1.msra.mxu0 %v411
  %1750 = vmatprep.subr.mxu0 0.0
  %1751 = vmatpush1.msra.mxu0 %v412
  %1752 = vmatprep.subr.mxu0 0.0
  %1753 = vmatpush1.msra.mxu0 %v413
  %1754 = vmatprep.subr.mxu0 0.0
  %1755 = vmatpush1.msra.mxu0 0.0
  %1756 = vmatprep.subr.mxu0 0.0
  %1757 = vmatpush1.msra.mxu0 0.0
  %1758 = vmatprep.subr.mxu0 0.0
  %1759 = vmatpush1.msra.mxu0 0.0
  %1760 = vmatprep.subr.mxu0 0.0
  %1761 = vmatpush1.msra.mxu0 0.0
  %1762 = vmatprep.subr.mxu0 0.0
  %1763 = vmatpush1.msra.mxu0 0.0
  %1764 = vmatprep.subr.mxu0 0.0
  %1765 = vmatpush1.msra.mxu0 0.0
  %1766 = vmatprep.subr.mxu0 0.0
  %1767 = vmatpush1.msra.mxu0 0.0
  %1768 = vmatprep.subr.mxu0 0.0
  %1769 = vmatpush1.msra.mxu0 0.0
  %1770 = vmatprep.subr.mxu0 0.0
  %1771 = vmatpush1.msra.mxu0 0.0
  %1772 = vmatprep.subr.mxu0 0.0
  %1773 = vmatpush1.msra.mxu0 0.0
  %1774 = vmatprep.subr.mxu0 0.0
  %1775 = vmatpush1.msra.mxu0 0.0
  %1776 = vmatprep.subr.mxu0 0.0
  %1777 = vmatpush1.msra.mxu0 0.0
  %1778 = vmatprep.subr.mxu0 0.0
  %1779 = vmatpush1.msra.mxu0 0.0
  %1780 = vmatprep.subr.mxu0 0.0
  %1781 = vmatpush1.msra.mxu0 0.0
  %1782 = vmatprep.subr.mxu0 0.0
  %1783 = vmatpush1.msra.mxu0 0.0
  %1784 = vmatprep.subr.mxu0 0.0
  %1785 = vmatpush1.msra.mxu0 0.0
  %1786 = vmatprep.subr.mxu0 0.0
  %1787 = vmatpush1.msra.mxu0 0.0
  %1788 = vmatprep.subr.mxu0 0.0
  %1789 = vmatpush1.msra.mxu0 0.0
  %1790 = vmatprep.subr.mxu0 0.0
  %1791 = vmatpush1.msra.mxu0 0.0
  %1792 = vmatprep.subr.mxu0 0.0
  %1793 = vmatpush1.msra.mxu0 0.0
  %1794 = vmatprep.subr.mxu0 0.0
  %1795 = vmatpush1.msra.mxu0 0.0
  %1796 = vmatprep.subr.mxu0 0.0
  %1797 = vmatpush1.msra.mxu0 0.0
  %1798 = vmatprep.subr.mxu0 0.0
  %1799 = vmatpush1.msra.mxu0 0.0
  %1800 = vmatprep.subr.mxu0 0.0
  %1801 = vmatpush1.msra.mxu0 0.0
  %1802 = vmatprep.subr.mxu0 0.0
  %1803 = vmatpush1.msra.mxu0 0.0
  %1804 = vmatprep.subr.mxu0 0.0
  %1805 = vmatpush1.msra.mxu0 0.0
  %1806 = vmatprep.subr.mxu0 0.0
  %1807 = vmatpush1.msra.mxu0 0.0
  %1808 = vmatprep.subr.mxu0 0.0
  %1809 = vmatpush1.msra.mxu0 0.0
  %1810 = vmatprep.mubr.f32.mxu0 0.0
  %1811 = vmatmul.mubr.f32.gmra.mrb[0].mxu0 %v1744
  %v1812 = vpop.f32.mrb[0].mxu0
  %v1813 = vadd.f32 %v1738, %v1812
  %v1814 = vpop.f32.mrb[0].mxu0
  %1815 = vdwg.mxu0
  %v1816 = vadd.f32 %v1813, %v675
  %v1817 = vxor.u32 %v1816, 2147483648
  %v1818 = vmul.f32 %v1817, 1.442695
  %v1819 = vpow.pop %v1818
  %v1820 = vadd.f32 %v1819, 1.0
  %v1821 = vrcp.pop %v1820
  %v1822 = vmul.f32 1.0, %v1821
  %v1823 = vtanh.pop %v1816
  %v1824 = vmul.f32 %v1822, %v1553
  %1826 = vrot.lane.b32.xlu0 %v1823, 32
  %v1827 = vpop.permute.xlu0 %1826
  %v1829 = vmul.f32 %v1822, %v1827
  %1831 = vrot.lane.b32.xlu0 %v1829, 32
  %v1832 = vpop.permute.xlu0 %1831
  %v1834 = vadd.f32 %v1824, %v1832
  %v1835 = vtanh.pop %v1834
  %1837 = vrot.lane.b32.xlu0 %v1835, 32
  %v1838 = vpop.permute.xlu0 %1837
  %v1840 = vmul.f32 %v1822, %v1838
  %v1841 = vmul.f32 %v1840, %v708
  %1843 = vrot.lane.b32.xlu0 %v1841, 64
  %v1844 = vpop.permute.xlu0 %1843
  %v1846 = vsel %vm271, %v1844, 0.0
  %1847 = vadd.xlane.f32.xlu0 %v1846
  %v1848 = vpop.xlane.xlu0 %1847
  %v1849 = vadd.f32 %v1848, %v722
  %1850 = vst.msk [vmem:[%s10 + $0x20] sm:$0xff] %vm725, %v1849
  %v1851 = vld [vmem:[#allocation2 + $0x28] sm:$0xff]
  %1852 = vmatprep.subr.mxu0 0.0
  %1853 = vmatpush1.msra.mxu0 %v414
  %1854 = vmatprep.subr.mxu0 0.0
  %1855 = vmatpush1.msra.mxu0 %v415
  %1856 = vmatprep.subr.mxu0 0.0
  %1857 = vmatpush1.msra.mxu0 %v416
  %1858 = vmatprep.subr.mxu0 0.0
  %1859 = vmatpush1.msra.mxu0 %v417
  %1860 = vmatprep.subr.mxu0 0.0
  %1861 = vmatpush1.msra.mxu0 0.0
  %1862 = vmatprep.subr.mxu0 0.0
  %1863 = vmatpush1.msra.mxu0 0.0
  %1864 = vmatprep.subr.mxu0 0.0
  %1865 = vmatpush1.msra.mxu0 0.0
  %1866 = vmatprep.subr.mxu0 0.0
  %1867 = vmatpush1.msra.mxu0 0.0
  %1868 = vmatprep.subr.mxu0 0.0
  %1869 = vmatpush1.msra.mxu0 0.0
  %1870 = vmatprep.subr.mxu0 0.0
  %1871 = vmatpush1.msra.mxu0 0.0
  %1872 = vmatprep.subr.mxu0 0.0
  %1873 = vmatpush1.msra.mxu0 0.0
  %1874 = vmatprep.subr.mxu0 0.0
  %1875 = vmatpush1.msra.mxu0 0.0
  %1876 = vmatprep.subr.mxu0 0.0
  %1877 = vmatpush1.msra.mxu0 0.0
  %1878 = vmatprep.subr.mxu0 0.0
  %1879 = vmatpush1.msra.mxu0 0.0
  %1880 = vmatprep.subr.mxu0 0.0
  %1881 = vmatpush1.msra.mxu0 0.0
  %1882 = vmatprep.subr.mxu0 0.0
  %1883 = vmatpush1.msra.mxu0 0.0
  %1884 = vmatprep.subr.mxu0 0.0
  %1885 = vmatpush1.msra.mxu0 0.0
  %1886 = vmatprep.subr.mxu0 0.0
  %1887 = vmatpush1.msra.mxu0 0.0
  %1888 = vmatprep.subr.mxu0 0.0
  %1889 = vmatpush1.msra.mxu0 0.0
  %1890 = vmatprep.subr.mxu0 0.0
  %1891 = vmatpush1.msra.mxu0 0.0
  %1892 = vmatprep.subr.mxu0 0.0
  %1893 = vmatpush1.msra.mxu0 0.0
  %1894 = vmatprep.subr.mxu0 0.0
  %1895 = vmatpush1.msra.mxu0 0.0
  %1896 = vmatprep.subr.mxu0 0.0
  %1897 = vmatpush1.msra.mxu0 0.0
  %1898 = vmatprep.subr.mxu0 0.0
  %1899 = vmatpush1.msra.mxu0 0.0
  %1900 = vmatprep.subr.mxu0 0.0
  %1901 = vmatpush1.msra.mxu0 0.0
  %1902 = vmatprep.subr.mxu0 0.0
  %1903 = vmatpush1.msra.mxu0 0.0
  %1904 = vmatprep.subr.mxu0 0.0
  %1905 = vmatpush1.msra.mxu0 0.0
  %1906 = vmatprep.subr.mxu0 0.0
  %1907 = vmatpush1.msra.mxu0 0.0
  %1908 = vmatprep.subr.mxu0 0.0
  %1909 = vmatpush1.msra.mxu0 0.0
  %1910 = vmatprep.subr.mxu0 0.0
  %1911 = vmatpush1.msra.mxu0 0.0
  %1912 = vmatprep.subr.mxu0 0.0
  %1913 = vmatpush1.msra.mxu0 0.0
  %1914 = vmatprep.subr.mxu0 0.0
  %1915 = vmatpush1.msra.mxu0 0.0
  %1916 = vmatprep.mubr.f32.mxu0 0.0
  %1917 = vmatmul.mubr.f32.gmra.mrb[0].mxu0 %v1744
  %v1918 = vpop.f32.mrb[0].mxu0
  %v1919 = vadd.f32 0.0, %v1918
  %v1920 = vpop.f32.mrb[0].mxu0
  %1921 = vdwg.mxu0
  %v1922 = vadd.f32 %v1851, %v1919
  %v1923 = vxor.u32 %v1922, 2147483648
  %v1924 = vmul.f32 %v1923, 1.442695
  %v1925 = vpow.pop %v1924
  %v1926 = vadd.f32 %v1925, 1.0
  %v1927 = vrcp.pop %v1926
  %v1928 = vmul.f32 1.0, %v1927
  %v1929 = vtanh.pop %v1922
  %v1930 = vmul.f32 %v1928, %v1659
  %1932 = vrot.lane.b32.xlu0 %v1929, 32
  %v1933 = vpop.permute.xlu0 %1932
  %v1935 = vmul.f32 %v1928, %v1933
  %1937 = vrot.lane.b32.xlu0 %v1935, 32
  %v1938 = vpop.permute.xlu0 %1937
  %v1940 = vadd.f32 %v1930, %v1938
  %v1941 = vtanh.pop %v1940
  %1943 = vrot.lane.b32.xlu0 %v1941, 32
  %v1944 = vpop.permute.xlu0 %1943
  %v1946 = vmul.f32 %v1928, %v1944
  %1948 = vrot.lane.b32.xlu0 %v1840, 64
  %v1949 = vpop.permute.xlu0 %1948
  %v1950 = vsel %vm271, %v1949, 0
  %1952 = vmatprep.subr.mxu0 0.0
  %1953 = vmatpush1.msra.mxu0 %v419
  %1954 = vmatprep.subr.mxu0 0.0
  %1955 = vmatpush1.msra.mxu0 %v420
  %1956 = vmatprep.subr.mxu0 0.0
  %1957 = vmatpush1.msra.mxu0 %v421
  %1958 = vmatprep.subr.mxu0 0.0
  %1959 = vmatpush1.msra.mxu0 %v422
  %1960 = vmatprep.subr.mxu0 0.0
  %1961 = vmatpush1.msra.mxu0 0.0
  %1962 = vmatprep.subr.mxu0 0.0
  %1963 = vmatpush1.msra.mxu0 0.0
  %1964 = vmatprep.subr.mxu0 0.0
  %1965 = vmatpush1.msra.mxu0 0.0
  %1966 = vmatprep.subr.mxu0 0.0
  %1967 = vmatpush1.msra.mxu0 0.0
  %1968 = vmatprep.subr.mxu0 0.0
  %1969 = vmatpush1.msra.mxu0 0.0
  %1970 = vmatprep.subr.mxu0 0.0
  %1971 = vmatpush1.msra.mxu0 0.0
  %1972 = vmatprep.subr.mxu0 0.0
  %1973 = vmatpush1.msra.mxu0 0.0
  %1974 = vmatprep.subr.mxu0 0.0
  %1975 = vmatpush1.msra.mxu0 0.0
  %1976 = vmatprep.subr.mxu0 0.0
  %1977 = vmatpush1.msra.mxu0 0.0
  %1978 = vmatprep.subr.mxu0 0.0
  %1979 = vmatpush1.msra.mxu0 0.0
  %1980 = vmatprep.subr.mxu0 0.0
  %1981 = vmatpush1.msra.mxu0 0.0
  %1982 = vmatprep.subr.mxu0 0.0
  %1983 = vmatpush1.msra.mxu0 0.0
  %1984 = vmatprep.subr.mxu0 0.0
  %1985 = vmatpush1.msra.mxu0 0.0
  %1986 = vmatprep.subr.mxu0 0.0
  %1987 = vmatpush1.msra.mxu0 0.0
  %1988 = vmatprep.subr.mxu0 0.0
  %1989 = vmatpush1.msra.mxu0 0.0
  %1990 = vmatprep.subr.mxu0 0.0
  %1991 = vmatpush1.msra.mxu0 0.0
  %1992 = vmatprep.subr.mxu0 0.0
  %1993 = vmatpush1.msra.mxu0 0.0
  %1994 = vmatprep.subr.mxu0 0.0
  %1995 = vmatpush1.msra.mxu0 0.0
  %1996 = vmatprep.subr.mxu0 0.0
  %1997 = vmatpush1.msra.mxu0 0.0
  %1998 = vmatprep.subr.mxu0 0.0
  %1999 = vmatpush1.msra.mxu0 0.0
  %2000 = vmatprep.subr.mxu0 0.0
  %2001 = vmatpush1.msra.mxu0 0.0
  %2002 = vmatprep.subr.mxu0 0.0
  %2003 = vmatpush1.msra.mxu0 0.0
  %2004 = vmatprep.subr.mxu0 0.0
  %2005 = vmatpush1.msra.mxu0 0.0
  %2006 = vmatprep.subr.mxu0 0.0
  %2007 = vmatpush1.msra.mxu0 0.0
  %2008 = vmatprep.subr.mxu0 0.0
  %2009 = vmatpush1.msra.mxu0 0.0
  %2010 = vmatprep.subr.mxu0 0.0
  %2011 = vmatpush1.msra.mxu0 0.0
  %2012 = vmatprep.subr.mxu0 0.0
  %2013 = vmatpush1.msra.mxu0 0.0
  %2014 = vmatprep.subr.mxu0 0.0
  %2015 = vmatpush1.msra.mxu0 0.0
  %2016 = vmatprep.mubr.f32.mxu0 0.0
  %2017 = vmatmul.mubr.f32.gmra.mrb[0].mxu0 %v1950
  %v2018 = vpop.f32.mrb[0].mxu0
  %v2019 = vadd.f32 0.0, %v2018
  %v2020 = vpop.f32.mrb[0].mxu0
  %2021 = vdwg.mxu0
  %2023 = vrot.lane.b32.xlu0 %v1946, 64
  %v2024 = vpop.permute.xlu0 %2023
  %v2025 = vsel %vm271, %v2024, 0
  %2027 = vmatprep.subr.mxu0 0.0
  %2028 = vmatpush1.msra.mxu0 %v410
  %2029 = vmatprep.subr.mxu0 0.0
  %2030 = vmatpush1.msra.mxu0 %v411
  %2031 = vmatprep.subr.mxu0 0.0
  %2032 = vmatpush1.msra.mxu0 %v412
  %2033 = vmatprep.subr.mxu0 0.0
  %2034 = vmatpush1.msra.mxu0 %v413
  %2035 = vmatprep.subr.mxu0 0.0
  %2036 = vmatpush1.msra.mxu0 0.0
  %2037 = vmatprep.subr.mxu0 0.0
  %2038 = vmatpush1.msra.mxu0 0.0
  %2039 = vmatprep.subr.mxu0 0.0
  %2040 = vmatpush1.msra.mxu0 0.0
  %2041 = vmatprep.subr.mxu0 0.0
  %2042 = vmatpush1.msra.mxu0 0.0
  %2043 = vmatprep.subr.mxu0 0.0
  %2044 = vmatpush1.msra.mxu0 0.0
  %2045 = vmatprep.subr.mxu0 0.0
  %2046 = vmatpush1.msra.mxu0 0.0
  %2047 = vmatprep.subr.mxu0 0.0
  %2048 = vmatpush1.msra.mxu0 0.0
  %2049 = vmatprep.subr.mxu0 0.0
  %2050 = vmatpush1.msra.mxu0 0.0
  %2051 = vmatprep.subr.mxu0 0.0
  %2052 = vmatpush1.msra.mxu0 0.0
  %2053 = vmatprep.subr.mxu0 0.0
  %2054 = vmatpush1.msra.mxu0 0.0
  %2055 = vmatprep.subr.mxu0 0.0
  %2056 = vmatpush1.msra.mxu0 0.0
  %2057 = vmatprep.subr.mxu0 0.0
  %2058 = vmatpush1.msra.mxu0 0.0
  %2059 = vmatprep.subr.mxu0 0.0
  %2060 = vmatpush1.msra.mxu0 0.0
  %2061 = vmatprep.subr.mxu0 0.0
  %2062 = vmatpush1.msra.mxu0 0.0
  %2063 = vmatprep.subr.mxu0 0.0
  %2064 = vmatpush1.msra.mxu0 0.0
  %2065 = vmatprep.subr.mxu0 0.0
  %2066 = vmatpush1.msra.mxu0 0.0
  %2067 = vmatprep.subr.mxu0 0.0
  %2068 = vmatpush1.msra.mxu0 0.0
  %2069 = vmatprep.subr.mxu0 0.0
  %2070 = vmatpush1.msra.mxu0 0.0
  %2071 = vmatprep.subr.mxu0 0.0
  %2072 = vmatpush1.msra.mxu0 0.0
  %2073 = vmatprep.subr.mxu0 0.0
  %2074 = vmatpush1.msra.mxu0 0.0
  %2075 = vmatprep.subr.mxu0 0.0
  %2076 = vmatpush1.msra.mxu0 0.0
  %2077 = vmatprep.subr.mxu0 0.0
  %2078 = vmatpush1.msra.mxu0 0.0
  %2079 = vmatprep.subr.mxu0 0.0
  %2080 = vmatpush1.msra.mxu0 0.0
  %2081 = vmatprep.subr.mxu0 0.0
  %2082 = vmatpush1.msra.mxu0 0.0
  %2083 = vmatprep.subr.mxu0 0.0
  %2084 = vmatpush1.msra.mxu0 0.0
  %2085 = vmatprep.subr.mxu0 0.0
  %2086 = vmatpush1.msra.mxu0 0.0
  %2087 = vmatprep.subr.mxu0 0.0
  %2088 = vmatpush1.msra.mxu0 0.0
  %2089 = vmatprep.subr.mxu0 0.0
  %2090 = vmatpush1.msra.mxu0 0.0
  %2091 = vmatprep.mubr.f32.mxu0 0.0
  %2092 = vmatmul.mubr.f32.gmra.mrb[0].mxu0 %v2025
  %v2093 = vpop.f32.mrb[0].mxu0
  %v2094 = vadd.f32 %v2019, %v2093
  %v2095 = vpop.f32.mrb[0].mxu0
  %2096 = vdwg.mxu0
  %v2097 = vadd.f32 %v2094, %v675
  %v2098 = vxor.u32 %v2097, 2147483648
  %v2099 = vmul.f32 %v2098, 1.442695
  %v2100 = vpow.pop %v2099
  %v2101 = vadd.f32 %v2100, 1.0
  %v2102 = vrcp.pop %v2101
  %v2103 = vmul.f32 1.0, %v2102
  %v2104 = vtanh.pop %v2097
  %v2105 = vmul.f32 %v2103, %v1834
  %2107 = vrot.lane.b32.xlu0 %v2104, 32
  %v2108 = vpop.permute.xlu0 %2107
  %v2110 = vmul.f32 %v2103, %v2108
  %2112 = vrot.lane.b32.xlu0 %v2110, 32
  %v2113 = vpop.permute.xlu0 %2112
  %v2115 = vadd.f32 %v2105, %v2113
  %v2116 = vtanh.pop %v2115
  %2118 = vrot.lane.b32.xlu0 %v2116, 32
  %v2119 = vpop.permute.xlu0 %2118
  %v2121 = vmul.f32 %v2103, %v2119
  %v2122 = vmul.f32 %v2121, %v708
  %2124 = vrot.lane.b32.xlu0 %v2122, 64
  %v2125 = vpop.permute.xlu0 %2124
  %v2127 = vsel %vm271, %v2125, 0.0
  %2128 = vadd.xlane.f32.xlu0 %v2127
  %v2129 = vpop.xlane.xlu0 %2128
  %v2130 = vadd.f32 %v2129, %v722
  %2131 = vst.msk [vmem:[%s10 + $0x28] sm:$0xff] %vm725, %v2130
  %v2132 = vld [vmem:[#allocation2 + $0x30] sm:$0xff]
  %2133 = vmatprep.subr.mxu0 0.0
  %2134 = vmatpush1.msra.mxu0 %v414
  %2135 = vmatprep.subr.mxu0 0.0
  %2136 = vmatpush1.msra.mxu0 %v415
  %2137 = vmatprep.subr.mxu0 0.0
  %2138 = vmatpush1.msra.mxu0 %v416
  %2139 = vmatprep.subr.mxu0 0.0
  %2140 = vmatpush1.msra.mxu0 %v417
  %2141 = vmatprep.subr.mxu0 0.0
  %2142 = vmatpush1.msra.mxu0 0.0
  %2143 = vmatprep.subr.mxu0 0.0
  %2144 = vmatpush1.msra.mxu0 0.0
  %2145 = vmatprep.subr.mxu0 0.0
  %2146 = vmatpush1.msra.mxu0 0.0
  %2147 = vmatprep.subr.mxu0 0.0
  %2148 = vmatpush1.msra.mxu0 0.0
  %2149 = vmatprep.subr.mxu0 0.0
  %2150 = vmatpush1.msra.mxu0 0.0
  %2151 = vmatprep.subr.mxu0 0.0
  %2152 = vmatpush1.msra.mxu0 0.0
  %2153 = vmatprep.subr.mxu0 0.0
  %2154 = vmatpush1.msra.mxu0 0.0
  %2155 = vmatprep.subr.mxu0 0.0
  %2156 = vmatpush1.msra.mxu0 0.0
  %2157 = vmatprep.subr.mxu0 0.0
  %2158 = vmatpush1.msra.mxu0 0.0
  %2159 = vmatprep.subr.mxu0 0.0
  %2160 = vmatpush1.msra.mxu0 0.0
  %2161 = vmatprep.subr.mxu0 0.0
  %2162 = vmatpush1.msra.mxu0 0.0
  %2163 = vmatprep.subr.mxu0 0.0
  %2164 = vmatpush1.msra.mxu0 0.0
  %2165 = vmatprep.subr.mxu0 0.0
  %2166 = vmatpush1.msra.mxu0 0.0
  %2167 = vmatprep.subr.mxu0 0.0
  %2168 = vmatpush1.msra.mxu0 0.0
  %2169 = vmatprep.subr.mxu0 0.0
  %2170 = vmatpush1.msra.mxu0 0.0
  %2171 = vmatprep.subr.mxu0 0.0
  %2172 = vmatpush1.msra.mxu0 0.0
  %2173 = vmatprep.subr.mxu0 0.0
  %2174 = vmatpush1.msra.mxu0 0.0
  %2175 = vmatprep.subr.mxu0 0.0
  %2176 = vmatpush1.msra.mxu0 0.0
  %2177 = vmatprep.subr.mxu0 0.0
  %2178 = vmatpush1.msra.mxu0 0.0
  %2179 = vmatprep.subr.mxu0 0.0
  %2180 = vmatpush1.msra.mxu0 0.0
  %2181 = vmatprep.subr.mxu0 0.0
  %2182 = vmatpush1.msra.mxu0 0.0
  %2183 = vmatprep.subr.mxu0 0.0
  %2184 = vmatpush1.msra.mxu0 0.0
  %2185 = vmatprep.subr.mxu0 0.0
  %2186 = vmatpush1.msra.mxu0 0.0
  %2187 = vmatprep.subr.mxu0 0.0
  %2188 = vmatpush1.msra.mxu0 0.0
  %2189 = vmatprep.subr.mxu0 0.0
  %2190 = vmatpush1.msra.mxu0 0.0
  %2191 = vmatprep.subr.mxu0 0.0
  %2192 = vmatpush1.msra.mxu0 0.0
  %2193 = vmatprep.subr.mxu0 0.0
  %2194 = vmatpush1.msra.mxu0 0.0
  %2195 = vmatprep.subr.mxu0 0.0
  %2196 = vmatpush1.msra.mxu0 0.0
  %2197 = vmatprep.mubr.f32.mxu0 0.0
  %2198 = vmatmul.mubr.f32.gmra.mrb[0].mxu0 %v2025
  %v2199 = vpop.f32.mrb[0].mxu0
  %v2200 = vadd.f32 0.0, %v2199
  %v2201 = vpop.f32.mrb[0].mxu0
  %2202 = vdwg.mxu0
  %v2203 = vadd.f32 %v2132, %v2200
  %v2204 = vxor.u32 %v2203, 2147483648
  %v2205 = vmul.f32 %v2204, 1.442695
  %v2206 = vpow.pop %v2205
  %v2207 = vadd.f32 %v2206, 1.0
  %v2208 = vrcp.pop %v2207
  %v2209 = vmul.f32 1.0, %v2208
  %v2210 = vtanh.pop %v2203
  %v2211 = vmul.f32 %v2209, %v1940
  %2213 = vrot.lane.b32.xlu0 %v2210, 32
  %v2214 = vpop.permute.xlu0 %2213
  %v2216 = vmul.f32 %v2209, %v2214
  %2218 = vrot.lane.b32.xlu0 %v2216, 32
  %v2219 = vpop.permute.xlu0 %2218
  %v2221 = vadd.f32 %v2211, %v2219
  %v2222 = vtanh.pop %v2221
  %2224 = vrot.lane.b32.xlu0 %v2222, 32
  %v2225 = vpop.permute.xlu0 %2224
  %v2227 = vmul.f32 %v2209, %v2225
  %2229 = vrot.lane.b32.xlu0 %v2121, 64
  %v2230 = vpop.permute.xlu0 %2229
  %v2231 = vsel %vm271, %v2230, 0
  %2233 = vmatprep.subr.mxu0 0.0
  %2234 = vmatpush1.msra.mxu0 %v419
  %2235 = vmatprep.subr.mxu0 0.0
  %2236 = vmatpush1.msra.mxu0 %v420
  %2237 = vmatprep.subr.mxu0 0.0
  %2238 = vmatpush1.msra.mxu0 %v421
  %2239 = vmatprep.subr.mxu0 0.0
  %2240 = vmatpush1.msra.mxu0 %v422
  %2241 = vmatprep.subr.mxu0 0.0
  %2242 = vmatpush1.msra.mxu0 0.0
  %2243 = vmatprep.subr.mxu0 0.0
  %2244 = vmatpush1.msra.mxu0 0.0
  %2245 = vmatprep.subr.mxu0 0.0
  %2246 = vmatpush1.msra.mxu0 0.0
  %2247 = vmatprep.subr.mxu0 0.0
  %2248 = vmatpush1.msra.mxu0 0.0
  %2249 = vmatprep.subr.mxu0 0.0
  %2250 = vmatpush1.msra.mxu0 0.0
  %2251 = vmatprep.subr.mxu0 0.0
  %2252 = vmatpush1.msra.mxu0 0.0
  %2253 = vmatprep.subr.mxu0 0.0
  %2254 = vmatpush1.msra.mxu0 0.0
  %2255 = vmatprep.subr.mxu0 0.0
  %2256 = vmatpush1.msra.mxu0 0.0
  %2257 = vmatprep.subr.mxu0 0.0
  %2258 = vmatpush1.msra.mxu0 0.0
  %2259 = vmatprep.subr.mxu0 0.0
  %2260 = vmatpush1.msra.mxu0 0.0
  %2261 = vmatprep.subr.mxu0 0.0
  %2262 = vmatpush1.msra.mxu0 0.0
  %2263 = vmatprep.subr.mxu0 0.0
  %2264 = vmatpush1.msra.mxu0 0.0
  %2265 = vmatprep.subr.mxu0 0.0
  %2266 = vmatpush1.msra.mxu0 0.0
  %2267 = vmatprep.subr.mxu0 0.0
  %2268 = vmatpush1.msra.mxu0 0.0
  %2269 = vmatprep.subr.mxu0 0.0
  %2270 = vmatpush1.msra.mxu0 0.0
  %2271 = vmatprep.subr.mxu0 0.0
  %2272 = vmatpush1.msra.mxu0 0.0
  %2273 = vmatprep.subr.mxu0 0.0
  %2274 = vmatpush1.msra.mxu0 0.0
  %2275 = vmatprep.subr.mxu0 0.0
  %2276 = vmatpush1.msra.mxu0 0.0
  %2277 = vmatprep.subr.mxu0 0.0
  %2278 = vmatpush1.msra.mxu0 0.0
  %2279 = vmatprep.subr.mxu0 0.0
  %2280 = vmatpush1.msra.mxu0 0.0
  %2281 = vmatprep.subr.mxu0 0.0
  %2282 = vmatpush1.msra.mxu0 0.0
  %2283 = vmatprep.subr.mxu0 0.0
  %2284 = vmatpush1.msra.mxu0 0.0
  %2285 = vmatprep.subr.mxu0 0.0
  %2286 = vmatpush1.msra.mxu0 0.0
  %2287 = vmatprep.subr.mxu0 0.0
  %2288 = vmatpush1.msra.mxu0 0.0
  %2289 = vmatprep.subr.mxu0 0.0
  %2290 = vmatpush1.msra.mxu0 0.0
  %2291 = vmatprep.subr.mxu0 0.0
  %2292 = vmatpush1.msra.mxu0 0.0
  %2293 = vmatprep.subr.mxu0 0.0
  %2294 = vmatpush1.msra.mxu0 0.0
  %2295 = vmatprep.subr.mxu0 0.0
  %2296 = vmatpush1.msra.mxu0 0.0
  %2297 = vmatprep.mubr.f32.mxu0 0.0
  %2298 = vmatmul.mubr.f32.gmra.mrb[0].mxu0 %v2231
  %v2299 = vpop.f32.mrb[0].mxu0
  %v2300 = vadd.f32 0.0, %v2299
  %v2301 = vpop.f32.mrb[0].mxu0
  %2302 = vdwg.mxu0
  %2304 = vrot.lane.b32.xlu0 %v2227, 64
  %v2305 = vpop.permute.xlu0 %2304
  %v2306 = vsel %vm271, %v2305, 0
  %2308 = vmatprep.subr.mxu0 0.0
  %2309 = vmatpush1.msra.mxu0 %v410
  %2310 = vmatprep.subr.mxu0 0.0
  %2311 = vmatpush1.msra.mxu0 %v411
  %2312 = vmatprep.subr.mxu0 0.0
  %2313 = vmatpush1.msra.mxu0 %v412
  %2314 = vmatprep.subr.mxu0 0.0
  %2315 = vmatpush1.msra.mxu0 %v413
  %2316 = vmatprep.subr.mxu0 0.0
  %2317 = vmatpush1.msra.mxu0 0.0
  %2318 = vmatprep.subr.mxu0 0.0
  %2319 = vmatpush1.msra.mxu0 0.0
  %2320 = vmatprep.subr.mxu0 0.0
  %2321 = vmatpush1.msra.mxu0 0.0
  %2322 = vmatprep.subr.mxu0 0.0
  %2323 = vmatpush1.msra.mxu0 0.0
  %2324 = vmatprep.subr.mxu0 0.0
  %2325 = vmatpush1.msra.mxu0 0.0
  %2326 = vmatprep.subr.mxu0 0.0
  %2327 = vmatpush1.msra.mxu0 0.0
  %2328 = vmatprep.subr.mxu0 0.0
  %2329 = vmatpush1.msra.mxu0 0.0
  %2330 = vmatprep.subr.mxu0 0.0
  %2331 = vmatpush1.msra.mxu0 0.0
  %2332 = vmatprep.subr.mxu0 0.0
  %2333 = vmatpush1.msra.mxu0 0.0
  %2334 = vmatprep.subr.mxu0 0.0
  %2335 = vmatpush1.msra.mxu0 0.0
  %2336 = vmatprep.subr.mxu0 0.0
  %2337 = vmatpush1.msra.mxu0 0.0
  %2338 = vmatprep.subr.mxu0 0.0
  %2339 = vmatpush1.msra.mxu0 0.0
  %2340 = vmatprep.subr.mxu0 0.0
  %2341 = vmatpush1.msra.mxu0 0.0
  %2342 = vmatprep.subr.mxu0 0.0
  %2343 = vmatpush1.msra.mxu0 0.0
  %2344 = vmatprep.subr.mxu0 0.0
  %2345 = vmatpush1.msra.mxu0 0.0
  %2346 = vmatprep.subr.mxu0 0.0
  %2347 = vmatpush1.msra.mxu0 0.0
  %2348 = vmatprep.subr.mxu0 0.0
  %2349 = vmatpush1.msra.mxu0 0.0
  %2350 = vmatprep.subr.mxu0 0.0
  %2351 = vmatpush1.msra.mxu0 0.0
  %2352 = vmatprep.subr.mxu0 0.0
  %2353 = vmatpush1.msra.mxu0 0.0
  %2354 = vmatprep.subr.mxu0 0.0
  %2355 = vmatpush1.msra.mxu0 0.0
  %2356 = vmatprep.subr.mxu0 0.0
  %2357 = vmatpush1.msra.mxu0 0.0
  %2358 = vmatprep.subr.mxu0 0.0
  %2359 = vmatpush1.msra.mxu0 0.0
  %2360 = vmatprep.subr.mxu0 0.0
  %2361 = vmatpush1.msra.mxu0 0.0
  %2362 = vmatprep.subr.mxu0 0.0
  %2363 = vmatpush1.msra.mxu0 0.0
  %2364 = vmatprep.subr.mxu0 0.0
  %2365 = vmatpush1.msra.mxu0 0.0
  %2366 = vmatprep.subr.mxu0 0.0
  %2367 = vmatpush1.msra.mxu0 0.0
  %2368 = vmatprep.subr.mxu0 0.0
  %2369 = vmatpush1.msra.mxu0 0.0
  %2370 = vmatprep.subr.mxu0 0.0
  %2371 = vmatpush1.msra.mxu0 0.0
  %2372 = vmatprep.mubr.f32.mxu0 0.0
  %2373 = vmatmul.mubr.f32.gmra.mrb[0].mxu0 %v2306
  %v2374 = vpop.f32.mrb[0].mxu0
  %v2375 = vadd.f32 %v2300, %v2374
  %v2376 = vpop.f32.mrb[0].mxu0
  %2377 = vdwg.mxu0
  %v2378 = vadd.f32 %v2375, %v675
  %v2379 = vxor.u32 %v2378, 2147483648
  %v2380 = vmul.f32 %v2379, 1.442695
  %v2381 = vpow.pop %v2380
  %v2382 = vadd.f32 %v2381, 1.0
  %v2383 = vrcp.pop %v2382
  %v2384 = vmul.f32 1.0, %v2383
  %v2385 = vtanh.pop %v2378
  %v2386 = vmul.f32 %v2384, %v2115
  %2388 = vrot.lane.b32.xlu0 %v2385, 32
  %v2389 = vpop.permute.xlu0 %2388
  %v2391 = vmul.f32 %v2384, %v2389
  %2393 = vrot.lane.b32.xlu0 %v2391, 32
  %v2394 = vpop.permute.xlu0 %2393
  %v2396 = vadd.f32 %v2386, %v2394
  %v2397 = vtanh.pop %v2396
  %2399 = vrot.lane.b32.xlu0 %v2397, 32
  %v2400 = vpop.permute.xlu0 %2399
  %v2402 = vmul.f32 %v2384, %v2400
  %v2403 = vmul.f32 %v2402, %v708
  %2405 = vrot.lane.b32.xlu0 %v2403, 64
  %v2406 = vpop.permute.xlu0 %2405
  %v2408 = vsel %vm271, %v2406, 0.0
  %2409 = vadd.xlane.f32.xlu0 %v2408
  %v2410 = vpop.xlane.xlu0 %2409
  %v2411 = vadd.f32 %v2410, %v722
  %2412 = vst.msk [vmem:[%s10 + $0x30] sm:$0xff] %vm725, %v2411
  %v2413 = vld [vmem:[#allocation2 + $0x38] sm:$0xff]
  %2414 = vmatprep.subr.mxu0 0.0
  %2415 = vmatpush1.msra.mxu0 %v414
  %2416 = vmatprep.subr.mxu0 0.0
  %2417 = vmatpush1.msra.mxu0 %v415
  %2418 = vmatprep.subr.mxu0 0.0
  %2419 = vmatpush1.msra.mxu0 %v416
  %2420 = vmatprep.subr.mxu0 0.0
  %2421 = vmatpush1.msra.mxu0 %v417
  %2422 = vmatprep.subr.mxu0 0.0
  %2423 = vmatpush1.msra.mxu0 0.0
  %2424 = vmatprep.subr.mxu0 0.0
  %2425 = vmatpush1.msra.mxu0 0.0
  %2426 = vmatprep.subr.mxu0 0.0
  %2427 = vmatpush1.msra.mxu0 0.0
  %2428 = vmatprep.subr.mxu0 0.0
  %2429 = vmatpush1.msra.mxu0 0.0
  %2430 = vmatprep.subr.mxu0 0.0
  %2431 = vmatpush1.msra.mxu0 0.0
  %2432 = vmatprep.subr.mxu0 0.0
  %2433 = vmatpush1.msra.mxu0 0.0
  %2434 = vmatprep.subr.mxu0 0.0
  %2435 = vmatpush1.msra.mxu0 0.0
  %2436 = vmatprep.subr.mxu0 0.0
  %2437 = vmatpush1.msra.mxu0 0.0
  %2438 = vmatprep.subr.mxu0 0.0
  %2439 = vmatpush1.msra.mxu0 0.0
  %2440 = vmatprep.subr.mxu0 0.0
  %2441 = vmatpush1.msra.mxu0 0.0
  %2442 = vmatprep.subr.mxu0 0.0
  %2443 = vmatpush1.msra.mxu0 0.0
  %2444 = vmatprep.subr.mxu0 0.0
  %2445 = vmatpush1.msra.mxu0 0.0
  %2446 = vmatprep.subr.mxu0 0.0
  %2447 = vmatpush1.msra.mxu0 0.0
  %2448 = vmatprep.subr.mxu0 0.0
  %2449 = vmatpush1.msra.mxu0 0.0
  %2450 = vmatprep.subr.mxu0 0.0
  %2451 = vmatpush1.msra.mxu0 0.0
  %2452 = vmatprep.subr.mxu0 0.0
  %2453 = vmatpush1.msra.mxu0 0.0
  %2454 = vmatprep.subr.mxu0 0.0
  %2455 = vmatpush1.msra.mxu0 0.0
  %2456 = vmatprep.subr.mxu0 0.0
  %2457 = vmatpush1.msra.mxu0 0.0
  %2458 = vmatprep.subr.mxu0 0.0
  %2459 = vmatpush1.msra.mxu0 0.0
  %2460 = vmatprep.subr.mxu0 0.0
  %2461 = vmatpush1.msra.mxu0 0.0
  %2462 = vmatprep.subr.mxu0 0.0
  %2463 = vmatpush1.msra.mxu0 0.0
  %2464 = vmatprep.subr.mxu0 0.0
  %2465 = vmatpush1.msra.mxu0 0.0
  %2466 = vmatprep.subr.mxu0 0.0
  %2467 = vmatpush1.msra.mxu0 0.0
  %2468 = vmatprep.subr.mxu0 0.0
  %2469 = vmatpush1.msra.mxu0 0.0
  %2470 = vmatprep.subr.mxu0 0.0
  %2471 = vmatpush1.msra.mxu0 0.0
  %2472 = vmatprep.subr.mxu0 0.0
  %2473 = vmatpush1.msra.mxu0 0.0
  %2474 = vmatprep.subr.mxu0 0.0
  %2475 = vmatpush1.msra.mxu0 0.0
  %2476 = vmatprep.subr.mxu0 0.0
  %2477 = vmatpush1.msra.mxu0 0.0
  %2478 = vmatprep.mubr.f32.mxu0 0.0
  %2479 = vmatmul.mubr.f32.gmra.mrb[0].mxu0 %v2306
  %v2480 = vpop.f32.mrb[0].mxu0
  %v2481 = vadd.f32 0.0, %v2480
  %v2482 = vpop.f32.mrb[0].mxu0
  %2483 = vdwg.mxu0
  %v2484 = vadd.f32 %v2413, %v2481
  %v2485 = vxor.u32 %v2484, 2147483648
  %v2486 = vmul.f32 %v2485, 1.442695
  %v2487 = vpow.pop %v2486
  %v2488 = vadd.f32 %v2487, 1.0
  %v2489 = vrcp.pop %v2488
  %v2490 = vmul.f32 1.0, %v2489
  %v2491 = vtanh.pop %v2484
  %v2492 = vmul.f32 %v2490, %v2221
  %2494 = vrot.lane.b32.xlu0 %v2491, 32
  %v2495 = vpop.permute.xlu0 %2494
  %v2497 = vmul.f32 %v2490, %v2495
  %2499 = vrot.lane.b32.xlu0 %v2497, 32
  %v2500 = vpop.permute.xlu0 %2499
  %v2502 = vadd.f32 %v2492, %v2500
  %v2503 = vtanh.pop %v2502
  %2505 = vrot.lane.b32.xlu0 %v2503, 32
  %v2506 = vpop.permute.xlu0 %2505
  %v2508 = vmul.f32 %v2490, %v2506
  %2510 = vrot.lane.b32.xlu0 %v2402, 64
  %v2511 = vpop.permute.xlu0 %2510
  %v2512 = vsel %vm271, %v2511, 0
  %2514 = vmatprep.subr.mxu0 0.0
  %2515 = vmatpush1.msra.mxu0 %v419
  %2516 = vmatprep.subr.mxu0 0.0
  %2517 = vmatpush1.msra.mxu0 %v420
  %2518 = vmatprep.subr.mxu0 0.0
  %2519 = vmatpush1.msra.mxu0 %v421
  %2520 = vmatprep.subr.mxu0 0.0
  %2521 = vmatpush1.msra.mxu0 %v422
  %2522 = vmatprep.subr.mxu0 0.0
  %2523 = vmatpush1.msra.mxu0 0.0
  %2524 = vmatprep.subr.mxu0 0.0
  %2525 = vmatpush1.msra.mxu0 0.0
  %2526 = vmatprep.subr.mxu0 0.0
  %2527 = vmatpush1.msra.mxu0 0.0
  %2528 = vmatprep.subr.mxu0 0.0
  %2529 = vmatpush1.msra.mxu0 0.0
  %2530 = vmatprep.subr.mxu0 0.0
  %2531 = vmatpush1.msra.mxu0 0.0
  %2532 = vmatprep.subr.mxu0 0.0
  %2533 = vmatpush1.msra.mxu0 0.0
  %2534 = vmatprep.subr.mxu0 0.0
  %2535 = vmatpush1.msra.mxu0 0.0
  %2536 = vmatprep.subr.mxu0 0.0
  %2537 = vmatpush1.msra.mxu0 0.0
  %2538 = vmatprep.subr.mxu0 0.0
  %2539 = vmatpush1.msra.mxu0 0.0
  %2540 = vmatprep.subr.mxu0 0.0
  %2541 = vmatpush1.msra.mxu0 0.0
  %2542 = vmatprep.subr.mxu0 0.0
  %2543 = vmatpush1.msra.mxu0 0.0
  %2544 = vmatprep.subr.mxu0 0.0
  %2545 = vmatpush1.msra.mxu0 0.0
  %2546 = vmatprep.subr.mxu0 0.0
  %2547 = vmatpush1.msra.mxu0 0.0
  %2548 = vmatprep.subr.mxu0 0.0
  %2549 = vmatpush1.msra.mxu0 0.0
  %2550 = vmatprep.subr.mxu0 0.0
  %2551 = vmatpush1.msra.mxu0 0.0
  %2552 = vmatprep.subr.mxu0 0.0
  %2553 = vmatpush1.msra.mxu0 0.0
  %2554 = vmatprep.subr.mxu0 0.0
  %2555 = vmatpush1.msra.mxu0 0.0
  %2556 = vmatprep.subr.mxu0 0.0
  %2557 = vmatpush1.msra.mxu0 0.0
  %2558 = vmatprep.subr.mxu0 0.0
  %2559 = vmatpush1.msra.mxu0 0.0
  %2560 = vmatprep.subr.mxu0 0.0
  %2561 = vmatpush1.msra.mxu0 0.0
  %2562 = vmatprep.subr.mxu0 0.0
  %2563 = vmatpush1.msra.mxu0 0.0
  %2564 = vmatprep.subr.mxu0 0.0
  %2565 = vmatpush1.msra.mxu0 0.0
  %2566 = vmatprep.subr.mxu0 0.0
  %2567 = vmatpush1.msra.mxu0 0.0
  %2568 = vmatprep.subr.mxu0 0.0
  %2569 = vmatpush1.msra.mxu0 0.0
  %2570 = vmatprep.subr.mxu0 0.0
  %2571 = vmatpush1.msra.mxu0 0.0
  %2572 = vmatprep.subr.mxu0 0.0
  %2573 = vmatpush1.msra.mxu0 0.0
  %2574 = vmatprep.subr.mxu0 0.0
  %2575 = vmatpush1.msra.mxu0 0.0
  %2576 = vmatprep.subr.mxu0 0.0
  %2577 = vmatpush1.msra.mxu0 0.0
  %2578 = vmatprep.mubr.f32.mxu0 0.0
  %2579 = vmatmul.mubr.f32.gmra.mrb[0].mxu0 %v2512
  %v2580 = vpop.f32.mrb[0].mxu0
  %v2581 = vadd.f32 0.0, %v2580
  %v2582 = vpop.f32.mrb[0].mxu0
  %2583 = vdwg.mxu0
  %2585 = vrot.lane.b32.xlu0 %v2508, 64
  %v2586 = vpop.permute.xlu0 %2585
  %v2587 = vsel %vm271, %v2586, 0
  %2589 = vmatprep.subr.mxu0 0.0
  %2590 = vmatpush1.msra.mxu0 %v410
  %2591 = vmatprep.subr.mxu0 0.0
  %2592 = vmatpush1.msra.mxu0 %v411
  %2593 = vmatprep.subr.mxu0 0.0
  %2594 = vmatpush1.msra.mxu0 %v412
  %2595 = vmatprep.subr.mxu0 0.0
  %2596 = vmatpush1.msra.mxu0 %v413
  %2597 = vmatprep.subr.mxu0 0.0
  %2598 = vmatpush1.msra.mxu0 0.0
  %2599 = vmatprep.subr.mxu0 0.0
  %2600 = vmatpush1.msra.mxu0 0.0
  %2601 = vmatprep.subr.mxu0 0.0
  %2602 = vmatpush1.msra.mxu0 0.0
  %2603 = vmatprep.subr.mxu0 0.0
  %2604 = vmatpush1.msra.mxu0 0.0
  %2605 = vmatprep.subr.mxu0 0.0
  %2606 = vmatpush1.msra.mxu0 0.0
  %2607 = vmatprep.subr.mxu0 0.0
  %2608 = vmatpush1.msra.mxu0 0.0
  %2609 = vmatprep.subr.mxu0 0.0
  %2610 = vmatpush1.msra.mxu0 0.0
  %2611 = vmatprep.subr.mxu0 0.0
  %2612 = vmatpush1.msra.mxu0 0.0
  %2613 = vmatprep.subr.mxu0 0.0
  %2614 = vmatpush1.msra.mxu0 0.0
  %2615 = vmatprep.subr.mxu0 0.0
  %2616 = vmatpush1.msra.mxu0 0.0
  %2617 = vmatprep.subr.mxu0 0.0
  %2618 = vmatpush1.msra.mxu0 0.0
  %2619 = vmatprep.subr.mxu0 0.0
  %2620 = vmatpush1.msra.mxu0 0.0
  %2621 = vmatprep.subr.mxu0 0.0
  %2622 = vmatpush1.msra.mxu0 0.0
  %2623 = vmatprep.subr.mxu0 0.0
  %2624 = vmatpush1.msra.mxu0 0.0
  %2625 = vmatprep.subr.mxu0 0.0
  %2626 = vmatpush1.msra.mxu0 0.0
  %2627 = vmatprep.subr.mxu0 0.0
  %2628 = vmatpush1.msra.mxu0 0.0
  %2629 = vmatprep.subr.mxu0 0.0
  %2630 = vmatpush1.msra.mxu0 0.0
  %2631 = vmatprep.subr.mxu0 0.0
  %2632 = vmatpush1.msra.mxu0 0.0
  %2633 = vmatprep.subr.mxu0 0.0
  %2634 = vmatpush1.msra.mxu0 0.0
  %2635 = vmatprep.subr.mxu0 0.0
  %2636 = vmatpush1.msra.mxu0 0.0
  %2637 = vmatprep.subr.mxu0 0.0
  %2638 = vmatpush1.msra.mxu0 0.0
  %2639 = vmatprep.subr.mxu0 0.0
  %2640 = vmatpush1.msra.mxu0 0.0
  %2641 = vmatprep.subr.mxu0 0.0
  %2642 = vmatpush1.msra.mxu0 0.0
  %2643 = vmatprep.subr.mxu0 0.0
  %2644 = vmatpush1.msra.mxu0 0.0
  %2645 = vmatprep.subr.mxu0 0.0
  %2646 = vmatpush1.msra.mxu0 0.0
  %2647 = vmatprep.subr.mxu0 0.0
  %2648 = vmatpush1.msra.mxu0 0.0
  %2649 = vmatprep.subr.mxu0 0.0
  %2650 = vmatpush1.msra.mxu0 0.0
  %2651 = vmatprep.subr.mxu0 0.0
  %2652 = vmatpush1.msra.mxu0 0.0
  %2653 = vmatprep.mubr.f32.mxu0 0.0
  %2654 = vmatmul.mubr.f32.gmra.mrb[0].mxu0 %v2587
  %v2655 = vpop.f32.mrb[0].mxu0
  %v2656 = vadd.f32 %v2581, %v2655
  %v2657 = vpop.f32.mrb[0].mxu0
  %2658 = vdwg.mxu0
  %v2659 = vadd.f32 %v2656, %v675
  %v2660 = vxor.u32 %v2659, 2147483648
  %v2661 = vmul.f32 %v2660, 1.442695
  %v2662 = vpow.pop %v2661
  %v2663 = vadd.f32 %v2662, 1.0
  %v2664 = vrcp.pop %v2663
  %v2665 = vmul.f32 1.0, %v2664
  %v2666 = vtanh.pop %v2659
  %v2667 = vmul.f32 %v2665, %v2396
  %2669 = vrot.lane.b32.xlu0 %v2666, 32
  %v2670 = vpop.permute.xlu0 %2669
  %v2672 = vmul.f32 %v2665, %v2670
  %2674 = vrot.lane.b32.xlu0 %v2672, 32
  %v2675 = vpop.permute.xlu0 %2674
  %v2677 = vadd.f32 %v2667, %v2675
  %v2678 = vtanh.pop %v2677
  %2680 = vrot.lane.b32.xlu0 %v2678, 32
  %v2681 = vpop.permute.xlu0 %2680
  %v2683 = vmul.f32 %v2665, %v2681
  %v2684 = vmul.f32 %v2683, %v708
  %2686 = vrot.lane.b32.xlu0 %v2684, 64
  %v2687 = vpop.permute.xlu0 %2686
  %v2689 = vsel %vm271, %v2687, 0.0
  %2690 = vadd.xlane.f32.xlu0 %v2689
  %v2691 = vpop.xlane.xlu0 %2690
  %v2692 = vadd.f32 %v2691, %v722
  %2693 = vst.msk [vmem:[%s10 + $0x38] sm:$0xff] %vm725, %v2692
  // Predicated region
  $region42: #{tpu_custom_call.1} parent=0 // pred_check
    _
  $region43: #{tpu_custom_call.1} parent=0 // pred_check_branch
    %2695 = sbr.rel (0) target = $region45
  $region44: #{tpu_custom_call.1} parent=0 // pred_region
    _
  $region45: #{tpu_custom_call.1} parent=0 // pred_fallthru
    _
  // Predicated region
  $region46: #{tpu_custom_call.1} parent=0 // pred_check
    _
  $region47: #{tpu_custom_call.1} parent=0 // pred_check_branch
    %2697 = sbr.rel (0) target = $region49
  $region48: #{tpu_custom_call.1} parent=0 // pred_region
    _
  $region49: #{tpu_custom_call.1} parent=0 // pred_fallthru
    _

</llo_original>
